<compile_context>
chip_gen: v6e
topology: v6e:2x2x1
jax: 0.10.0
libtpu: 0.0.40
codegen_flags: <defaults>
</compile_context>

<pallas_src>
import functools

import jax
import jax.numpy as jnp
import numpy as np
from jax.experimental import pallas as pl
from jax.experimental.pallas import tpu as pltpu  # noqa: F401  (kept for TPU-specific extensions)

C_PAD = 128    # every channel dim padded to one full lane width
K1_PAD = 256   # conv1 im2col contraction dim: 7*7*3 = 147 -> 256


# ----------------------------------------------------------------------------
# In-kernel helpers (operate on register values / VMEM refs)
# ----------------------------------------------------------------------------
def _maxpool2x2(x):
    """2x2 / stride-2 max-pool on an in-register NHWC value (H, W even)."""
    n, h, w, c = x.shape
    # Pool H: H lives on a vreg-array dim -> split + integer index is free.
    xh = x.reshape(n, h // 2, 2, w, c)
    x = jnp.maximum(xh[:, :, 0], xh[:, :, 1])                    # (n, h/2, w, c)
    # Pool W: W is the sublane dim -> one small sublane regroup, then VPU max.
    xw = x.reshape(n, h // 2, w // 2, 2, c)
    return jnp.maximum(xw[:, :, :, 0, :], xw[:, :, :, 1, :])     # (n, h/2, w/2, c)


def _conv3x3_relu_taps(x, w_taps_ref, b_ref):
    """VALID 3x3 conv + bias + ReLU via tap-accumulation (9 lane-dense MXU dots).

    x:          (N, H, W, 128) register value (channels already zero-padded to 128)
    w_taps_ref: (9, 128, 128) VMEM ref; tap t corresponds to (kh, kw) = (t//3, t%3)
    b_ref:      (1, 128) VMEM ref
    """
    n, h, w, c = x.shape
    ho, wo = h - 2, w - 2
    m = n * ho * wo
    acc = jnp.zeros((m, c), jnp.float32)
    for t in range(9):
        i, j = t // 3, t % 3
        xt = x[:, i:i + ho, j:j + wo, :].reshape(m, c)           # lane-dense tap operand
        acc = acc + jnp.dot(xt, w_taps_ref[t], preferred_element_type=jnp.float32)
    y = jnp.maximum(acc + b_ref[...], 0.0)                       # bias + ReLU
    return y.reshape(n, ho, wo, c)


# ----------------------------------------------------------------------------
# Single fused kernel: conv1 -> conv2+pool -> conv3+pool -> avgpool -> fc
# ----------------------------------------------------------------------------
def _fused_forward_kernel(p1_ref, w1_ref, b1_ref, w2_ref, b2_ref, w3_ref, b3_ref,
                          wfc_ref, bfc_ref, o_ref, *, batch, conv1_h, conv1_w):
    # conv1: one lane-dense (M,256)x(256,128) MXU GEMM on wrapper-built patches.
    y = jnp.dot(p1_ref[...], w1_ref[...], preferred_element_type=jnp.float32)
    y = jnp.maximum(y + b1_ref[...], 0.0)
    y = y.reshape(batch, conv1_h, conv1_w, C_PAD)

    # conv2 + ReLU + 2x2 max-pool (dropout1 = identity at inference).
    y = _conv3x3_relu_taps(y, w2_ref, b2_ref)
    y = _maxpool2x2(y)

    # conv3 + ReLU + 2x2 max-pool (dropout2 = identity at inference).
    y = _conv3x3_relu_taps(y, w3_ref, b3_ref)
    y = _maxpool2x2(y)

    # Adaptive avg-pool to (1,1): mean over remaining spatial positions.
    n, hp, wp, c = y.shape
    pooled = jnp.sum(y.reshape(n, hp * wp, c), axis=1) * (1.0 / float(hp * wp))

    # fc — classes padded to a full lane width in the wrapper -> lane-dense store.
    o_ref[...] = (jnp.dot(pooled, wfc_ref[...], preferred_element_type=jnp.float32)
                  + bfc_ref[...])


# ----------------------------------------------------------------------------
# Public wrapper (NCHW in, logits out).  Patch building / padding is plain XLA.
# ----------------------------------------------------------------------------
@jax.jit
def base_model_forward(x_nchw, params):
    x = jnp.transpose(x_nchw, (0, 2, 3, 1)).astype(jnp.float32)   # NCHW -> NHWC
    n, h, w, cin = x.shape
    num_classes = params["wfc"].shape[1]

    kh1 = params["w1"].shape[0]                                   # 7
    h1, w1 = h - kh1 + 1, w - kh1 + 1                             # 10, 10

    # conv1 im2col patches, built in the wrapper (lane-dense K, padded 147->256).
    cols = [x[:, i:i + h1, j:j + w1, :] for i in range(kh1) for j in range(kh1)]
    patches = jnp.concatenate(cols, axis=-1).reshape(n * h1 * w1, kh1 * kh1 * cin)
    patches = jnp.pad(patches, ((0, 0), (0, K1_PAD - patches.shape[1])))

    def pad2d(mat, rows, cols_):
        out = jnp.zeros((rows, cols_), jnp.float32)
        return out.at[: mat.shape[0], : mat.shape[1]].set(mat)

    def pad_taps(wt):                                             # (3,3,Ci,Co)->(9,128,128)
        kh, kw, ci, co = wt.shape
        out = jnp.zeros((kh, kw, C_PAD, C_PAD), jnp.float32)
        out = out.at[:, :, :ci, :co].set(wt)
        return out.reshape(kh * kw, C_PAD, C_PAD)

    w1p = pad2d(params["w1"].reshape(-1, params["w1"].shape[-1]), K1_PAD, C_PAD)
    b1p = pad2d(params["b1"].reshape(1, -1), 1, C_PAD)
    w2p = pad_taps(params["w2"])
    b2p = pad2d(params["b2"].reshape(1, -1), 1, C_PAD)
    w3p = pad_taps(params["w3"])
    b3p = pad2d(params["b3"].reshape(1, -1), 1, C_PAD)

    nc_pad = max(C_PAD, ((num_classes + 127) // 128) * 128)
    wfcp = pad2d(params["wfc"], C_PAD, nc_pad)
    bfcp = pad2d(params["bfc"].reshape(1, -1), 1, nc_pad)

    kernel = functools.partial(_fused_forward_kernel,
                               batch=n, conv1_h=h1, conv1_w=w1)

    out_padded = pl.pallas_call(
        kernel,
        out_shape=jax.ShapeDtypeStruct((n, nc_pad), jnp.float32),
    )(patches, w1p, b1p, w2p, b2p, w3p, b3p, wfcp, bfcp)

    return out_padded[:, :num_classes]


# ----------------------------------------------------------------------------
# Deterministic parameter init (PyTorch-style uniform bounds, synthetic weights)
# ----------------------------------------------------------------------------
def init_params(key, num_classes):
    def conv_init(k, kh, kw, cin, cout):
        k1, k2 = jax.random.split(k)
        bound = 1.0 / np.sqrt(cin * kh * kw)
        wgt = jax.random.uniform(k1, (kh, kw, cin, cout), jnp.float32, -bound, bound)
        b = jax.random.uniform(k2, (cout,), jnp.float32, -bound, bound)
        return wgt, b

    k1, k2, k3, k4 = jax.random.split(key, 4)
    w1, b1 = conv_init(k1, 7, 7, 3, 32)
    w2, b2 = conv_init(k2, 3, 3, 32, 64)
    w3, b3 = conv_init(k3, 3, 3, 64, 128)

    kf1, kf2 = jax.random.split(k4)
    bound = 1.0 / np.sqrt(128.0)
    wfc = jax.random.uniform(kf1, (128, num_classes), jnp.float32, -bound, bound)
    bfc = jax.random.uniform(kf2, (num_classes,), jnp.float32, -bound, bound)

    return dict(w1=w1, b1=b1, w2=w2, b2=b2, w3=w3, b3=b3, wfc=wfc, bfc=bfc)


# ----------------------------------------------------------------------------
# Pure-JAX reference (for correctness check)
# ----------------------------------------------------------------------------
def reference_forward(x_nchw, p):
    x = jnp.transpose(x_nchw, (0, 2, 3, 1))

    def conv(xx, wgt, b):
        y = jax.lax.conv_general_dilated(
            xx, wgt, window_strides=(1, 1), padding="VALID",
            dimension_numbers=("NHWC", "HWIO", "NHWC"))
        return jax.nn.relu(y + b)

    def pool(xx):
        n, h, w, c = xx.shape
        ho, wo = h // 2, w // 2
        xx = xx[:, : ho * 2, : wo * 2, :].reshape(n, ho, 2, wo, 2, c)
        return xx.max(axis=(2, 4))

    x = conv(x, p["w1"], p["b1"])
    x = conv(x, p["w2"], p["b2"])
    x = pool(x)
    x = conv(x, p["w3"], p["b3"])
    x = pool(x)
    x = x.mean(axis=(1, 2))
    return x @ p["wfc"] + p["bfc"]


if __name__ == "__main__":
    num_classes = 10
    key = jax.random.PRNGKey(0)
    kp, kx = jax.random.split(key)
    params = init_params(kp, num_classes)

    # NCHW, like the PyTorch module expects: (batch=2, channels=3, 16, 16)
    x = jax.random.normal(kx, (2, 3, 16, 16), jnp.float32)

    out = jax.block_until_ready(base_model_forward(x, params))
    assert out.shape == (2, num_classes), out.shape

    ref = reference_forward(x, params)
    np.testing.assert_allclose(np.asarray(out), np.asarray(ref), rtol=5e-3, atol=5e-3)

    # TODO(synk): training-mode Dropout would need pltpu.prng_seed/prng_random_bits masks.
    print("KERNEL_OK")
</pallas_src>

<mosaic_0001>
module attributes {stable_mosaic.version = 11 : i64} {
  func.func @_fused_forward_kernel(%arg0: memref<200x256xf32, #tpu.memory_space<vmem>>, %arg1: memref<256x128xf32, #tpu.memory_space<vmem>>, %arg2: memref<1x128xf32, #tpu.memory_space<vmem>>, %arg3: memref<9x128x128xf32, #tpu.memory_space<vmem>>, %arg4: memref<1x128xf32, #tpu.memory_space<vmem>>, %arg5: memref<9x128x128xf32, #tpu.memory_space<vmem>>, %arg6: memref<1x128xf32, #tpu.memory_space<vmem>>, %arg7: memref<128x128xf32, #tpu.memory_space<vmem>>, %arg8: memref<1x128xf32, #tpu.memory_space<vmem>>, %arg9: memref<2x128xf32, #tpu.memory_space<vmem>>) attributes {dimension_semantics = [], scalar_prefetch = 0 : i64, scratch_operands = 0 : i64, tpu.core_type = #tpu.core_type<tc>} {
    %c0 = arith.constant 0 : index
    %c0_0 = arith.constant 0 : index
    %0 = vector.load %arg0[%c0, %c0_0] : memref<200x256xf32, #tpu.memory_space<vmem>>, vector<200x256xf32>
    %c0_1 = arith.constant 0 : index
    %c0_2 = arith.constant 0 : index
    %1 = vector.load %arg1[%c0_1, %c0_2] : memref<256x128xf32, #tpu.memory_space<vmem>>, vector<256x128xf32>
    %cst = arith.constant dense<0.000000e+00> : vector<200x128xf32>
    %2 = tpu.matmul %0, %1, %cst {dimension_numbers = #tpu.dot_dimension_numbers<[1], [0], [0], [1], [0, 0, 1, 1], [], []>} : vector<200x256xf32>, vector<256x128xf32>, vector<200x128xf32> -> vector<200x128xf32>
    %c0_3 = arith.constant 0 : index
    %c0_4 = arith.constant 0 : index
    %3 = vector.load %arg2[%c0_3, %c0_4] : memref<1x128xf32, #tpu.memory_space<vmem>>, vector<1x128xf32>
    %4 = vector.broadcast %3 : vector<1x128xf32> to vector<200x128xf32>
    %5 = arith.addf %2, %4 : vector<200x128xf32>
    %cst_5 = arith.constant 0.000000e+00 : f32
    %6 = vector.broadcast %cst_5 : f32 to vector<200x128xf32>
    %7 = arith.maximumf %5, %6 : vector<200x128xf32>
    %8 = vector.shape_cast %7 : vector<200x128xf32> to vector<2x10x10x128xf32>
    %cst_6 = arith.constant 0.000000e+00 : f32
    %9 = vector.broadcast %cst_6 : f32 to vector<128x128xf32>
    %10 = vector.extract_strided_slice %8 {offsets = [0, 0, 0, 0], sizes = [2, 8, 8, 128], strides = [1, 1, 1, 1]} : vector<2x10x10x128xf32> to vector<2x8x8x128xf32>
    %11 = vector.shape_cast %10 : vector<2x8x8x128xf32> to vector<128x128xf32>
    %c0_7 = arith.constant 0 : index
    %c0_8 = arith.constant 0 : index
    %c0_9 = arith.constant 0 : index
    %12 = vector.load %arg3[%c0_7, %c0_8, %c0_9] : memref<9x128x128xf32, #tpu.memory_space<vmem>>, vector<1x128x128xf32>
    %13 = vector.shape_cast %12 : vector<1x128x128xf32> to vector<128x128xf32>
    %cst_10 = arith.constant dense<0.000000e+00> : vector<128x128xf32>
    %14 = tpu.matmul %11, %13, %cst_10 {dimension_numbers = #tpu.dot_dimension_numbers<[1], [0], [0], [1], [0, 0, 1, 1], [], []>} : vector<128x128xf32>, vector<128x128xf32>, vector<128x128xf32> -> vector<128x128xf32>
    %15 = arith.addf %9, %14 : vector<128x128xf32>
    %16 = vector.extract_strided_slice %8 {offsets = [0, 0, 1, 0], sizes = [2, 8, 8, 128], strides = [1, 1, 1, 1]} : vector<2x10x10x128xf32> to vector<2x8x8x128xf32>
    %17 = vector.shape_cast %16 : vector<2x8x8x128xf32> to vector<128x128xf32>
    %c1 = arith.constant 1 : index
    %c0_11 = arith.constant 0 : index
    %c0_12 = arith.constant 0 : index
    %18 = vector.load %arg3[%c1, %c0_11, %c0_12] : memref<9x128x128xf32, #tpu.memory_space<vmem>>, vector<1x128x128xf32>
    %19 = vector.shape_cast %18 : vector<1x128x128xf32> to vector<128x128xf32>
    %cst_13 = arith.constant dense<0.000000e+00> : vector<128x128xf32>
    %20 = tpu.matmul %17, %19, %cst_13 {dimension_numbers = #tpu.dot_dimension_numbers<[1], [0], [0], [1], [0, 0, 1, 1], [], []>} : vector<128x128xf32>, vector<128x128xf32>, vector<128x128xf32> -> vector<128x128xf32>
    %21 = arith.addf %15, %20 : vector<128x128xf32>
    %22 = vector.extract_strided_slice %8 {offsets = [0, 0, 2, 0], sizes = [2, 8, 8, 128], strides = [1, 1, 1, 1]} : vector<2x10x10x128xf32> to vector<2x8x8x128xf32>
    %23 = vector.shape_cast %22 : vector<2x8x8x128xf32> to vector<128x128xf32>
    %c2 = arith.constant 2 : index
    %c0_14 = arith.constant 0 : index
    %c0_15 = arith.constant 0 : index
    %24 = vector.load %arg3[%c2, %c0_14, %c0_15] : memref<9x128x128xf32, #tpu.memory_space<vmem>>, vector<1x128x128xf32>
    %25 = vector.shape_cast %24 : vector<1x128x128xf32> to vector<128x128xf32>
    %cst_16 = arith.constant dense<0.000000e+00> : vector<128x128xf32>
    %26 = tpu.matmul %23, %25, %cst_16 {dimension_numbers = #tpu.dot_dimension_numbers<[1], [0], [0], [1], [0, 0, 1, 1], [], []>} : vector<128x128xf32>, vector<128x128xf32>, vector<128x128xf32> -> vector<128x128xf32>
    %27 = arith.addf %21, %26 : vector<128x128xf32>
    %28 = vector.extract_strided_slice %8 {offsets = [0, 1, 0, 0], sizes = [2, 8, 8, 128], strides = [1, 1, 1, 1]} : vector<2x10x10x128xf32> to vector<2x8x8x128xf32>
    %29 = vector.shape_cast %28 : vector<2x8x8x128xf32> to vector<128x128xf32>
    %c3 = arith.constant 3 : index
    %c0_17 = arith.constant 0 : index
    %c0_18 = arith.constant 0 : index
    %30 = vector.load %arg3[%c3, %c0_17, %c0_18] : memref<9x128x128xf32, #tpu.memory_space<vmem>>, vector<1x128x128xf32>
    %31 = vector.shape_cast %30 : vector<1x128x128xf32> to vector<128x128xf32>
    %cst_19 = arith.constant dense<0.000000e+00> : vector<128x128xf32>
    %32 = tpu.matmul %29, %31, %cst_19 {dimension_numbers = #tpu.dot_dimension_numbers<[1], [0], [0], [1], [0, 0, 1, 1], [], []>} : vector<128x128xf32>, vector<128x128xf32>, vector<128x128xf32> -> vector<128x128xf32>
    %33 = arith.addf %27, %32 : vector<128x128xf32>
    %34 = vector.extract_strided_slice %8 {offsets = [0, 1, 1, 0], sizes = [2, 8, 8, 128], strides = [1, 1, 1, 1]} : vector<2x10x10x128xf32> to vector<2x8x8x128xf32>
    %35 = vector.shape_cast %34 : vector<2x8x8x128xf32> to vector<128x128xf32>
    %c4 = arith.constant 4 : index
    %c0_20 = arith.constant 0 : index
    %c0_21 = arith.constant 0 : index
    %36 = vector.load %arg3[%c4, %c0_20, %c0_21] : memref<9x128x128xf32, #tpu.memory_space<vmem>>, vector<1x128x128xf32>
    %37 = vector.shape_cast %36 : vector<1x128x128xf32> to vector<128x128xf32>
    %cst_22 = arith.constant dense<0.000000e+00> : vector<128x128xf32>
    %38 = tpu.matmul %35, %37, %cst_22 {dimension_numbers = #tpu.dot_dimension_numbers<[1], [0], [0], [1], [0, 0, 1, 1], [], []>} : vector<128x128xf32>, vector<128x128xf32>, vector<128x128xf32> -> vector<128x128xf32>
    %39 = arith.addf %33, %38 : vector<128x128xf32>
    %40 = vector.extract_strided_slice %8 {offsets = [0, 1, 2, 0], sizes = [2, 8, 8, 128], strides = [1, 1, 1, 1]} : vector<2x10x10x128xf32> to vector<2x8x8x128xf32>
    %41 = vector.shape_cast %40 : vector<2x8x8x128xf32> to vector<128x128xf32>
    %c5 = arith.constant 5 : index
    %c0_23 = arith.constant 0 : index
    %c0_24 = arith.constant 0 : index
    %42 = vector.load %arg3[%c5, %c0_23, %c0_24] : memref<9x128x128xf32, #tpu.memory_space<vmem>>, vector<1x128x128xf32>
    %43 = vector.shape_cast %42 : vector<1x128x128xf32> to vector<128x128xf32>
    %cst_25 = arith.constant dense<0.000000e+00> : vector<128x128xf32>
    %44 = tpu.matmul %41, %43, %cst_25 {dimension_numbers = #tpu.dot_dimension_numbers<[1], [0], [0], [1], [0, 0, 1, 1], [], []>} : vector<128x128xf32>, vector<128x128xf32>, vector<128x128xf32> -> vector<128x128xf32>
    %45 = arith.addf %39, %44 : vector<128x128xf32>
    %46 = vector.extract_strided_slice %8 {offsets = [0, 2, 0, 0], sizes = [2, 8, 8, 128], strides = [1, 1, 1, 1]} : vector<2x10x10x128xf32> to vector<2x8x8x128xf32>
    %47 = vector.shape_cast %46 : vector<2x8x8x128xf32> to vector<128x128xf32>
    %c6 = arith.constant 6 : index
    %c0_26 = arith.constant 0 : index
    %c0_27 = arith.constant 0 : index
    %48 = vector.load %arg3[%c6, %c0_26, %c0_27] : memref<9x128x128xf32, #tpu.memory_space<vmem>>, vector<1x128x128xf32>
    %49 = vector.shape_cast %48 : vector<1x128x128xf32> to vector<128x128xf32>
    %cst_28 = arith.constant dense<0.000000e+00> : vector<128x128xf32>
    %50 = tpu.matmul %47, %49, %cst_28 {dimension_numbers = #tpu.dot_dimension_numbers<[1], [0], [0], [1], [0, 0, 1, 1], [], []>} : vector<128x128xf32>, vector<128x128xf32>, vector<128x128xf32> -> vector<128x128xf32>
    %51 = arith.addf %45, %50 : vector<128x128xf32>
    %52 = vector.extract_strided_slice %8 {offsets = [0, 2, 1, 0], sizes = [2, 8, 8, 128], strides = [1, 1, 1, 1]} : vector<2x10x10x128xf32> to vector<2x8x8x128xf32>
    %53 = vector.shape_cast %52 : vector<2x8x8x128xf32> to vector<128x128xf32>
    %c7 = arith.constant 7 : index
    %c0_29 = arith.constant 0 : index
    %c0_30 = arith.constant 0 : index
    %54 = vector.load %arg3[%c7, %c0_29, %c0_30] : memref<9x128x128xf32, #tpu.memory_space<vmem>>, vector<1x128x128xf32>
    %55 = vector.shape_cast %54 : vector<1x128x128xf32> to vector<128x128xf32>
    %cst_31 = arith.constant dense<0.000000e+00> : vector<128x128xf32>
    %56 = tpu.matmul %53, %55, %cst_31 {dimension_numbers = #tpu.dot_dimension_numbers<[1], [0], [0], [1], [0, 0, 1, 1], [], []>} : vector<128x128xf32>, vector<128x128xf32>, vector<128x128xf32> -> vector<128x128xf32>
    %57 = arith.addf %51, %56 : vector<128x128xf32>
    %58 = vector.extract_strided_slice %8 {offsets = [0, 2, 2, 0], sizes = [2, 8, 8, 128], strides = [1, 1, 1, 1]} : vector<2x10x10x128xf32> to vector<2x8x8x128xf32>
    %59 = vector.shape_cast %58 : vector<2x8x8x128xf32> to vector<128x128xf32>
    %c8 = arith.constant 8 : index
    %c0_32 = arith.constant 0 : index
    %c0_33 = arith.constant 0 : index
    %60 = vector.load %arg3[%c8, %c0_32, %c0_33] : memref<9x128x128xf32, #tpu.memory_space<vmem>>, vector<1x128x128xf32>
    %61 = vector.shape_cast %60 : vector<1x128x128xf32> to vector<128x128xf32>
    %cst_34 = arith.constant dense<0.000000e+00> : vector<128x128xf32>
    %62 = tpu.matmul %59, %61, %cst_34 {dimension_numbers = #tpu.dot_dimension_numbers<[1], [0], [0], [1], [0, 0, 1, 1], [], []>} : vector<128x128xf32>, vector<128x128xf32>, vector<128x128xf32> -> vector<128x128xf32>
    %63 = arith.addf %57, %62 : vector<128x128xf32>
    %c0_35 = arith.constant 0 : index
    %c0_36 = arith.constant 0 : index
    %64 = vector.load %arg4[%c0_35, %c0_36] : memref<1x128xf32, #tpu.memory_space<vmem>>, vector<1x128xf32>
    %65 = vector.broadcast %64 : vector<1x128xf32> to vector<128x128xf32>
    %66 = arith.addf %63, %65 : vector<128x128xf32>
    %cst_37 = arith.constant 0.000000e+00 : f32
    %67 = vector.broadcast %cst_37 : f32 to vector<128x128xf32>
    %68 = arith.maximumf %66, %67 : vector<128x128xf32>
    %69 = vector.shape_cast %68 : vector<128x128xf32> to vector<2x8x8x128xf32>
    %70 = vector.shape_cast %69 : vector<2x8x8x128xf32> to vector<2x4x2x8x128xf32>
    %71 = vector.extract_strided_slice %70 {offsets = [0, 0, 0, 0, 0], sizes = [2, 4, 1, 8, 128], strides = [1, 1, 1, 1, 1]} : vector<2x4x2x8x128xf32> to vector<2x4x1x8x128xf32>
    %72 = vector.shape_cast %71 : vector<2x4x1x8x128xf32> to vector<2x4x8x128xf32>
    %73 = vector.extract_strided_slice %70 {offsets = [0, 0, 1, 0, 0], sizes = [2, 4, 1, 8, 128], strides = [1, 1, 1, 1, 1]} : vector<2x4x2x8x128xf32> to vector<2x4x1x8x128xf32>
    %74 = vector.shape_cast %73 : vector<2x4x1x8x128xf32> to vector<2x4x8x128xf32>
    %75 = arith.maximumf %72, %74 : vector<2x4x8x128xf32>
    %76 = vector.shape_cast %75 : vector<2x4x8x128xf32> to vector<2x4x4x2x128xf32>
    %77 = vector.extract_strided_slice %76 {offsets = [0, 0, 0, 0, 0], sizes = [2, 4, 4, 1, 128], strides = [1, 1, 1, 1, 1]} : vector<2x4x4x2x128xf32> to vector<2x4x4x1x128xf32>
    %78 = vector.shape_cast %77 : vector<2x4x4x1x128xf32> to vector<2x4x4x128xf32>
    %79 = vector.extract_strided_slice %76 {offsets = [0, 0, 0, 1, 0], sizes = [2, 4, 4, 1, 128], strides = [1, 1, 1, 1, 1]} : vector<2x4x4x2x128xf32> to vector<2x4x4x1x128xf32>
    %80 = vector.shape_cast %79 : vector<2x4x4x1x128xf32> to vector<2x4x4x128xf32>
    %81 = arith.maximumf %78, %80 : vector<2x4x4x128xf32>
    %cst_38 = arith.constant 0.000000e+00 : f32
    %82 = vector.broadcast %cst_38 : f32 to vector<8x128xf32>
    %83 = vector.extract_strided_slice %81 {offsets = [0, 0, 0, 0], sizes = [2, 2, 2, 128], strides = [1, 1, 1, 1]} : vector<2x4x4x128xf32> to vector<2x2x2x128xf32>
    %84 = vector.shape_cast %83 : vector<2x2x2x128xf32> to vector<8x128xf32>
    %c0_39 = arith.constant 0 : index
    %c0_40 = arith.constant 0 : index
    %c0_41 = arith.constant 0 : index
    %85 = vector.load %arg5[%c0_39, %c0_40, %c0_41] : memref<9x128x128xf32, #tpu.memory_space<vmem>>, vector<1x128x128xf32>
    %86 = vector.shape_cast %85 : vector<1x128x128xf32> to vector<128x128xf32>
    %cst_42 = arith.constant dense<0.000000e+00> : vector<8x128xf32>
    %87 = tpu.matmul %84, %86, %cst_42 {dimension_numbers = #tpu.dot_dimension_numbers<[1], [0], [0], [1], [0, 0, 1, 1], [], []>} : vector<8x128xf32>, vector<128x128xf32>, vector<8x128xf32> -> vector<8x128xf32>
    %88 = arith.addf %82, %87 : vector<8x128xf32>
    %89 = vector.extract_strided_slice %81 {offsets = [0, 0, 1, 0], sizes = [2, 2, 2, 128], strides = [1, 1, 1, 1]} : vector<2x4x4x128xf32> to vector<2x2x2x128xf32>
    %90 = vector.shape_cast %89 : vector<2x2x2x128xf32> to vector<8x128xf32>
    %c1_43 = arith.constant 1 : index
    %c0_44 = arith.constant 0 : index
    %c0_45 = arith.constant 0 : index
    %91 = vector.load %arg5[%c1_43, %c0_44, %c0_45] : memref<9x128x128xf32, #tpu.memory_space<vmem>>, vector<1x128x128xf32>
    %92 = vector.shape_cast %91 : vector<1x128x128xf32> to vector<128x128xf32>
    %cst_46 = arith.constant dense<0.000000e+00> : vector<8x128xf32>
    %93 = tpu.matmul %90, %92, %cst_46 {dimension_numbers = #tpu.dot_dimension_numbers<[1], [0], [0], [1], [0, 0, 1, 1], [], []>} : vector<8x128xf32>, vector<128x128xf32>, vector<8x128xf32> -> vector<8x128xf32>
    %94 = arith.addf %88, %93 : vector<8x128xf32>
    %95 = vector.extract_strided_slice %81 {offsets = [0, 0, 2, 0], sizes = [2, 2, 2, 128], strides = [1, 1, 1, 1]} : vector<2x4x4x128xf32> to vector<2x2x2x128xf32>
    %96 = vector.shape_cast %95 : vector<2x2x2x128xf32> to vector<8x128xf32>
    %c2_47 = arith.constant 2 : index
    %c0_48 = arith.constant 0 : index
    %c0_49 = arith.constant 0 : index
    %97 = vector.load %arg5[%c2_47, %c0_48, %c0_49] : memref<9x128x128xf32, #tpu.memory_space<vmem>>, vector<1x128x128xf32>
    %98 = vector.shape_cast %97 : vector<1x128x128xf32> to vector<128x128xf32>
    %cst_50 = arith.constant dense<0.000000e+00> : vector<8x128xf32>
    %99 = tpu.matmul %96, %98, %cst_50 {dimension_numbers = #tpu.dot_dimension_numbers<[1], [0], [0], [1], [0, 0, 1, 1], [], []>} : vector<8x128xf32>, vector<128x128xf32>, vector<8x128xf32> -> vector<8x128xf32>
    %100 = arith.addf %94, %99 : vector<8x128xf32>
    %101 = vector.extract_strided_slice %81 {offsets = [0, 1, 0, 0], sizes = [2, 2, 2, 128], strides = [1, 1, 1, 1]} : vector<2x4x4x128xf32> to vector<2x2x2x128xf32>
    %102 = vector.shape_cast %101 : vector<2x2x2x128xf32> to vector<8x128xf32>
    %c3_51 = arith.constant 3 : index
    %c0_52 = arith.constant 0 : index
    %c0_53 = arith.constant 0 : index
    %103 = vector.load %arg5[%c3_51, %c0_52, %c0_53] : memref<9x128x128xf32, #tpu.memory_space<vmem>>, vector<1x128x128xf32>
    %104 = vector.shape_cast %103 : vector<1x128x128xf32> to vector<128x128xf32>
    %cst_54 = arith.constant dense<0.000000e+00> : vector<8x128xf32>
    %105 = tpu.matmul %102, %104, %cst_54 {dimension_numbers = #tpu.dot_dimension_numbers<[1], [0], [0], [1], [0, 0, 1, 1], [], []>} : vector<8x128xf32>, vector<128x128xf32>, vector<8x128xf32> -> vector<8x128xf32>
    %106 = arith.addf %100, %105 : vector<8x128xf32>
    %107 = vector.extract_strided_slice %81 {offsets = [0, 1, 1, 0], sizes = [2, 2, 2, 128], strides = [1, 1, 1, 1]} : vector<2x4x4x128xf32> to vector<2x2x2x128xf32>
    %108 = vector.shape_cast %107 : vector<2x2x2x128xf32> to vector<8x128xf32>
    %c4_55 = arith.constant 4 : index
    %c0_56 = arith.constant 0 : index
    %c0_57 = arith.constant 0 : index
    %109 = vector.load %arg5[%c4_55, %c0_56, %c0_57] : memref<9x128x128xf32, #tpu.memory_space<vmem>>, vector<1x128x128xf32>
    %110 = vector.shape_cast %109 : vector<1x128x128xf32> to vector<128x128xf32>
    %cst_58 = arith.constant dense<0.000000e+00> : vector<8x128xf32>
    %111 = tpu.matmul %108, %110, %cst_58 {dimension_numbers = #tpu.dot_dimension_numbers<[1], [0], [0], [1], [0, 0, 1, 1], [], []>} : vector<8x128xf32>, vector<128x128xf32>, vector<8x128xf32> -> vector<8x128xf32>
    %112 = arith.addf %106, %111 : vector<8x128xf32>
    %113 = vector.extract_strided_slice %81 {offsets = [0, 1, 2, 0], sizes = [2, 2, 2, 128], strides = [1, 1, 1, 1]} : vector<2x4x4x128xf32> to vector<2x2x2x128xf32>
    %114 = vector.shape_cast %113 : vector<2x2x2x128xf32> to vector<8x128xf32>
    %c5_59 = arith.constant 5 : index
    %c0_60 = arith.constant 0 : index
    %c0_61 = arith.constant 0 : index
    %115 = vector.load %arg5[%c5_59, %c0_60, %c0_61] : memref<9x128x128xf32, #tpu.memory_space<vmem>>, vector<1x128x128xf32>
    %116 = vector.shape_cast %115 : vector<1x128x128xf32> to vector<128x128xf32>
    %cst_62 = arith.constant dense<0.000000e+00> : vector<8x128xf32>
    %117 = tpu.matmul %114, %116, %cst_62 {dimension_numbers = #tpu.dot_dimension_numbers<[1], [0], [0], [1], [0, 0, 1, 1], [], []>} : vector<8x128xf32>, vector<128x128xf32>, vector<8x128xf32> -> vector<8x128xf32>
    %118 = arith.addf %112, %117 : vector<8x128xf32>
    %119 = vector.extract_strided_slice %81 {offsets = [0, 2, 0, 0], sizes = [2, 2, 2, 128], strides = [1, 1, 1, 1]} : vector<2x4x4x128xf32> to vector<2x2x2x128xf32>
    %120 = vector.shape_cast %119 : vector<2x2x2x128xf32> to vector<8x128xf32>
    %c6_63 = arith.constant 6 : index
    %c0_64 = arith.constant 0 : index
    %c0_65 = arith.constant 0 : index
    %121 = vector.load %arg5[%c6_63, %c0_64, %c0_65] : memref<9x128x128xf32, #tpu.memory_space<vmem>>, vector<1x128x128xf32>
    %122 = vector.shape_cast %121 : vector<1x128x128xf32> to vector<128x128xf32>
    %cst_66 = arith.constant dense<0.000000e+00> : vector<8x128xf32>
    %123 = tpu.matmul %120, %122, %cst_66 {dimension_numbers = #tpu.dot_dimension_numbers<[1], [0], [0], [1], [0, 0, 1, 1], [], []>} : vector<8x128xf32>, vector<128x128xf32>, vector<8x128xf32> -> vector<8x128xf32>
    %124 = arith.addf %118, %123 : vector<8x128xf32>
    %125 = vector.extract_strided_slice %81 {offsets = [0, 2, 1, 0], sizes = [2, 2, 2, 128], strides = [1, 1, 1, 1]} : vector<2x4x4x128xf32> to vector<2x2x2x128xf32>
    %126 = vector.shape_cast %125 : vector<2x2x2x128xf32> to vector<8x128xf32>
    %c7_67 = arith.constant 7 : index
    %c0_68 = arith.constant 0 : index
    %c0_69 = arith.constant 0 : index
    %127 = vector.load %arg5[%c7_67, %c0_68, %c0_69] : memref<9x128x128xf32, #tpu.memory_space<vmem>>, vector<1x128x128xf32>
    %128 = vector.shape_cast %127 : vector<1x128x128xf32> to vector<128x128xf32>
    %cst_70 = arith.constant dense<0.000000e+00> : vector<8x128xf32>
    %129 = tpu.matmul %126, %128, %cst_70 {dimension_numbers = #tpu.dot_dimension_numbers<[1], [0], [0], [1], [0, 0, 1, 1], [], []>} : vector<8x128xf32>, vector<128x128xf32>, vector<8x128xf32> -> vector<8x128xf32>
    %130 = arith.addf %124, %129 : vector<8x128xf32>
    %131 = vector.extract_strided_slice %81 {offsets = [0, 2, 2, 0], sizes = [2, 2, 2, 128], strides = [1, 1, 1, 1]} : vector<2x4x4x128xf32> to vector<2x2x2x128xf32>
    %132 = vector.shape_cast %131 : vector<2x2x2x128xf32> to vector<8x128xf32>
    %c8_71 = arith.constant 8 : index
    %c0_72 = arith.constant 0 : index
    %c0_73 = arith.constant 0 : index
    %133 = vector.load %arg5[%c8_71, %c0_72, %c0_73] : memref<9x128x128xf32, #tpu.memory_space<vmem>>, vector<1x128x128xf32>
    %134 = vector.shape_cast %133 : vector<1x128x128xf32> to vector<128x128xf32>
    %cst_74 = arith.constant dense<0.000000e+00> : vector<8x128xf32>
    %135 = tpu.matmul %132, %134, %cst_74 {dimension_numbers = #tpu.dot_dimension_numbers<[1], [0], [0], [1], [0, 0, 1, 1], [], []>} : vector<8x128xf32>, vector<128x128xf32>, vector<8x128xf32> -> vector<8x128xf32>
    %136 = arith.addf %130, %135 : vector<8x128xf32>
    %c0_75 = arith.constant 0 : index
    %c0_76 = arith.constant 0 : index
    %137 = vector.load %arg6[%c0_75, %c0_76] : memref<1x128xf32, #tpu.memory_space<vmem>>, vector<1x128xf32>
    %138 = vector.broadcast %137 : vector<1x128xf32> to vector<8x128xf32>
    %139 = arith.addf %136, %138 : vector<8x128xf32>
    %cst_77 = arith.constant 0.000000e+00 : f32
    %140 = vector.broadcast %cst_77 : f32 to vector<8x128xf32>
    %141 = arith.maximumf %139, %140 : vector<8x128xf32>
    %142 = vector.shape_cast %141 : vector<8x128xf32> to vector<2x2x2x128xf32>
    %143 = vector.shape_cast %142 : vector<2x2x2x128xf32> to vector<2x1x2x2x128xf32>
    %144 = vector.extract_strided_slice %143 {offsets = [0, 0, 0, 0, 0], sizes = [2, 1, 1, 2, 128], strides = [1, 1, 1, 1, 1]} : vector<2x1x2x2x128xf32> to vector<2x1x1x2x128xf32>
    %145 = vector.shape_cast %144 : vector<2x1x1x2x128xf32> to vector<2x1x2x128xf32>
    %146 = vector.extract_strided_slice %143 {offsets = [0, 0, 1, 0, 0], sizes = [2, 1, 1, 2, 128], strides = [1, 1, 1, 1, 1]} : vector<2x1x2x2x128xf32> to vector<2x1x1x2x128xf32>
    %147 = vector.shape_cast %146 : vector<2x1x1x2x128xf32> to vector<2x1x2x128xf32>
    %148 = arith.maximumf %145, %147 : vector<2x1x2x128xf32>
    %149 = vector.shape_cast %148 : vector<2x1x2x128xf32> to vector<2x1x1x2x128xf32>
    %150 = vector.extract_strided_slice %149 {offsets = [0, 0, 0, 0, 0], sizes = [2, 1, 1, 1, 128], strides = [1, 1, 1, 1, 1]} : vector<2x1x1x2x128xf32> to vector<2x1x1x1x128xf32>
    %151 = vector.shape_cast %150 : vector<2x1x1x1x128xf32> to vector<2x1x1x128xf32>
    %152 = vector.extract_strided_slice %149 {offsets = [0, 0, 0, 1, 0], sizes = [2, 1, 1, 1, 128], strides = [1, 1, 1, 1, 1]} : vector<2x1x1x2x128xf32> to vector<2x1x1x1x128xf32>
    %153 = vector.shape_cast %152 : vector<2x1x1x1x128xf32> to vector<2x1x1x128xf32>
    %154 = arith.maximumf %151, %153 : vector<2x1x1x128xf32>
    %155 = vector.shape_cast %154 : vector<2x1x1x128xf32> to vector<2x1x128xf32>
    %cst_78 = arith.constant dense<0.000000e+00> : vector<2x128xf32>
    %156 = vector.multi_reduction <add>, %155, %cst_78 [1] : vector<2x1x128xf32> to vector<2x128xf32>
    %cst_79 = arith.constant 1.000000e+00 : f32
    %157 = vector.broadcast %cst_79 : f32 to vector<2x128xf32>
    %158 = arith.mulf %156, %157 : vector<2x128xf32>
    %c0_80 = arith.constant 0 : index
    %c0_81 = arith.constant 0 : index
    %159 = vector.load %arg7[%c0_80, %c0_81] : memref<128x128xf32, #tpu.memory_space<vmem>>, vector<128x128xf32>
    %cst_82 = arith.constant dense<0.000000e+00> : vector<2x128xf32>
    %160 = tpu.matmul %158, %159, %cst_82 {dimension_numbers = #tpu.dot_dimension_numbers<[1], [0], [0], [1], [0, 0, 1, 1], [], []>} : vector<2x128xf32>, vector<128x128xf32>, vector<2x128xf32> -> vector<2x128xf32>
    %c0_83 = arith.constant 0 : index
    %c0_84 = arith.constant 0 : index
    %161 = vector.load %arg8[%c0_83, %c0_84] : memref<1x128xf32, #tpu.memory_space<vmem>>, vector<1x128xf32>
    %162 = vector.broadcast %161 : vector<1x128xf32> to vector<2x128xf32>
    %163 = arith.addf %160, %162 : vector<2x128xf32>
    %c0_85 = arith.constant 0 : index
    %c0_86 = arith.constant 0 : index
    %164 = vector.load %arg9[%c0_85, %c0_86] : memref<2x128xf32, #tpu.memory_space<vmem>>, vector<2x128xf32>
    tpu.vector_store %arg9[%c0_85, %c0_86], %163 {strides = array<i32>} : memref<2x128xf32, #tpu.memory_space<vmem>>, vector<2x128xf32>,
    return
  }
}

</mosaic_0001>

<llo_original>
// kernel: base_model_forward.1
$region0: #{base_model_forward.1}
  #allocation0 [shape = 'u32[]', space=smem, size = 0x4, offset = 0x4, fixed_abs, tag = 'smem constant byte address 0x4 - core index']
  #allocation1 [shape = 'u32[144,128]{1,0:T(1,128)}', space=vmem, size = 0x12000, scoped, tag = 'internal scratch']
  %s0 = inlined_call_operand.vmem [shape: f32[200,256], index: 0, kind: input, shape index: {}]
  %s1 = inlined_call_operand.vmem [shape: f32[256,128], index: 1, kind: input, shape index: {}]
  %s2 = inlined_call_operand.vmem [shape: f32[1,128], index: 2, kind: input, shape index: {}]
  %s3 = inlined_call_operand.vmem [shape: f32[9,128,128], index: 3, kind: input, shape index: {}]
  %s4 = inlined_call_operand.vmem [shape: f32[1,128], index: 4, kind: input, shape index: {}]
  %s5 = inlined_call_operand.vmem [shape: f32[9,128,128], index: 5, kind: input, shape index: {}]
  %s6 = inlined_call_operand.vmem [shape: f32[1,128], index: 6, kind: input, shape index: {}]
  %s7 = inlined_call_operand.vmem [shape: f32[128,128], index: 7, kind: input, shape index: {}]
  %s8 = inlined_call_operand.vmem [shape: f32[1,128], index: 8, kind: input, shape index: {}]
  %s9 = inlined_call_operand.hbm [shape: f32[2,128], index: 9, kind: output, shape index: {}]
  %s10 = sld [smem:[#allocation0]]
  $region46: #{base_model_forward.1} parent=0
    _
  %s12 = ssub.s32 1, %s10
  %s13 = scalar_select 0, %s12, %s10
  $region1: #{base_model_forward.1} parent=0
    #allocation2 [shape = 'u8[1024]{0}', space=vmem, size = 0x400, scoped, tag = 'output window, operand 0, single buffered']
    #allocation3 [shape = 's32[1]{0}', space=sflag, size = 0x4, scoped, tag = 'scoped memory for base_model_forward.1']
    %14 = vsyncpa [#allocation3], 0
    // Predicated region
    $region2: #{base_model_forward.1} parent=1 // pred_check
      _
    $region3: #{base_model_forward.1} parent=1 // pred_check_branch
      %16 = sbr.rel (0) target = $region5
    $region4: #{base_model_forward.1} parent=1 // pred_region
      _
    $region5: #{base_model_forward.1} parent=1 // pred_fallthru
      _
    // Predicated region
    $region6: #{base_model_forward.1} parent=1 // pred_check
      _
    $region7: #{base_model_forward.1} parent=1 // pred_check_branch
      %18 = sbr.rel (0) target = $region9
    $region8: #{base_model_forward.1} parent=1 // pred_region
      _
    $region9: #{base_model_forward.1} parent=1 // pred_fallthru
      _
    // Predicated region
    $region10: #{base_model_forward.1} parent=1 // pred_check
      _
    $region11: #{base_model_forward.1} parent=1 // pred_check_branch
      %20 = sbr.rel (0) target = $region13
    $region12: #{base_model_forward.1} parent=1 // pred_region
      _
    $region13: #{base_model_forward.1} parent=1 // pred_fallthru
      _
    // Predicated region
    $region14: #{base_model_forward.1} parent=1 // pred_check
      _
    $region15: #{base_model_forward.1} parent=1 // pred_check_branch
      %22 = sbr.rel (0) target = $region17
    $region16: #{base_model_forward.1} parent=1 // pred_region
      _
    $region17: #{base_model_forward.1} parent=1 // pred_fallthru
      _
    // Predicated region
    $region18: #{base_model_forward.1} parent=1 // pred_check
      _
    $region19: #{base_model_forward.1} parent=1 // pred_check_branch
      %24 = sbr.rel (0) target = $region21
    $region20: #{base_model_forward.1} parent=1 // pred_region
      _
    $region21: #{base_model_forward.1} parent=1 // pred_fallthru
      _
    // Predicated region
    $region22: #{base_model_forward.1} parent=1 // pred_check
      _
    $region23: #{base_model_forward.1} parent=1 // pred_check_branch
      %26 = sbr.rel (0) target = $region25
    $region24: #{base_model_forward.1} parent=1 // pred_region
      _
    $region25: #{base_model_forward.1} parent=1 // pred_fallthru
      _
    // Predicated region
    $region26: #{base_model_forward.1} parent=1 // pred_check
      _
    $region27: #{base_model_forward.1} parent=1 // pred_check_branch
      %28 = sbr.rel (0) target = $region29
    $region28: #{base_model_forward.1} parent=1 // pred_region
      _
    $region29: #{base_model_forward.1} parent=1 // pred_fallthru
      _
    // Predicated region
    $region30: #{base_model_forward.1} parent=1 // pred_check
      _
    $region31: #{base_model_forward.1} parent=1 // pred_check_branch
      %30 = sbr.rel (0) target = $region33
    $region32: #{base_model_forward.1} parent=1 // pred_region
      _
    $region33: #{base_model_forward.1} parent=1 // pred_fallthru
      _
    // Predicated region
    $region34: #{base_model_forward.1} parent=1 // pred_check
      _
    $region35: #{base_model_forward.1} parent=1 // pred_check_branch
      %32 = sbr.rel (0) target = $region37
    $region36: #{base_model_forward.1} parent=1 // pred_region
      _
    $region37: #{base_model_forward.1} parent=1 // pred_fallthru
      _
    %v33 = vld [vmem:[%s0] sm:$0xff]
    %v34 = vld [vmem:[%s0 + $0x8] sm:$0xff]
    %v35 = vld [vmem:[%s0 + $0x10] sm:$0xff]
    %v36 = vld [vmem:[%s0 + $0x18] sm:$0xff]
    %v37 = vld [vmem:[%s0 + $0x20] sm:$0xff]
    %v38 = vld [vmem:[%s0 + $0x28] sm:$0xff]
    %v39 = vld [vmem:[%s0 + $0x30] sm:$0xff]
    %v40 = vld [vmem:[%s0 + $0x38] sm:$0xff]
    %v41 = vld [vmem:[%s0 + $0x40] sm:$0xff]
    %v42 = vld [vmem:[%s0 + $0x48] sm:$0xff]
    %v43 = vld [vmem:[%s0 + $0x50] sm:$0xff]
    %v44 = vld [vmem:[%s0 + $0x58] sm:$0xff]
    %v45 = vld [vmem:[%s0 + $0x60] sm:$0xff]
    %v46 = vld [vmem:[%s0 + $0x68] sm:$0xff]
    %v47 = vld [vmem:[%s0 + $0x70] sm:$0xff]
    %v48 = vld [vmem:[%s0 + $0x78] sm:$0xff]
    %v49 = vld [vmem:[%s0 + $0x80] sm:$0xff]
    %v50 = vld [vmem:[%s0 + $0x88] sm:$0xff]
    %v51 = vld [vmem:[%s0 + $0x90] sm:$0xff]
    %v52 = vld [vmem:[%s0 + $0x98] sm:$0xff]
    %v53 = vld [vmem:[%s0 + $0xa0] sm:$0xff]
    %v54 = vld [vmem:[%s0 + $0xa8] sm:$0xff]
    %v55 = vld [vmem:[%s0 + $0xb0] sm:$0xff]
    %v56 = vld [vmem:[%s0 + $0xb8] sm:$0xff]
    %v57 = vld [vmem:[%s0 + $0xc0] sm:$0xff]
    %v58 = vld [vmem:[%s0 + $0xc8] sm:$0xff]
    %v59 = vld [vmem:[%s0 + $0xd0] sm:$0xff]
    %v60 = vld [vmem:[%s0 + $0xd8] sm:$0xff]
    %v61 = vld [vmem:[%s0 + $0xe0] sm:$0xff]
    %v62 = vld [vmem:[%s0 + $0xe8] sm:$0xff]
    %v63 = vld [vmem:[%s0 + $0xf0] sm:$0xff]
    %v64 = vld [vmem:[%s0 + $0xf8] sm:$0xff]
    %v65 = vld [vmem:[%s0 + $0x100] sm:$0xff]
    %v66 = vld [vmem:[%s0 + $0x108] sm:$0xff]
    %v67 = vld [vmem:[%s0 + $0x110] sm:$0xff]
    %v68 = vld [vmem:[%s0 + $0x118] sm:$0xff]
    %v69 = vld [vmem:[%s0 + $0x120] sm:$0xff]
    %v70 = vld [vmem:[%s0 + $0x128] sm:$0xff]
    %v71 = vld [vmem:[%s0 + $0x130] sm:$0xff]
    %v72 = vld [vmem:[%s0 + $0x138] sm:$0xff]
    %v73 = vld [vmem:[%s0 + $0x140] sm:$0xff]
    %v74 = vld [vmem:[%s0 + $0x148] sm:$0xff]
    %v75 = vld [vmem:[%s0 + $0x150] sm:$0xff]
    %v76 = vld [vmem:[%s0 + $0x158] sm:$0xff]
    %v77 = vld [vmem:[%s0 + $0x160] sm:$0xff]
    %v78 = vld [vmem:[%s0 + $0x168] sm:$0xff]
    %v79 = vld [vmem:[%s0 + $0x170] sm:$0xff]
    %v80 = vld [vmem:[%s0 + $0x178] sm:$0xff]
    %v81 = vld [vmem:[%s0 + $0x180] sm:$0xff]
    %v82 = vld [vmem:[%s0 + $0x188] sm:$0xff]
    %v83 = vld [vmem:[%s1] sm:$0xff]
    %v84 = vld [vmem:[%s1 + $0x8] sm:$0xff]
    %v85 = vld [vmem:[%s1 + $0x10] sm:$0xff]
    %v86 = vld [vmem:[%s1 + $0x18] sm:$0xff]
    %v87 = vld [vmem:[%s1 + $0x20] sm:$0xff]
    %v88 = vld [vmem:[%s1 + $0x28] sm:$0xff]
    %v89 = vld [vmem:[%s1 + $0x30] sm:$0xff]
    %v90 = vld [vmem:[%s1 + $0x38] sm:$0xff]
    %v91 = vld [vmem:[%s1 + $0x40] sm:$0xff]
    %v92 = vld [vmem:[%s1 + $0x48] sm:$0xff]
    %v93 = vld [vmem:[%s1 + $0x50] sm:$0xff]
    %v94 = vld [vmem:[%s1 + $0x58] sm:$0xff]
    %v95 = vld [vmem:[%s1 + $0x60] sm:$0xff]
    %v96 = vld [vmem:[%s1 + $0x68] sm:$0xff]
    %v97 = vld [vmem:[%s1 + $0x70] sm:$0xff]
    %v98 = vld [vmem:[%s1 + $0x78] sm:$0xff]
    %v99 = vld [vmem:[%s1 + $0x80] sm:$0xff]
    %v100 = vld [vmem:[%s1 + $0x88] sm:$0xff]
    %v101 = vld [vmem:[%s1 + $0x90] sm:$0xff]
    %v102 = vld [vmem:[%s1 + $0x98] sm:$0xff]
    %v103 = vld [vmem:[%s1 + $0xa0] sm:$0xff]
    %v104 = vld [vmem:[%s1 + $0xa8] sm:$0xff]
    %v105 = vld [vmem:[%s1 + $0xb0] sm:$0xff]
    %v106 = vld [vmem:[%s1 + $0xb8] sm:$0xff]
    %v107 = vld [vmem:[%s1 + $0xc0] sm:$0xff]
    %v108 = vld [vmem:[%s1 + $0xc8] sm:$0xff]
    %v109 = vld [vmem:[%s1 + $0xd0] sm:$0xff]
    %v110 = vld [vmem:[%s1 + $0xd8] sm:$0xff]
    %v111 = vld [vmem:[%s1 + $0xe0] sm:$0xff]
    %v112 = vld [vmem:[%s1 + $0xe8] sm:$0xff]
    %v113 = vld [vmem:[%s1 + $0xf0] sm:$0xff]
    %v114 = vld [vmem:[%s1 + $0xf8] sm:$0xff]
    %v115 = vld [vmem:[%s2] sm:$0x1]
    %v117 = vlaneseq
    %v118 = vshrl.u32 %v117, 7
    %v119 = vsub.s32 0, %v118
    %v120 = vrot.slane %v115, %v119
    %122 = vmatprep.subr.mxu0 0.0
    %123 = vmatpush1.msra.mxu0 %v98
    %124 = vmatprep.subr.mxu0 0.0
    %125 = vmatpush1.msra.mxu0 %v97
    %126 = vmatprep.subr.mxu0 0.0
    %127 = vmatpush1.msra.mxu0 %v96
    %128 = vmatprep.subr.mxu0 0.0
    %129 = vmatpush1.msra.mxu0 %v95
    %130 = vmatprep.subr.mxu0 0.0
    %131 = vmatpush1.msra.mxu0 %v94
    %132 = vmatprep.subr.mxu0 0.0
    %133 = vmatpush1.msra.mxu0 %v93
    %134 = vmatprep.subr.mxu0 0.0
    %135 = vmatpush1.msra.mxu0 %v92
    %136 = vmatprep.subr.mxu0 0.0
    %137 = vmatpush1.msra.mxu0 %v91
    %138 = vmatprep.subr.mxu0 0.0
    %139 = vmatpush1.msra.mxu0 %v90
    %140 = vmatprep.subr.mxu0 0.0
    %141 = vmatpush1.msra.mxu0 %v89
    %142 = vmatprep.subr.mxu0 0.0
    %143 = vmatpush1.msra.mxu0 %v88
    %144 = vmatprep.subr.mxu0 0.0
    %145 = vmatpush1.msra.mxu0 %v87
    %146 = vmatprep.subr.mxu0 0.0
    %147 = vmatpush1.msra.mxu0 %v86
    %148 = vmatprep.subr.mxu0 0.0
    %149 = vmatpush1.msra.mxu0 %v85
    %150 = vmatprep.subr.mxu0 0.0
    %151 = vmatpush1.msra.mxu0 %v84
    %152 = vmatprep.subr.mxu0 0.0
    %153 = vmatpush1.msra.mxu0 %v83
    %154 = vmatprep.subr.mxu0 0.0
    %155 = vmatpush2.msra.mxu0 %v114
    %156 = vmatprep.subr.mxu0 0.0
    %157 = vmatpush2.msra.mxu0 %v113
    %158 = vmatprep.subr.mxu0 0.0
    %159 = vmatpush2.msra.mxu0 %v112
    %160 = vmatprep.subr.mxu0 0.0
    %161 = vmatpush2.msra.mxu0 %v111
    %162 = vmatprep.subr.mxu0 0.0
    %163 = vmatpush2.msra.mxu0 %v110
    %164 = vmatprep.subr.mxu0 0.0
    %165 = vmatpush2.msra.mxu0 %v109
    %166 = vmatprep.subr.mxu0 0.0
    %167 = vmatpush2.msra.mxu0 %v108
    %168 = vmatprep.subr.mxu0 0.0
    %169 = vmatpush2.msra.mxu0 %v107
    %170 = vmatprep.subr.mxu0 0.0
    %171 = vmatpush2.msra.mxu0 %v106
    %172 = vmatprep.subr.mxu0 0.0
    %173 = vmatpush2.msra.mxu0 %v105
    %174 = vmatprep.subr.mxu0 0.0
    %175 = vmatpush2.msra.mxu0 %v104
    %176 = vmatprep.subr.mxu0 0.0
    %177 = vmatpush2.msra.mxu0 %v103
    %178 = vmatprep.subr.mxu0 0.0
    %179 = vmatpush2.msra.mxu0 %v102
    %180 = vmatprep.subr.mxu0 0.0
    %181 = vmatpush2.msra.mxu0 %v101
    %182 = vmatprep.subr.mxu0 0.0
    %183 = vmatpush2.msra.mxu0 %v100
    %184 = vmatprep.subr.mxu0 0.0
    %185 = vmatpush2.msra.mxu0 %v99
    %186 = vmatprep.mubr.f32.mxu0 %v34
    %187 = vmatmul.mubr.f32.gmra.mxu0 %v33
    %v188 = vpop.f32.mrf.mxu0
    %v189 = vadd.f32 %v120, %v188
    %v190 = vpop.f32.mrf.mxu0
    %191 = vmatprep.mubr.f32.mxu0 %v36
    %192 = vmatmul.mubr.f32.gmra.mxu0 %v35
    %v193 = vpop.f32.mrf.mxu0
    %v194 = vadd.f32 %v120, %v193
    %v195 = vpop.f32.mrf.mxu0
    %196 = vmatprep.mubr.f32.mxu0 %v38
    %197 = vmatmul.mubr.f32.gmra.mxu0 %v37
    %v198 = vpop.f32.mrf.mxu0
    %v199 = vadd.f32 %v120, %v198
    %v200 = vpop.f32.mrf.mxu0
    %201 = vmatprep.mubr.f32.mxu0 %v40
    %202 = vmatmul.mubr.f32.gmra.mxu0 %v39
    %v203 = vpop.f32.mrf.mxu0
    %v204 = vadd.f32 %v120, %v203
    %v205 = vpop.f32.mrf.mxu0
    %206 = vmatprep.mubr.f32.mxu0 %v42
    %207 = vmatmul.mubr.f32.gmra.mxu0 %v41
    %v208 = vpop.f32.mrf.mxu0
    %v209 = vadd.f32 %v120, %v208
    %v210 = vpop.f32.mrf.mxu0
    %211 = vmatprep.mubr.f32.mxu0 %v44
    %212 = vmatmul.mubr.f32.gmra.mxu0 %v43
    %v213 = vpop.f32.mrf.mxu0
    %v214 = vadd.f32 %v120, %v213
    %v215 = vpop.f32.mrf.mxu0
    %216 = vmatprep.mubr.f32.mxu0 %v46
    %217 = vmatmul.mubr.f32.gmra.mxu0 %v45
    %v218 = vpop.f32.mrf.mxu0
    %v219 = vadd.f32 %v120, %v218
    %v220 = vpop.f32.mrf.mxu0
    %221 = vmatprep.mubr.f32.mxu0 %v48
    %222 = vmatmul.mubr.f32.gmra.mxu0 %v47
    %v223 = vpop.f32.mrf.mxu0
    %v224 = vadd.f32 %v120, %v223
    %v225 = vpop.f32.mrf.mxu0
    %226 = vmatprep.mubr.f32.mxu0 %v50
    %227 = vmatmul.mubr.f32.gmra.mxu0 %v49
    %v228 = vpop.f32.mrf.mxu0
    %v229 = vadd.f32 %v120, %v228
    %v230 = vpop.f32.mrf.mxu0
    %231 = vmatprep.mubr.f32.mxu0 %v52
    %232 = vmatmul.mubr.f32.gmra.mxu0 %v51
    %v233 = vpop.f32.mrf.mxu0
    %v234 = vadd.f32 %v120, %v233
    %v235 = vpop.f32.mrf.mxu0
    %236 = vmatprep.mubr.f32.mxu0 %v54
    %237 = vmatmul.mubr.f32.gmra.mxu0 %v53
    %v238 = vpop.f32.mrf.mxu0
    %v239 = vadd.f32 %v120, %v238
    %v240 = vpop.f32.mrf.mxu0
    %241 = vmatprep.mubr.f32.mxu0 %v56
    %242 = vmatmul.mubr.f32.gmra.mxu0 %v55
    %v243 = vpop.f32.mrf.mxu0
    %v244 = vadd.f32 %v120, %v243
    %v245 = vpop.f32.mrf.mxu0
    %246 = vmatprep.mubr.f32.mxu0 %v58
    %247 = vmatmul.mubr.f32.gmra.mxu0 %v57
    %v248 = vpop.f32.mrf.mxu0
    %v249 = vadd.f32 %v120, %v248
    %v250 = vpop.f32.mrf.mxu0
    %251 = vmatprep.mubr.f32.mxu0 %v60
    %252 = vmatmul.mubr.f32.gmra.mxu0 %v59
    %v253 = vpop.f32.mrf.mxu0
    %v254 = vadd.f32 %v120, %v253
    %v255 = vpop.f32.mrf.mxu0
    %256 = vmatprep.mubr.f32.mxu0 %v62
    %257 = vmatmul.mubr.f32.gmra.mxu0 %v61
    %v258 = vpop.f32.mrf.mxu0
    %v259 = vadd.f32 %v120, %v258
    %v260 = vpop.f32.mrf.mxu0
    %261 = vmatprep.mubr.f32.mxu0 %v64
    %262 = vmatmul.mubr.f32.gmra.mxu0 %v63
    %v263 = vpop.f32.mrf.mxu0
    %v264 = vadd.f32 %v120, %v263
    %v265 = vpop.f32.mrf.mxu0
    %266 = vmatprep.mubr.f32.mxu0 %v66
    %267 = vmatmul.mubr.f32.gmra.mxu0 %v65
    %v268 = vpop.f32.mrf.mxu0
    %v269 = vadd.f32 %v120, %v268
    %v270 = vpop.f32.mrf.mxu0
    %271 = vmatprep.mubr.f32.mxu0 %v68
    %272 = vmatmul.mubr.f32.gmra.mxu0 %v67
    %v273 = vpop.f32.mrf.mxu0
    %v274 = vadd.f32 %v120, %v273
    %v275 = vpop.f32.mrf.mxu0
    %276 = vmatprep.mubr.f32.mxu0 %v70
    %277 = vmatmul.mubr.f32.gmra.mxu0 %v69
    %v278 = vpop.f32.mrf.mxu0
    %v279 = vadd.f32 %v120, %v278
    %v280 = vpop.f32.mrf.mxu0
    %281 = vmatprep.mubr.f32.mxu0 %v72
    %282 = vmatmul.mubr.f32.gmra.mxu0 %v71
    %v283 = vpop.f32.mrf.mxu0
    %v284 = vadd.f32 %v120, %v283
    %v285 = vpop.f32.mrf.mxu0
    %286 = vmatprep.mubr.f32.mxu0 %v74
    %287 = vmatmul.mubr.f32.gmra.mxu0 %v73
    %v288 = vpop.f32.mrf.mxu0
    %v289 = vadd.f32 %v120, %v288
    %v290 = vpop.f32.mrf.mxu0
    %291 = vmatprep.mubr.f32.mxu0 %v76
    %292 = vmatmul.mubr.f32.gmra.mxu0 %v75
    %v293 = vpop.f32.mrf.mxu0
    %v294 = vadd.f32 %v120, %v293
    %v295 = vpop.f32.mrf.mxu0
    %296 = vmatprep.mubr.f32.mxu0 %v78
    %297 = vmatmul.mubr.f32.gmra.mxu0 %v77
    %v298 = vpop.f32.mrf.mxu0
    %v299 = vadd.f32 %v120, %v298
    %v300 = vpop.f32.mrf.mxu0
    %301 = vmatprep.mubr.f32.mxu0 %v80
    %302 = vmatmul.mubr.f32.gmra.mxu0 %v79
    %v303 = vpop.f32.mrf.mxu0
    %v304 = vadd.f32 %v120, %v303
    %v305 = vpop.f32.mrf.mxu0
    %306 = vmatprep.mubr.f32.mxu0 %v82
    %307 = vmatmul.mubr.f32.gmra.mxu0 %v81
    %v308 = vpop.f32.mrf.mxu0
    %v309 = vadd.f32 %v120, %v308
    %v310 = vpop.f32.mrf.mxu0
    %311 = vdwg.mxu0
    %v312 = vmax.f32 %v189, 0.0
    %v313 = vmax.f32 %v194, 0.0
    %v314 = vmax.f32 %v199, 0.0
    %v315 = vmax.f32 %v204, 0.0
    %v316 = vmax.f32 %v209, 0.0
    %v317 = vmax.f32 %v214, 0.0
    %v318 = vmax.f32 %v219, 0.0
    %v319 = vmax.f32 %v224, 0.0
    %v320 = vmax.f32 %v229, 0.0
    %v321 = vmax.f32 %v234, 0.0
    %v322 = vmax.f32 %v239, 0.0
    %v323 = vmax.f32 %v244, 0.0
    %v324 = vmax.f32 %v249, 0.0
    %v325 = vmax.f32 %v254, 0.0
    %v326 = vmax.f32 %v259, 0.0
    %v327 = vmax.f32 %v264, 0.0
    %v328 = vmax.f32 %v269, 0.0
    %v329 = vmax.f32 %v274, 0.0
    %v330 = vmax.f32 %v279, 0.0
    %v331 = vmax.f32 %v284, 0.0
    %v332 = vmax.f32 %v289, 0.0
    %v333 = vmax.f32 %v294, 0.0
    %v334 = vmax.f32 %v299, 0.0
    %v335 = vmax.f32 %v304, 0.0
    %v336 = vmax.f32 %v309, 0.0
    %v362 = vcombine.high %v312, %v312
    %v364 = vunpack.c.l.s4 1983009808
    %v365 = vunpack.c.0.s8 %v364
    %v366 = vlaneseq
    %v367 = vshrl.u32 %v366, 7
    %v368 = vsub.s32 %v365, %v367
    %v369 = vrot.slane %v312, %v368
    %v371 = vunpack.c.l.s4 1983009808
    %v372 = vunpack.c.0.s8 %v371
    %v373 = vlaneseq
    %v374 = vshrl.u32 %v373, 7
    %v375 = vsub.s32 %v372, %v374
    %v376 = vrot.slane %v362, %v375
    %v377 = vcombine.high %v369, %v369
    %v378 = vcombine.high %v376, %v376
    %v379 = vcombine.high %v313, %v313
    %v381 = vunpack.c.l.s4 1983009808
    %v382 = vunpack.c.0.s8 %v381
    %v383 = vlaneseq
    %v384 = vshrl.u32 %v383, 7
    %v385 = vsub.s32 %v382, %v384
    %v386 = vrot.slane %v313, %v385
    %v388 = vunpack.c.l.s4 1983009808
    %v389 = vunpack.c.0.s8 %v388
    %v390 = vlaneseq
    %v391 = vshrl.u32 %v390, 7
    %v392 = vsub.s32 %v389, %v391
    %v393 = vrot.slane %v379, %v392
    %v394 = vcombine.high %v386, %v386
    %v395 = vcombine.high %v393, %v393
    %v396 = vcombine.high %v314, %v314
    %v398 = vunpack.c.l.s4 1983009808
    %v399 = vunpack.c.0.s8 %v398
    %v400 = vlaneseq
    %v401 = vshrl.u32 %v400, 7
    %v402 = vsub.s32 %v399, %v401
    %v403 = vrot.slane %v314, %v402
    %v405 = vunpack.c.l.s4 1983009808
    %v406 = vunpack.c.0.s8 %v405
    %v407 = vlaneseq
    %v408 = vshrl.u32 %v407, 7
    %v409 = vsub.s32 %v406, %v408
    %v410 = vrot.slane %v396, %v409
    %v411 = vcombine.high %v403, %v403
    %v412 = vcombine.high %v410, %v410
    %v413 = vcombine.high %v315, %v315
    %v415 = vunpack.c.l.s4 1983009808
    %v416 = vunpack.c.0.s8 %v415
    %v417 = vlaneseq
    %v418 = vshrl.u32 %v417, 7
    %v419 = vsub.s32 %v416, %v418
    %v420 = vrot.slane %v315, %v419
    %v422 = vunpack.c.l.s4 1983009808
    %v423 = vunpack.c.0.s8 %v422
    %v424 = vlaneseq
    %v425 = vshrl.u32 %v424, 7
    %v426 = vsub.s32 %v423, %v425
    %v427 = vrot.slane %v413, %v426
    %v428 = vcombine.high %v420, %v420
    %v429 = vcombine.high %v427, %v427
    %v430 = vcombine.high %v316, %v316
    %v432 = vunpack.c.l.s4 1983009808
    %v433 = vunpack.c.0.s8 %v432
    %v434 = vlaneseq
    %v435 = vshrl.u32 %v434, 7
    %v436 = vsub.s32 %v433, %v435
    %v437 = vrot.slane %v316, %v436
    %v439 = vunpack.c.l.s4 1983009808
    %v440 = vunpack.c.0.s8 %v439
    %v441 = vlaneseq
    %v442 = vshrl.u32 %v441, 7
    %v443 = vsub.s32 %v440, %v442
    %v444 = vrot.slane %v430, %v443
    %v445 = vcombine.high %v437, %v437
    %v446 = vcombine.high %v444, %v444
    %v447 = vcombine.high %v317, %v317
    %v449 = vunpack.c.l.s4 1983009808
    %v450 = vunpack.c.0.s8 %v449
    %v451 = vlaneseq
    %v452 = vshrl.u32 %v451, 7
    %v453 = vsub.s32 %v450, %v452
    %v454 = vrot.slane %v317, %v453
    %v456 = vunpack.c.l.s4 1983009808
    %v457 = vunpack.c.0.s8 %v456
    %v458 = vlaneseq
    %v459 = vshrl.u32 %v458, 7
    %v460 = vsub.s32 %v457, %v459
    %v461 = vrot.slane %v447, %v460
    %v462 = vcombine.high %v454, %v454
    %v463 = vcombine.high %v461, %v461
    %v464 = vcombine.high %v318, %v318
    %v466 = vunpack.c.l.s4 1983009808
    %v467 = vunpack.c.0.s8 %v466
    %v468 = vlaneseq
    %v469 = vshrl.u32 %v468, 7
    %v470 = vsub.s32 %v467, %v469
    %v471 = vrot.slane %v318, %v470
    %v473 = vunpack.c.l.s4 1983009808
    %v474 = vunpack.c.0.s8 %v473
    %v475 = vlaneseq
    %v476 = vshrl.u32 %v475, 7
    %v477 = vsub.s32 %v474, %v476
    %v478 = vrot.slane %v464, %v477
    %v479 = vcombine.high %v471, %v471
    %v480 = vcombine.high %v478, %v478
    %v481 = vcombine.high %v319, %v319
    %v483 = vunpack.c.l.s4 1983009808
    %v484 = vunpack.c.0.s8 %v483
    %v485 = vlaneseq
    %v486 = vshrl.u32 %v485, 7
    %v487 = vsub.s32 %v484, %v486
    %v488 = vrot.slane %v319, %v487
    %v490 = vunpack.c.l.s4 1983009808
    %v491 = vunpack.c.0.s8 %v490
    %v492 = vlaneseq
    %v493 = vshrl.u32 %v492, 7
    %v494 = vsub.s32 %v491, %v493
    %v495 = vrot.slane %v481, %v494
    %v496 = vcombine.high %v488, %v488
    %v497 = vcombine.high %v495, %v495
    %v498 = vcombine.high %v320, %v320
    %v500 = vunpack.c.l.s4 1983009808
    %v501 = vunpack.c.0.s8 %v500
    %v502 = vlaneseq
    %v503 = vshrl.u32 %v502, 7
    %v504 = vsub.s32 %v501, %v503
    %v505 = vrot.slane %v320, %v504
    %v507 = vunpack.c.l.s4 1983009808
    %v508 = vunpack.c.0.s8 %v507
    %v509 = vlaneseq
    %v510 = vshrl.u32 %v509, 7
    %v511 = vsub.s32 %v508, %v510
    %v512 = vrot.slane %v498, %v511
    %v513 = vcombine.high %v505, %v505
    %v514 = vcombine.high %v512, %v512
    %v515 = vcombine.high %v321, %v321
    %v517 = vunpack.c.l.s4 1983009808
    %v518 = vunpack.c.0.s8 %v517
    %v519 = vlaneseq
    %v520 = vshrl.u32 %v519, 7
    %v521 = vsub.s32 %v518, %v520
    %v522 = vrot.slane %v321, %v521
    %v524 = vunpack.c.l.s4 1983009808
    %v525 = vunpack.c.0.s8 %v524
    %v526 = vlaneseq
    %v527 = vshrl.u32 %v526, 7
    %v528 = vsub.s32 %v525, %v527
    %v529 = vrot.slane %v515, %v528
    %v530 = vcombine.high %v522, %v522
    %v531 = vcombine.high %v529, %v529
    %v532 = vcombine.high %v322, %v322
    %v534 = vunpack.c.l.s4 1983009808
    %v535 = vunpack.c.0.s8 %v534
    %v536 = vlaneseq
    %v537 = vshrl.u32 %v536, 7
    %v538 = vsub.s32 %v535, %v537
    %v539 = vrot.slane %v322, %v538
    %v541 = vunpack.c.l.s4 1983009808
    %v542 = vunpack.c.0.s8 %v541
    %v543 = vlaneseq
    %v544 = vshrl.u32 %v543, 7
    %v545 = vsub.s32 %v542, %v544
    %v546 = vrot.slane %v532, %v545
    %v547 = vcombine.high %v539, %v539
    %v548 = vcombine.high %v546, %v546
    %v549 = vcombine.high %v323, %v323
    %v551 = vunpack.c.l.s4 1983009808
    %v552 = vunpack.c.0.s8 %v551
    %v553 = vlaneseq
    %v554 = vshrl.u32 %v553, 7
    %v555 = vsub.s32 %v552, %v554
    %v556 = vrot.slane %v323, %v555
    %v558 = vunpack.c.l.s4 1983009808
    %v559 = vunpack.c.0.s8 %v558
    %v560 = vlaneseq
    %v561 = vshrl.u32 %v560, 7
    %v562 = vsub.s32 %v559, %v561
    %v563 = vrot.slane %v549, %v562
    %v564 = vcombine.high %v556, %v556
    %v565 = vcombine.high %v563, %v563
    %v566 = vcombine.high %v324, %v324
    %v568 = vunpack.c.l.s4 1983009808
    %v569 = vunpack.c.0.s8 %v568
    %v570 = vlaneseq
    %v571 = vshrl.u32 %v570, 7
    %v572 = vsub.s32 %v569, %v571
    %v573 = vrot.slane %v324, %v572
    %v575 = vunpack.c.l.s4 1983009808
    %v576 = vunpack.c.0.s8 %v575
    %v577 = vlaneseq
    %v578 = vshrl.u32 %v577, 7
    %v579 = vsub.s32 %v576, %v578
    %v580 = vrot.slane %v566, %v579
    %v581 = vcombine.high %v573, %v573
    %v582 = vcombine.high %v580, %v580
    %v583 = vcombine.high %v325, %v325
    %v585 = vunpack.c.l.s4 1983009808
    %v586 = vunpack.c.0.s8 %v585
    %v587 = vlaneseq
    %v588 = vshrl.u32 %v587, 7
    %v589 = vsub.s32 %v586, %v588
    %v590 = vrot.slane %v325, %v589
    %v592 = vunpack.c.l.s4 1983009808
    %v593 = vunpack.c.0.s8 %v592
    %v594 = vlaneseq
    %v595 = vshrl.u32 %v594, 7
    %v596 = vsub.s32 %v593, %v595
    %v597 = vrot.slane %v583, %v596
    %v598 = vcombine.high %v590, %v590
    %v599 = vcombine.high %v597, %v597
    %v600 = vcombine.high %v326, %v326
    %v602 = vunpack.c.l.s4 1983009808
    %v603 = vunpack.c.0.s8 %v602
    %v604 = vlaneseq
    %v605 = vshrl.u32 %v604, 7
    %v606 = vsub.s32 %v603, %v605
    %v607 = vrot.slane %v326, %v606
    %v609 = vunpack.c.l.s4 1983009808
    %v610 = vunpack.c.0.s8 %v609
    %v611 = vlaneseq
    %v612 = vshrl.u32 %v611, 7
    %v613 = vsub.s32 %v610, %v612
    %v614 = vrot.slane %v600, %v613
    %v615 = vcombine.high %v607, %v607
    %v616 = vcombine.high %v614, %v614
    %v617 = vcombine.high %v327, %v327
    %v619 = vunpack.c.l.s4 1983009808
    %v620 = vunpack.c.0.s8 %v619
    %v621 = vlaneseq
    %v622 = vshrl.u32 %v621, 7
    %v623 = vsub.s32 %v620, %v622
    %v624 = vrot.slane %v327, %v623
    %v626 = vunpack.c.l.s4 1983009808
    %v627 = vunpack.c.0.s8 %v626
    %v628 = vlaneseq
    %v629 = vshrl.u32 %v628, 7
    %v630 = vsub.s32 %v627, %v629
    %v631 = vrot.slane %v617, %v630
    %v632 = vcombine.high %v624, %v624
    %v633 = vcombine.high %v631, %v631
    %v634 = vcombine.high %v328, %v328
    %v636 = vunpack.c.l.s4 1983009808
    %v637 = vunpack.c.0.s8 %v636
    %v638 = vlaneseq
    %v639 = vshrl.u32 %v638, 7
    %v640 = vsub.s32 %v637, %v639
    %v641 = vrot.slane %v328, %v640
    %v643 = vunpack.c.l.s4 1983009808
    %v644 = vunpack.c.0.s8 %v643
    %v645 = vlaneseq
    %v646 = vshrl.u32 %v645, 7
    %v647 = vsub.s32 %v644, %v646
    %v648 = vrot.slane %v634, %v647
    %v649 = vcombine.high %v641, %v641
    %v650 = vcombine.high %v648, %v648
    %v651 = vcombine.high %v329, %v329
    %v653 = vunpack.c.l.s4 1983009808
    %v654 = vunpack.c.0.s8 %v653
    %v655 = vlaneseq
    %v656 = vshrl.u32 %v655, 7
    %v657 = vsub.s32 %v654, %v656
    %v658 = vrot.slane %v329, %v657
    %v660 = vunpack.c.l.s4 1983009808
    %v661 = vunpack.c.0.s8 %v660
    %v662 = vlaneseq
    %v663 = vshrl.u32 %v662, 7
    %v664 = vsub.s32 %v661, %v663
    %v665 = vrot.slane %v651, %v664
    %v666 = vcombine.high %v658, %v658
    %v667 = vcombine.high %v665, %v665
    %v668 = vcombine.high %v330, %v330
    %v670 = vunpack.c.l.s4 1983009808
    %v671 = vunpack.c.0.s8 %v670
    %v672 = vlaneseq
    %v673 = vshrl.u32 %v672, 7
    %v674 = vsub.s32 %v671, %v673
    %v675 = vrot.slane %v330, %v674
    %v677 = vunpack.c.l.s4 1983009808
    %v678 = vunpack.c.0.s8 %v677
    %v679 = vlaneseq
    %v680 = vshrl.u32 %v679, 7
    %v681 = vsub.s32 %v678, %v680
    %v682 = vrot.slane %v668, %v681
    %v683 = vcombine.high %v675, %v675
    %v684 = vcombine.high %v682, %v682
    %v685 = vcombine.high %v331, %v331
    %v687 = vunpack.c.l.s4 1983009808
    %v688 = vunpack.c.0.s8 %v687
    %v689 = vlaneseq
    %v690 = vshrl.u32 %v689, 7
    %v691 = vsub.s32 %v688, %v690
    %v692 = vrot.slane %v331, %v691
    %v694 = vunpack.c.l.s4 1983009808
    %v695 = vunpack.c.0.s8 %v694
    %v696 = vlaneseq
    %v697 = vshrl.u32 %v696, 7
    %v698 = vsub.s32 %v695, %v697
    %v699 = vrot.slane %v685, %v698
    %v700 = vcombine.high %v692, %v692
    %v701 = vcombine.high %v699, %v699
    %v702 = vcombine.high %v332, %v332
    %v704 = vunpack.c.l.s4 1983009808
    %v705 = vunpack.c.0.s8 %v704
    %v706 = vlaneseq
    %v707 = vshrl.u32 %v706, 7
    %v708 = vsub.s32 %v705, %v707
    %v709 = vrot.slane %v332, %v708
    %v711 = vunpack.c.l.s4 1983009808
    %v712 = vunpack.c.0.s8 %v711
    %v713 = vlaneseq
    %v714 = vshrl.u32 %v713, 7
    %v715 = vsub.s32 %v712, %v714
    %v716 = vrot.slane %v702, %v715
    %v717 = vcombine.high %v709, %v709
    %v718 = vcombine.high %v716, %v716
    %v719 = vcombine.high %v333, %v333
    %v721 = vunpack.c.l.s4 1983009808
    %v722 = vunpack.c.0.s8 %v721
    %v723 = vlaneseq
    %v724 = vshrl.u32 %v723, 7
    %v725 = vsub.s32 %v722, %v724
    %v726 = vrot.slane %v333, %v725
    %v728 = vunpack.c.l.s4 1983009808
    %v729 = vunpack.c.0.s8 %v728
    %v730 = vlaneseq
    %v731 = vshrl.u32 %v730, 7
    %v732 = vsub.s32 %v729, %v731
    %v733 = vrot.slane %v719, %v732
    %v734 = vcombine.high %v726, %v726
    %v735 = vcombine.high %v733, %v733
    %v736 = vcombine.high %v334, %v334
    %v738 = vunpack.c.l.s4 1983009808
    %v739 = vunpack.c.0.s8 %v738
    %v740 = vlaneseq
    %v741 = vshrl.u32 %v740, 7
    %v742 = vsub.s32 %v739, %v741
    %v743 = vrot.slane %v334, %v742
    %v745 = vunpack.c.l.s4 1983009808
    %v746 = vunpack.c.0.s8 %v745
    %v747 = vlaneseq
    %v748 = vshrl.u32 %v747, 7
    %v749 = vsub.s32 %v746, %v748
    %v750 = vrot.slane %v736, %v749
    %v751 = vcombine.high %v743, %v743
    %v752 = vcombine.high %v750, %v750
    %v753 = vcombine.high %v335, %v335
    %v755 = vunpack.c.l.s4 1983009808
    %v756 = vunpack.c.0.s8 %v755
    %v757 = vlaneseq
    %v758 = vshrl.u32 %v757, 7
    %v759 = vsub.s32 %v756, %v758
    %v760 = vrot.slane %v335, %v759
    %v762 = vunpack.c.l.s4 1983009808
    %v763 = vunpack.c.0.s8 %v762
    %v764 = vlaneseq
    %v765 = vshrl.u32 %v764, 7
    %v766 = vsub.s32 %v763, %v765
    %v767 = vrot.slane %v753, %v766
    %v768 = vcombine.high %v760, %v760
    %v769 = vcombine.high %v767, %v767
    %v770 = vcombine.high %v336, %v336
    %v772 = vunpack.c.l.s4 1983009808
    %v773 = vunpack.c.0.s8 %v772
    %v774 = vlaneseq
    %v775 = vshrl.u32 %v774, 7
    %v776 = vsub.s32 %v773, %v775
    %v777 = vrot.slane %v336, %v776
    %v779 = vunpack.c.l.s4 1983009808
    %v780 = vunpack.c.0.s8 %v779
    %v781 = vlaneseq
    %v782 = vshrl.u32 %v781, 7
    %v783 = vsub.s32 %v780, %v782
    %v784 = vrot.slane %v770, %v783
    %v785 = vcombine.high %v777, %v777
    %v786 = vcombine.high %v784, %v784
    %v787 = vld [vmem:[%s3] sm:$0xff]
    %v788 = vld [vmem:[%s3 + $0x8] sm:$0xff]
    %v789 = vld [vmem:[%s3 + $0x10] sm:$0xff]
    %v790 = vld [vmem:[%s3 + $0x18] sm:$0xff]
    %v791 = vld [vmem:[%s3 + $0x20] sm:$0xff]
    %v792 = vld [vmem:[%s3 + $0x28] sm:$0xff]
    %v793 = vld [vmem:[%s3 + $0x30] sm:$0xff]
    %v794 = vld [vmem:[%s3 + $0x38] sm:$0xff]
    %v795 = vld [vmem:[%s3 + $0x40] sm:$0xff]
    %v796 = vld [vmem:[%s3 + $0x48] sm:$0xff]
    %v797 = vld [vmem:[%s3 + $0x50] sm:$0xff]
    %v798 = vld [vmem:[%s3 + $0x58] sm:$0xff]
    %v799 = vld [vmem:[%s3 + $0x60] sm:$0xff]
    %v800 = vld [vmem:[%s3 + $0x68] sm:$0xff]
    %v801 = vld [vmem:[%s3 + $0x70] sm:$0xff]
    %v802 = vld [vmem:[%s3 + $0x78] sm:$0xff]
    %vm803 = vcmask 1040384
    %vm804 = vcmask 1042434
    %vm805 = vmor %vm803, %vm804
    %vm806 = vcmask 1044484
    %vm807 = vmor %vm805, %vm806
    %vm808 = vcmask 1046534
    %vm809 = vmor %vm807, %vm808
    %v810 = vrot.slane %v369, 7
    %v811 = vrot.slane %v810, 2
    %v812 = vrot.slane %v377, 7
    %v813 = vsel %vm809, %v811, %v812
    %v814 = vrot.slane %v812, 2
    %v815 = vrot.slane %v376, 7
    %v816 = vsel %vm809, %v814, %v815
    %v817 = vrot.slane %v815, 2
    %v818 = vrot.slane %v378, 7
    %v819 = vsel %vm809, %v817, %v818
    %v820 = vrot.slane %v818, 2
    %v821 = vrot.slane %v386, 7
    %v822 = vsel %vm809, %v820, %v821
    %v823 = vrot.slane %v394, 7
    %v824 = vrot.slane %v823, 2
    %v825 = vrot.slane %v393, 7
    %v826 = vsel %vm809, %v824, %v825
    %v827 = vrot.slane %v825, 2
    %v828 = vrot.slane %v395, 7
    %v829 = vsel %vm809, %v827, %v828
    %v830 = vrot.slane %v828, 2
    %v831 = vrot.slane %v403, 7
    %v832 = vsel %vm809, %v830, %v831
    %v833 = vrot.slane %v831, 2
    %v834 = vrot.slane %v411, 7
    %v835 = vsel %vm809, %v833, %v834
    %v836 = vrot.slane %v410, 7
    %v837 = vrot.slane %v836, 2
    %v838 = vrot.slane %v412, 7
    %v839 = vsel %vm809, %v837, %v838
    %v840 = vrot.slane %v838, 2
    %v841 = vrot.slane %v420, 7
    %v842 = vsel %vm809, %v840, %v841
    %v843 = vrot.slane %v841, 2
    %v844 = vrot.slane %v428, 7
    %v845 = vsel %vm809, %v843, %v844
    %v846 = vrot.slane %v844, 2
    %v847 = vrot.slane %v427, 7
    %v848 = vsel %vm809, %v846, %v847
    %v849 = vrot.slane %v429, 7
    %v850 = vrot.slane %v849, 2
    %v851 = vrot.slane %v437, 7
    %v852 = vsel %vm809, %v850, %v851
    %v853 = vrot.slane %v851, 2
    %v854 = vrot.slane %v445, 7
    %v855 = vsel %vm809, %v853, %v854
    %v856 = vrot.slane %v854, 2
    %v857 = vrot.slane %v444, 7
    %v858 = vsel %vm809, %v856, %v857
    %v859 = vrot.slane %v857, 2
    %v860 = vrot.slane %v446, 7
    %v861 = vsel %vm809, %v859, %v860
    %v862 = vrot.slane %v454, 7
    %v863 = vrot.slane %v862, 2
    %v864 = vrot.slane %v462, 7
    %v865 = vsel %vm809, %v863, %v864
    %v866 = vrot.slane %v864, 2
    %v867 = vrot.slane %v461, 7
    %v868 = vsel %vm809, %v866, %v867
    %v869 = vrot.slane %v867, 2
    %v870 = vrot.slane %v463, 7
    %v871 = vsel %vm809, %v869, %v870
    %v872 = vrot.slane %v870, 2
    %v873 = vrot.slane %v471, 7
    %v874 = vsel %vm809, %v872, %v873
    %v875 = vrot.slane %v479, 7
    %v876 = vrot.slane %v875, 2
    %v877 = vrot.slane %v478, 7
    %v878 = vsel %vm809, %v876, %v877
    %v879 = vrot.slane %v877, 2
    %v880 = vrot.slane %v480, 7
    %v881 = vsel %vm809, %v879, %v880
    %v882 = vrot.slane %v880, 2
    %v883 = vrot.slane %v488, 7
    %v884 = vsel %vm809, %v882, %v883
    %v885 = vrot.slane %v883, 2
    %v886 = vrot.slane %v496, 7
    %v887 = vsel %vm809, %v885, %v886
    %v888 = vrot.slane %v495, 7
    %v889 = vrot.slane %v888, 2
    %v890 = vrot.slane %v497, 7
    %v891 = vsel %vm809, %v889, %v890
    %v892 = vrot.slane %v890, 2
    %v893 = vrot.slane %v505, 7
    %v894 = vsel %vm809, %v892, %v893
    %v895 = vrot.slane %v893, 2
    %v896 = vrot.slane %v513, 7
    %v897 = vsel %vm809, %v895, %v896
    %v898 = vrot.slane %v896, 2
    %v899 = vrot.slane %v512, 7
    %v900 = vsel %vm809, %v898, %v899
    %v901 = vrot.slane %v514, 7
    %v902 = vrot.slane %v901, 2
    %v903 = vrot.slane %v522, 7
    %v904 = vsel %vm809, %v902, %v903
    %v905 = vrot.slane %v903, 2
    %v906 = vrot.slane %v530, 7
    %v907 = vsel %vm809, %v905, %v906
    %v908 = vrot.slane %v906, 2
    %v909 = vrot.slane %v529, 7
    %v910 = vsel %vm809, %v908, %v909
    %v911 = vrot.slane %v909, 2
    %v912 = vrot.slane %v531, 7
    %v913 = vsel %vm809, %v911, %v912
    %v914 = vrot.slane %v580, 7
    %v915 = vrot.slane %v914, 2
    %v916 = vrot.slane %v582, 7
    %v917 = vsel %vm809, %v915, %v916
    %v918 = vrot.slane %v916, 2
    %v919 = vrot.slane %v590, 7
    %v920 = vsel %vm809, %v918, %v919
    %v921 = vrot.slane %v919, 2
    %v922 = vrot.slane %v598, 7
    %v923 = vsel %vm809, %v921, %v922
    %v924 = vrot.slane %v922, 2
    %v925 = vrot.slane %v597, 7
    %v926 = vsel %vm809, %v924, %v925
    %v927 = vrot.slane %v599, 7
    %v928 = vrot.slane %v927, 2
    %v929 = vrot.slane %v607, 7
    %v930 = vsel %vm809, %v928, %v929
    %v931 = vrot.slane %v929, 2
    %v932 = vrot.slane %v615, 7
    %v933 = vsel %vm809, %v931, %v932
    %v934 = vrot.slane %v932, 2
    %v935 = vrot.slane %v614, 7
    %v936 = vsel %vm809, %v934, %v935
    %v937 = vrot.slane %v935, 2
    %v938 = vrot.slane %v616, 7
    %v939 = vsel %vm809, %v937, %v938
    %v940 = vrot.slane %v624, 7
    %v941 = vrot.slane %v940, 2
    %v942 = vrot.slane %v632, 7
    %v943 = vsel %vm809, %v941, %v942
    %v944 = vrot.slane %v942, 2
    %v945 = vrot.slane %v631, 7
    %v946 = vsel %vm809, %v944, %v945
    %v947 = vrot.slane %v945, 2
    %v948 = vrot.slane %v633, 7
    %v949 = vsel %vm809, %v947, %v948
    %v950 = vrot.slane %v948, 2
    %v951 = vrot.slane %v641, 7
    %v952 = vsel %vm809, %v950, %v951
    %v953 = vrot.slane %v649, 7
    %v954 = vrot.slane %v953, 2
    %v955 = vrot.slane %v648, 7
    %v956 = vsel %vm809, %v954, %v955
    %v957 = vrot.slane %v955, 2
    %v958 = vrot.slane %v650, 7
    %v959 = vsel %vm809, %v957, %v958
    %v960 = vrot.slane %v958, 2
    %v961 = vrot.slane %v658, 7
    %v962 = vsel %vm809, %v960, %v961
    %v963 = vrot.slane %v961, 2
    %v964 = vrot.slane %v666, 7
    %v965 = vsel %vm809, %v963, %v964
    %v966 = vrot.slane %v665, 7
    %v967 = vrot.slane %v966, 2
    %v968 = vrot.slane %v667, 7
    %v969 = vsel %vm809, %v967, %v968
    %v970 = vrot.slane %v968, 2
    %v971 = vrot.slane %v675, 7
    %v972 = vsel %vm809, %v970, %v971
    %v973 = vrot.slane %v971, 2
    %v974 = vrot.slane %v683, 7
    %v975 = vsel %vm809, %v973, %v974
    %v976 = vrot.slane %v974, 2
    %v977 = vrot.slane %v682, 7
    %v978 = vsel %vm809, %v976, %v977
    %v979 = vrot.slane %v684, 7
    %v980 = vrot.slane %v979, 2
    %v981 = vrot.slane %v692, 7
    %v982 = vsel %vm809, %v980, %v981
    %v983 = vrot.slane %v981, 2
    %v984 = vrot.slane %v700, 7
    %v985 = vsel %vm809, %v983, %v984
    %v986 = vrot.slane %v984, 2
    %v987 = vrot.slane %v699, 7
    %v988 = vsel %vm809, %v986, %v987
    %v989 = vrot.slane %v987, 2
    %v990 = vrot.slane %v701, 7
    %v991 = vsel %vm809, %v989, %v990
    %v992 = vrot.slane %v709, 7
    %v993 = vrot.slane %v992, 2
    %v994 = vrot.slane %v717, 7
    %v995 = vsel %vm809, %v993, %v994
    %v996 = vrot.slane %v994, 2
    %v997 = vrot.slane %v716, 7
    %v998 = vsel %vm809, %v996, %v997
    %v999 = vrot.slane %v997, 2
    %v1000 = vrot.slane %v718, 7
    %v1001 = vsel %vm809, %v999, %v1000
    %v1002 = vrot.slane %v1000, 2
    %v1003 = vrot.slane %v726, 7
    %v1004 = vsel %vm809, %v1002, %v1003
    %v1005 = vrot.slane %v734, 7
    %v1006 = vrot.slane %v1005, 2
    %v1007 = vrot.slane %v733, 7
    %v1008 = vsel %vm809, %v1006, %v1007
    %v1009 = vrot.slane %v1007, 2
    %v1010 = vrot.slane %v735, 7
    %v1011 = vsel %vm809, %v1009, %v1010
    %v1012 = vrot.slane %v1010, 2
    %v1013 = vrot.slane %v743, 7
    %v1014 = vsel %vm809, %v1012, %v1013
    %v1015 = vrot.slane %v1013, 2
    %v1016 = vrot.slane %v751, 7
    %v1017 = vsel %vm809, %v1015, %v1016
    %s1018 = scalar_lea.vmem %s3, 128
    %v1019 = vld [vmem:[%s1018] sm:$0xff]
    %v1020 = vld [vmem:[%s1018 + $0x8] sm:$0xff]
    %v1021 = vld [vmem:[%s1018 + $0x10] sm:$0xff]
    %v1022 = vld [vmem:[%s1018 + $0x18] sm:$0xff]
    %v1023 = vld [vmem:[%s1018 + $0x20] sm:$0xff]
    %v1024 = vld [vmem:[%s1018 + $0x28] sm:$0xff]
    %v1025 = vld [vmem:[%s1018 + $0x30] sm:$0xff]
    %v1026 = vld [vmem:[%s1018 + $0x38] sm:$0xff]
    %v1027 = vld [vmem:[%s1018 + $0x40] sm:$0xff]
    %v1028 = vld [vmem:[%s1018 + $0x48] sm:$0xff]
    %v1029 = vld [vmem:[%s1018 + $0x50] sm:$0xff]
    %v1030 = vld [vmem:[%s1018 + $0x58] sm:$0xff]
    %v1031 = vld [vmem:[%s1018 + $0x60] sm:$0xff]
    %v1032 = vld [vmem:[%s1018 + $0x68] sm:$0xff]
    %v1033 = vld [vmem:[%s1018 + $0x70] sm:$0xff]
    %v1034 = vld [vmem:[%s1018 + $0x78] sm:$0xff]
    %v1035 = vcombine.low %v813, %v816
    %v1036 = vcombine.low %v819, %v822
    %v1038 = vunpack.c.l.s4 1983009808
    %v1039 = vunpack.c.0.s8 %v1038
    %v1040 = vlaneseq
    %v1041 = vshrl.u32 %v1040, 7
    %v1042 = vsub.s32 %v1039, %v1041
    %v1043 = vrot.slane %v1035, %v1042
    %v1045 = vunpack.c.l.s4 1983009808
    %v1046 = vunpack.c.0.s8 %v1045
    %v1047 = vlaneseq
    %v1048 = vshrl.u32 %v1047, 7
    %v1049 = vsub.s32 %v1046, %v1048
    %v1050 = vrot.slane %v1036, %v1049
    %v1051 = vcombine.low %v1043, %v1050
    %v1052 = vcombine.low %v826, %v829
    %v1053 = vcombine.low %v832, %v835
    %v1055 = vunpack.c.l.s4 1983009808
    %v1056 = vunpack.c.0.s8 %v1055
    %v1057 = vlaneseq
    %v1058 = vshrl.u32 %v1057, 7
    %v1059 = vsub.s32 %v1056, %v1058
    %v1060 = vrot.slane %v1052, %v1059
    %v1062 = vunpack.c.l.s4 1983009808
    %v1063 = vunpack.c.0.s8 %v1062
    %v1064 = vlaneseq
    %v1065 = vshrl.u32 %v1064, 7
    %v1066 = vsub.s32 %v1063, %v1065
    %v1067 = vrot.slane %v1053, %v1066
    %v1068 = vcombine.low %v1060, %v1067
    %v1069 = vcombine.low %v839, %v842
    %v1070 = vcombine.low %v845, %v848
    %v1072 = vunpack.c.l.s4 1983009808
    %v1073 = vunpack.c.0.s8 %v1072
    %v1074 = vlaneseq
    %v1075 = vshrl.u32 %v1074, 7
    %v1076 = vsub.s32 %v1073, %v1075
    %v1077 = vrot.slane %v1069, %v1076
    %v1079 = vunpack.c.l.s4 1983009808
    %v1080 = vunpack.c.0.s8 %v1079
    %v1081 = vlaneseq
    %v1082 = vshrl.u32 %v1081, 7
    %v1083 = vsub.s32 %v1080, %v1082
    %v1084 = vrot.slane %v1070, %v1083
    %v1085 = vcombine.low %v1077, %v1084
    %v1086 = vcombine.low %v852, %v855
    %v1087 = vcombine.low %v858, %v861
    %v1089 = vunpack.c.l.s4 1983009808
    %v1090 = vunpack.c.0.s8 %v1089
    %v1091 = vlaneseq
    %v1092 = vshrl.u32 %v1091, 7
    %v1093 = vsub.s32 %v1090, %v1092
    %v1094 = vrot.slane %v1086, %v1093
    %v1096 = vunpack.c.l.s4 1983009808
    %v1097 = vunpack.c.0.s8 %v1096
    %v1098 = vlaneseq
    %v1099 = vshrl.u32 %v1098, 7
    %v1100 = vsub.s32 %v1097, %v1099
    %v1101 = vrot.slane %v1087, %v1100
    %v1102 = vcombine.low %v1094, %v1101
    %v1103 = vcombine.low %v865, %v868
    %v1104 = vcombine.low %v871, %v874
    %v1106 = vunpack.c.l.s4 1983009808
    %v1107 = vunpack.c.0.s8 %v1106
    %v1108 = vlaneseq
    %v1109 = vshrl.u32 %v1108, 7
    %v1110 = vsub.s32 %v1107, %v1109
    %v1111 = vrot.slane %v1103, %v1110
    %v1113 = vunpack.c.l.s4 1983009808
    %v1114 = vunpack.c.0.s8 %v1113
    %v1115 = vlaneseq
    %v1116 = vshrl.u32 %v1115, 7
    %v1117 = vsub.s32 %v1114, %v1116
    %v1118 = vrot.slane %v1104, %v1117
    %v1119 = vcombine.low %v1111, %v1118
    %v1120 = vcombine.low %v878, %v881
    %v1121 = vcombine.low %v884, %v887
    %v1123 = vunpack.c.l.s4 1983009808
    %v1124 = vunpack.c.0.s8 %v1123
    %v1125 = vlaneseq
    %v1126 = vshrl.u32 %v1125, 7
    %v1127 = vsub.s32 %v1124, %v1126
    %v1128 = vrot.slane %v1120, %v1127
    %v1130 = vunpack.c.l.s4 1983009808
    %v1131 = vunpack.c.0.s8 %v1130
    %v1132 = vlaneseq
    %v1133 = vshrl.u32 %v1132, 7
    %v1134 = vsub.s32 %v1131, %v1133
    %v1135 = vrot.slane %v1121, %v1134
    %v1136 = vcombine.low %v1128, %v1135
    %v1137 = vcombine.low %v891, %v894
    %v1138 = vcombine.low %v897, %v900
    %v1140 = vunpack.c.l.s4 1983009808
    %v1141 = vunpack.c.0.s8 %v1140
    %v1142 = vlaneseq
    %v1143 = vshrl.u32 %v1142, 7
    %v1144 = vsub.s32 %v1141, %v1143
    %v1145 = vrot.slane %v1137, %v1144
    %v1147 = vunpack.c.l.s4 1983009808
    %v1148 = vunpack.c.0.s8 %v1147
    %v1149 = vlaneseq
    %v1150 = vshrl.u32 %v1149, 7
    %v1151 = vsub.s32 %v1148, %v1150
    %v1152 = vrot.slane %v1138, %v1151
    %v1153 = vcombine.low %v1145, %v1152
    %v1154 = vcombine.low %v904, %v907
    %v1155 = vcombine.low %v910, %v913
    %v1157 = vunpack.c.l.s4 1983009808
    %v1158 = vunpack.c.0.s8 %v1157
    %v1159 = vlaneseq
    %v1160 = vshrl.u32 %v1159, 7
    %v1161 = vsub.s32 %v1158, %v1160
    %v1162 = vrot.slane %v1154, %v1161
    %v1164 = vunpack.c.l.s4 1983009808
    %v1165 = vunpack.c.0.s8 %v1164
    %v1166 = vlaneseq
    %v1167 = vshrl.u32 %v1166, 7
    %v1168 = vsub.s32 %v1165, %v1167
    %v1169 = vrot.slane %v1155, %v1168
    %v1170 = vcombine.low %v1162, %v1169
    %v1171 = vcombine.low %v917, %v920
    %v1172 = vcombine.low %v923, %v926
    %v1174 = vunpack.c.l.s4 1983009808
    %v1175 = vunpack.c.0.s8 %v1174
    %v1176 = vlaneseq
    %v1177 = vshrl.u32 %v1176, 7
    %v1178 = vsub.s32 %v1175, %v1177
    %v1179 = vrot.slane %v1171, %v1178
    %v1181 = vunpack.c.l.s4 1983009808
    %v1182 = vunpack.c.0.s8 %v1181
    %v1183 = vlaneseq
    %v1184 = vshrl.u32 %v1183, 7
    %v1185 = vsub.s32 %v1182, %v1184
    %v1186 = vrot.slane %v1172, %v1185
    %v1187 = vcombine.low %v1179, %v1186
    %v1188 = vcombine.low %v930, %v933
    %v1189 = vcombine.low %v936, %v939
    %v1191 = vunpack.c.l.s4 1983009808
    %v1192 = vunpack.c.0.s8 %v1191
    %v1193 = vlaneseq
    %v1194 = vshrl.u32 %v1193, 7
    %v1195 = vsub.s32 %v1192, %v1194
    %v1196 = vrot.slane %v1188, %v1195
    %v1198 = vunpack.c.l.s4 1983009808
    %v1199 = vunpack.c.0.s8 %v1198
    %v1200 = vlaneseq
    %v1201 = vshrl.u32 %v1200, 7
    %v1202 = vsub.s32 %v1199, %v1201
    %v1203 = vrot.slane %v1189, %v1202
    %v1204 = vcombine.low %v1196, %v1203
    %v1205 = vcombine.low %v943, %v946
    %v1206 = vcombine.low %v949, %v952
    %v1208 = vunpack.c.l.s4 1983009808
    %v1209 = vunpack.c.0.s8 %v1208
    %v1210 = vlaneseq
    %v1211 = vshrl.u32 %v1210, 7
    %v1212 = vsub.s32 %v1209, %v1211
    %v1213 = vrot.slane %v1205, %v1212
    %v1215 = vunpack.c.l.s4 1983009808
    %v1216 = vunpack.c.0.s8 %v1215
    %v1217 = vlaneseq
    %v1218 = vshrl.u32 %v1217, 7
    %v1219 = vsub.s32 %v1216, %v1218
    %v1220 = vrot.slane %v1206, %v1219
    %v1221 = vcombine.low %v1213, %v1220
    %v1222 = vcombine.low %v956, %v959
    %v1223 = vcombine.low %v962, %v965
    %v1225 = vunpack.c.l.s4 1983009808
    %v1226 = vunpack.c.0.s8 %v1225
    %v1227 = vlaneseq
    %v1228 = vshrl.u32 %v1227, 7
    %v1229 = vsub.s32 %v1226, %v1228
    %v1230 = vrot.slane %v1222, %v1229
    %v1232 = vunpack.c.l.s4 1983009808
    %v1233 = vunpack.c.0.s8 %v1232
    %v1234 = vlaneseq
    %v1235 = vshrl.u32 %v1234, 7
    %v1236 = vsub.s32 %v1233, %v1235
    %v1237 = vrot.slane %v1223, %v1236
    %v1238 = vcombine.low %v1230, %v1237
    %v1239 = vcombine.low %v969, %v972
    %v1240 = vcombine.low %v975, %v978
    %v1242 = vunpack.c.l.s4 1983009808
    %v1243 = vunpack.c.0.s8 %v1242
    %v1244 = vlaneseq
    %v1245 = vshrl.u32 %v1244, 7
    %v1246 = vsub.s32 %v1243, %v1245
    %v1247 = vrot.slane %v1239, %v1246
    %v1249 = vunpack.c.l.s4 1983009808
    %v1250 = vunpack.c.0.s8 %v1249
    %v1251 = vlaneseq
    %v1252 = vshrl.u32 %v1251, 7
    %v1253 = vsub.s32 %v1250, %v1252
    %v1254 = vrot.slane %v1240, %v1253
    %v1255 = vcombine.low %v1247, %v1254
    %v1256 = vcombine.low %v982, %v985
    %v1257 = vcombine.low %v988, %v991
    %v1259 = vunpack.c.l.s4 1983009808
    %v1260 = vunpack.c.0.s8 %v1259
    %v1261 = vlaneseq
    %v1262 = vshrl.u32 %v1261, 7
    %v1263 = vsub.s32 %v1260, %v1262
    %v1264 = vrot.slane %v1256, %v1263
    %v1266 = vunpack.c.l.s4 1983009808
    %v1267 = vunpack.c.0.s8 %v1266
    %v1268 = vlaneseq
    %v1269 = vshrl.u32 %v1268, 7
    %v1270 = vsub.s32 %v1267, %v1269
    %v1271 = vrot.slane %v1257, %v1270
    %v1272 = vcombine.low %v1264, %v1271
    %v1273 = vcombine.low %v995, %v998
    %v1274 = vcombine.low %v1001, %v1004
    %v1276 = vunpack.c.l.s4 1983009808
    %v1277 = vunpack.c.0.s8 %v1276
    %v1278 = vlaneseq
    %v1279 = vshrl.u32 %v1278, 7
    %v1280 = vsub.s32 %v1277, %v1279
    %v1281 = vrot.slane %v1273, %v1280
    %v1283 = vunpack.c.l.s4 1983009808
    %v1284 = vunpack.c.0.s8 %v1283
    %v1285 = vlaneseq
    %v1286 = vshrl.u32 %v1285, 7
    %v1287 = vsub.s32 %v1284, %v1286
    %v1288 = vrot.slane %v1274, %v1287
    %v1289 = vcombine.low %v1281, %v1288
    %v1290 = vcombine.low %v1008, %v1011
    %v1291 = vcombine.low %v1014, %v1017
    %v1293 = vunpack.c.l.s4 1983009808
    %v1294 = vunpack.c.0.s8 %v1293
    %v1295 = vlaneseq
    %v1296 = vshrl.u32 %v1295, 7
    %v1297 = vsub.s32 %v1294, %v1296
    %v1298 = vrot.slane %v1290, %v1297
    %v1300 = vunpack.c.l.s4 1983009808
    %v1301 = vunpack.c.0.s8 %v1300
    %v1302 = vlaneseq
    %v1303 = vshrl.u32 %v1302, 7
    %v1304 = vsub.s32 %v1301, %v1303
    %v1305 = vrot.slane %v1291, %v1304
    %v1306 = vcombine.low %v1298, %v1305
    %1323 = vmatprep.subr.mxu0 0.0
    %1324 = vmatpush1.msra.mxu0 %v1034
    %1325 = vmatprep.subr.mxu0 0.0
    %1326 = vmatpush1.msra.mxu0 %v1033
    %1327 = vmatprep.subr.mxu0 0.0
    %1328 = vmatpush1.msra.mxu0 %v1032
    %1329 = vmatprep.subr.mxu0 0.0
    %1330 = vmatpush1.msra.mxu0 %v1031
    %1331 = vmatprep.subr.mxu0 0.0
    %1332 = vmatpush1.msra.mxu0 %v1030
    %1333 = vmatprep.subr.mxu0 0.0
    %1334 = vmatpush1.msra.mxu0 %v1029
    %1335 = vmatprep.subr.mxu0 0.0
    %1336 = vmatpush1.msra.mxu0 %v1028
    %1337 = vmatprep.subr.mxu0 0.0
    %1338 = vmatpush1.msra.mxu0 %v1027
    %1339 = vmatprep.subr.mxu0 0.0
    %1340 = vmatpush1.msra.mxu0 %v1026
    %1341 = vmatprep.subr.mxu0 0.0
    %1342 = vmatpush1.msra.mxu0 %v1025
    %1343 = vmatprep.subr.mxu0 0.0
    %1344 = vmatpush1.msra.mxu0 %v1024
    %1345 = vmatprep.subr.mxu0 0.0
    %1346 = vmatpush1.msra.mxu0 %v1023
    %1347 = vmatprep.subr.mxu0 0.0
    %1348 = vmatpush1.msra.mxu0 %v1022
    %1349 = vmatprep.subr.mxu0 0.0
    %1350 = vmatpush1.msra.mxu0 %v1021
    %1351 = vmatprep.subr.mxu0 0.0
    %1352 = vmatpush1.msra.mxu0 %v1020
    %1353 = vmatprep.subr.mxu0 0.0
    %1354 = vmatpush1.msra.mxu0 %v1019
    %1355 = vmatprep.subr.mxu0 0.0
    %1356 = vmatpush2.msra.mxu0 0.0
    %1357 = vmatprep.subr.mxu0 0.0
    %1358 = vmatpush2.msra.mxu0 0.0
    %1359 = vmatprep.subr.mxu0 0.0
    %1360 = vmatpush2.msra.mxu0 0.0
    %1361 = vmatprep.subr.mxu0 0.0
    %1362 = vmatpush2.msra.mxu0 0.0
    %1363 = vmatprep.subr.mxu0 0.0
    %1364 = vmatpush2.msra.mxu0 0.0
    %1365 = vmatprep.subr.mxu0 0.0
    %1366 = vmatpush2.msra.mxu0 0.0
    %1367 = vmatprep.subr.mxu0 0.0
    %1368 = vmatpush2.msra.mxu0 0.0
    %1369 = vmatprep.subr.mxu0 0.0
    %1370 = vmatpush2.msra.mxu0 0.0
    %1371 = vmatprep.subr.mxu0 0.0
    %1372 = vmatpush2.msra.mxu0 0.0
    %1373 = vmatprep.subr.mxu0 0.0
    %1374 = vmatpush2.msra.mxu0 0.0
    %1375 = vmatprep.subr.mxu0 0.0
    %1376 = vmatpush2.msra.mxu0 0.0
    %1377 = vmatprep.subr.mxu0 0.0
    %1378 = vmatpush2.msra.mxu0 0.0
    %1379 = vmatprep.subr.mxu0 0.0
    %1380 = vmatpush2.msra.mxu0 0.0
    %1381 = vmatprep.subr.mxu0 0.0
    %1382 = vmatpush2.msra.mxu0 0.0
    %1383 = vmatprep.subr.mxu0 0.0
    %1384 = vmatpush2.msra.mxu0 0.0
    %1385 = vmatprep.subr.mxu0 0.0
    %1386 = vmatpush2.msra.mxu0 0.0
    %1387 = vmatprep.mubr.f32.mxu0 0.0
    %1388 = vmatmul.mubr.f32.gmra.mxu0 %v1051
    %v1389 = vpop.f32.mrf.mxu0
    %v1390 = vadd.f32 0.0, %v1389
    %v1391 = vpop.f32.mrf.mxu0
    %1392 = vmatprep.mubr.f32.mxu0 0.0
    %1393 = vmatmul.mubr.f32.gmra.mxu0 %v1068
    %v1394 = vpop.f32.mrf.mxu0
    %v1395 = vadd.f32 0.0, %v1394
    %v1396 = vpop.f32.mrf.mxu0
    %1397 = vmatprep.mubr.f32.mxu0 0.0
    %1398 = vmatmul.mubr.f32.gmra.mxu0 %v1085
    %v1399 = vpop.f32.mrf.mxu0
    %v1400 = vadd.f32 0.0, %v1399
    %v1401 = vpop.f32.mrf.mxu0
    %1402 = vmatprep.mubr.f32.mxu0 0.0
    %1403 = vmatmul.mubr.f32.gmra.mxu0 %v1102
    %v1404 = vpop.f32.mrf.mxu0
    %v1405 = vadd.f32 0.0, %v1404
    %v1406 = vpop.f32.mrf.mxu0
    %1407 = vmatprep.mubr.f32.mxu0 0.0
    %1408 = vmatmul.mubr.f32.gmra.mxu0 %v1119
    %v1409 = vpop.f32.mrf.mxu0
    %v1410 = vadd.f32 0.0, %v1409
    %v1411 = vpop.f32.mrf.mxu0
    %1412 = vmatprep.mubr.f32.mxu0 0.0
    %1413 = vmatmul.mubr.f32.gmra.mxu0 %v1136
    %v1414 = vpop.f32.mrf.mxu0
    %v1415 = vadd.f32 0.0, %v1414
    %v1416 = vpop.f32.mrf.mxu0
    %1417 = vmatprep.mubr.f32.mxu0 0.0
    %1418 = vmatmul.mubr.f32.gmra.mxu0 %v1153
    %v1419 = vpop.f32.mrf.mxu0
    %v1420 = vadd.f32 0.0, %v1419
    %v1421 = vpop.f32.mrf.mxu0
    %1422 = vmatprep.mubr.f32.mxu0 0.0
    %1423 = vmatmul.mubr.f32.gmra.mxu0 %v1170
    %v1424 = vpop.f32.mrf.mxu0
    %v1425 = vadd.f32 0.0, %v1424
    %v1426 = vpop.f32.mrf.mxu0
    %1427 = vmatprep.mubr.f32.mxu0 0.0
    %1428 = vmatmul.mubr.f32.gmra.mxu0 %v1187
    %v1429 = vpop.f32.mrf.mxu0
    %v1430 = vadd.f32 0.0, %v1429
    %v1431 = vpop.f32.mrf.mxu0
    %1432 = vmatprep.mubr.f32.mxu0 0.0
    %1433 = vmatmul.mubr.f32.gmra.mxu0 %v1204
    %v1434 = vpop.f32.mrf.mxu0
    %v1435 = vadd.f32 0.0, %v1434
    %v1436 = vpop.f32.mrf.mxu0
    %1437 = vmatprep.mubr.f32.mxu0 0.0
    %1438 = vmatmul.mubr.f32.gmra.mxu0 %v1221
    %v1439 = vpop.f32.mrf.mxu0
    %v1440 = vadd.f32 0.0, %v1439
    %v1441 = vpop.f32.mrf.mxu0
    %1442 = vmatprep.mubr.f32.mxu0 0.0
    %1443 = vmatmul.mubr.f32.gmra.mxu0 %v1238
    %v1444 = vpop.f32.mrf.mxu0
    %v1445 = vadd.f32 0.0, %v1444
    %v1446 = vpop.f32.mrf.mxu0
    %1447 = vmatprep.mubr.f32.mxu0 0.0
    %1448 = vmatmul.mubr.f32.gmra.mxu0 %v1255
    %v1449 = vpop.f32.mrf.mxu0
    %v1450 = vadd.f32 0.0, %v1449
    %v1451 = vpop.f32.mrf.mxu0
    %1452 = vmatprep.mubr.f32.mxu0 0.0
    %1453 = vmatmul.mubr.f32.gmra.mxu0 %v1272
    %v1454 = vpop.f32.mrf.mxu0
    %v1455 = vadd.f32 0.0, %v1454
    %v1456 = vpop.f32.mrf.mxu0
    %1457 = vmatprep.mubr.f32.mxu0 0.0
    %1458 = vmatmul.mubr.f32.gmra.mxu0 %v1289
    %v1459 = vpop.f32.mrf.mxu0
    %v1460 = vadd.f32 0.0, %v1459
    %v1461 = vpop.f32.mrf.mxu0
    %1462 = vmatprep.mubr.f32.mxu0 0.0
    %1463 = vmatmul.mubr.f32.gmra.mxu0 %v1306
    %v1464 = vpop.f32.mrf.mxu0
    %v1465 = vadd.f32 0.0, %v1464
    %v1466 = vpop.f32.mrf.mxu0
    %1467 = vdwg.mxu0
    %v1468 = vcombine.low %v369, %v377
    %v1469 = vcombine.low %v376, %v378
    %v1471 = vunpack.c.l.s4 1983009808
    %v1472 = vunpack.c.0.s8 %v1471
    %v1473 = vlaneseq
    %v1474 = vshrl.u32 %v1473, 7
    %v1475 = vsub.s32 %v1472, %v1474
    %v1476 = vrot.slane %v1468, %v1475
    %v1478 = vunpack.c.l.s4 1983009808
    %v1479 = vunpack.c.0.s8 %v1478
    %v1480 = vlaneseq
    %v1481 = vshrl.u32 %v1480, 7
    %v1482 = vsub.s32 %v1479, %v1481
    %v1483 = vrot.slane %v1469, %v1482
    %v1484 = vcombine.low %v1476, %v1483
    %v1485 = vcombine.low %v394, %v393
    %v1486 = vcombine.low %v395, %v403
    %v1488 = vunpack.c.l.s4 1983009808
    %v1489 = vunpack.c.0.s8 %v1488
    %v1490 = vlaneseq
    %v1491 = vshrl.u32 %v1490, 7
    %v1492 = vsub.s32 %v1489, %v1491
    %v1493 = vrot.slane %v1485, %v1492
    %v1495 = vunpack.c.l.s4 1983009808
    %v1496 = vunpack.c.0.s8 %v1495
    %v1497 = vlaneseq
    %v1498 = vshrl.u32 %v1497, 7
    %v1499 = vsub.s32 %v1496, %v1498
    %v1500 = vrot.slane %v1486, %v1499
    %v1501 = vcombine.low %v1493, %v1500
    %v1502 = vcombine.low %v410, %v412
    %v1503 = vcombine.low %v420, %v428
    %v1505 = vunpack.c.l.s4 1983009808
    %v1506 = vunpack.c.0.s8 %v1505
    %v1507 = vlaneseq
    %v1508 = vshrl.u32 %v1507, 7
    %v1509 = vsub.s32 %v1506, %v1508
    %v1510 = vrot.slane %v1502, %v1509
    %v1512 = vunpack.c.l.s4 1983009808
    %v1513 = vunpack.c.0.s8 %v1512
    %v1514 = vlaneseq
    %v1515 = vshrl.u32 %v1514, 7
    %v1516 = vsub.s32 %v1513, %v1515
    %v1517 = vrot.slane %v1503, %v1516
    %v1518 = vcombine.low %v1510, %v1517
    %v1519 = vcombine.low %v429, %v437
    %v1520 = vcombine.low %v445, %v444
    %v1522 = vunpack.c.l.s4 1983009808
    %v1523 = vunpack.c.0.s8 %v1522
    %v1524 = vlaneseq
    %v1525 = vshrl.u32 %v1524, 7
    %v1526 = vsub.s32 %v1523, %v1525
    %v1527 = vrot.slane %v1519, %v1526
    %v1529 = vunpack.c.l.s4 1983009808
    %v1530 = vunpack.c.0.s8 %v1529
    %v1531 = vlaneseq
    %v1532 = vshrl.u32 %v1531, 7
    %v1533 = vsub.s32 %v1530, %v1532
    %v1534 = vrot.slane %v1520, %v1533
    %v1535 = vcombine.low %v1527, %v1534
    %v1536 = vcombine.low %v454, %v462
    %v1537 = vcombine.low %v461, %v463
    %v1539 = vunpack.c.l.s4 1983009808
    %v1540 = vunpack.c.0.s8 %v1539
    %v1541 = vlaneseq
    %v1542 = vshrl.u32 %v1541, 7
    %v1543 = vsub.s32 %v1540, %v1542
    %v1544 = vrot.slane %v1536, %v1543
    %v1546 = vunpack.c.l.s4 1983009808
    %v1547 = vunpack.c.0.s8 %v1546
    %v1548 = vlaneseq
    %v1549 = vshrl.u32 %v1548, 7
    %v1550 = vsub.s32 %v1547, %v1549
    %v1551 = vrot.slane %v1537, %v1550
    %v1552 = vcombine.low %v1544, %v1551
    %v1553 = vcombine.low %v479, %v478
    %v1554 = vcombine.low %v480, %v488
    %v1556 = vunpack.c.l.s4 1983009808
    %v1557 = vunpack.c.0.s8 %v1556
    %v1558 = vlaneseq
    %v1559 = vshrl.u32 %v1558, 7
    %v1560 = vsub.s32 %v1557, %v1559
    %v1561 = vrot.slane %v1553, %v1560
    %v1563 = vunpack.c.l.s4 1983009808
    %v1564 = vunpack.c.0.s8 %v1563
    %v1565 = vlaneseq
    %v1566 = vshrl.u32 %v1565, 7
    %v1567 = vsub.s32 %v1564, %v1566
    %v1568 = vrot.slane %v1554, %v1567
    %v1569 = vcombine.low %v1561, %v1568
    %v1570 = vcombine.low %v495, %v497
    %v1571 = vcombine.low %v505, %v513
    %v1573 = vunpack.c.l.s4 1983009808
    %v1574 = vunpack.c.0.s8 %v1573
    %v1575 = vlaneseq
    %v1576 = vshrl.u32 %v1575, 7
    %v1577 = vsub.s32 %v1574, %v1576
    %v1578 = vrot.slane %v1570, %v1577
    %v1580 = vunpack.c.l.s4 1983009808
    %v1581 = vunpack.c.0.s8 %v1580
    %v1582 = vlaneseq
    %v1583 = vshrl.u32 %v1582, 7
    %v1584 = vsub.s32 %v1581, %v1583
    %v1585 = vrot.slane %v1571, %v1584
    %v1586 = vcombine.low %v1578, %v1585
    %v1587 = vcombine.low %v514, %v522
    %v1588 = vcombine.low %v530, %v529
    %v1590 = vunpack.c.l.s4 1983009808
    %v1591 = vunpack.c.0.s8 %v1590
    %v1592 = vlaneseq
    %v1593 = vshrl.u32 %v1592, 7
    %v1594 = vsub.s32 %v1591, %v1593
    %v1595 = vrot.slane %v1587, %v1594
    %v1597 = vunpack.c.l.s4 1983009808
    %v1598 = vunpack.c.0.s8 %v1597
    %v1599 = vlaneseq
    %v1600 = vshrl.u32 %v1599, 7
    %v1601 = vsub.s32 %v1598, %v1600
    %v1602 = vrot.slane %v1588, %v1601
    %v1603 = vcombine.low %v1595, %v1602
    %v1604 = vcombine.low %v580, %v582
    %v1605 = vcombine.low %v590, %v598
    %v1607 = vunpack.c.l.s4 1983009808
    %v1608 = vunpack.c.0.s8 %v1607
    %v1609 = vlaneseq
    %v1610 = vshrl.u32 %v1609, 7
    %v1611 = vsub.s32 %v1608, %v1610
    %v1612 = vrot.slane %v1604, %v1611
    %v1614 = vunpack.c.l.s4 1983009808
    %v1615 = vunpack.c.0.s8 %v1614
    %v1616 = vlaneseq
    %v1617 = vshrl.u32 %v1616, 7
    %v1618 = vsub.s32 %v1615, %v1617
    %v1619 = vrot.slane %v1605, %v1618
    %v1620 = vcombine.low %v1612, %v1619
    %v1621 = vcombine.low %v599, %v607
    %v1622 = vcombine.low %v615, %v614
    %v1624 = vunpack.c.l.s4 1983009808
    %v1625 = vunpack.c.0.s8 %v1624
    %v1626 = vlaneseq
    %v1627 = vshrl.u32 %v1626, 7
    %v1628 = vsub.s32 %v1625, %v1627
    %v1629 = vrot.slane %v1621, %v1628
    %v1631 = vunpack.c.l.s4 1983009808
    %v1632 = vunpack.c.0.s8 %v1631
    %v1633 = vlaneseq
    %v1634 = vshrl.u32 %v1633, 7
    %v1635 = vsub.s32 %v1632, %v1634
    %v1636 = vrot.slane %v1622, %v1635
    %v1637 = vcombine.low %v1629, %v1636
    %v1638 = vcombine.low %v624, %v632
    %v1639 = vcombine.low %v631, %v633
    %v1641 = vunpack.c.l.s4 1983009808
    %v1642 = vunpack.c.0.s8 %v1641
    %v1643 = vlaneseq
    %v1644 = vshrl.u32 %v1643, 7
    %v1645 = vsub.s32 %v1642, %v1644
    %v1646 = vrot.slane %v1638, %v1645
    %v1648 = vunpack.c.l.s4 1983009808
    %v1649 = vunpack.c.0.s8 %v1648
    %v1650 = vlaneseq
    %v1651 = vshrl.u32 %v1650, 7
    %v1652 = vsub.s32 %v1649, %v1651
    %v1653 = vrot.slane %v1639, %v1652
    %v1654 = vcombine.low %v1646, %v1653
    %v1655 = vcombine.low %v649, %v648
    %v1656 = vcombine.low %v650, %v658
    %v1658 = vunpack.c.l.s4 1983009808
    %v1659 = vunpack.c.0.s8 %v1658
    %v1660 = vlaneseq
    %v1661 = vshrl.u32 %v1660, 7
    %v1662 = vsub.s32 %v1659, %v1661
    %v1663 = vrot.slane %v1655, %v1662
    %v1665 = vunpack.c.l.s4 1983009808
    %v1666 = vunpack.c.0.s8 %v1665
    %v1667 = vlaneseq
    %v1668 = vshrl.u32 %v1667, 7
    %v1669 = vsub.s32 %v1666, %v1668
    %v1670 = vrot.slane %v1656, %v1669
    %v1671 = vcombine.low %v1663, %v1670
    %v1672 = vcombine.low %v665, %v667
    %v1673 = vcombine.low %v675, %v683
    %v1675 = vunpack.c.l.s4 1983009808
    %v1676 = vunpack.c.0.s8 %v1675
    %v1677 = vlaneseq
    %v1678 = vshrl.u32 %v1677, 7
    %v1679 = vsub.s32 %v1676, %v1678
    %v1680 = vrot.slane %v1672, %v1679
    %v1682 = vunpack.c.l.s4 1983009808
    %v1683 = vunpack.c.0.s8 %v1682
    %v1684 = vlaneseq
    %v1685 = vshrl.u32 %v1684, 7
    %v1686 = vsub.s32 %v1683, %v1685
    %v1687 = vrot.slane %v1673, %v1686
    %v1688 = vcombine.low %v1680, %v1687
    %v1689 = vcombine.low %v684, %v692
    %v1690 = vcombine.low %v700, %v699
    %v1692 = vunpack.c.l.s4 1983009808
    %v1693 = vunpack.c.0.s8 %v1692
    %v1694 = vlaneseq
    %v1695 = vshrl.u32 %v1694, 7
    %v1696 = vsub.s32 %v1693, %v1695
    %v1697 = vrot.slane %v1689, %v1696
    %v1699 = vunpack.c.l.s4 1983009808
    %v1700 = vunpack.c.0.s8 %v1699
    %v1701 = vlaneseq
    %v1702 = vshrl.u32 %v1701, 7
    %v1703 = vsub.s32 %v1700, %v1702
    %v1704 = vrot.slane %v1690, %v1703
    %v1705 = vcombine.low %v1697, %v1704
    %v1706 = vcombine.low %v709, %v717
    %v1707 = vcombine.low %v716, %v718
    %v1709 = vunpack.c.l.s4 1983009808
    %v1710 = vunpack.c.0.s8 %v1709
    %v1711 = vlaneseq
    %v1712 = vshrl.u32 %v1711, 7
    %v1713 = vsub.s32 %v1710, %v1712
    %v1714 = vrot.slane %v1706, %v1713
    %v1716 = vunpack.c.l.s4 1983009808
    %v1717 = vunpack.c.0.s8 %v1716
    %v1718 = vlaneseq
    %v1719 = vshrl.u32 %v1718, 7
    %v1720 = vsub.s32 %v1717, %v1719
    %v1721 = vrot.slane %v1707, %v1720
    %v1722 = vcombine.low %v1714, %v1721
    %v1723 = vcombine.low %v734, %v733
    %v1724 = vcombine.low %v735, %v743
    %v1726 = vunpack.c.l.s4 1983009808
    %v1727 = vunpack.c.0.s8 %v1726
    %v1728 = vlaneseq
    %v1729 = vshrl.u32 %v1728, 7
    %v1730 = vsub.s32 %v1727, %v1729
    %v1731 = vrot.slane %v1723, %v1730
    %v1733 = vunpack.c.l.s4 1983009808
    %v1734 = vunpack.c.0.s8 %v1733
    %v1735 = vlaneseq
    %v1736 = vshrl.u32 %v1735, 7
    %v1737 = vsub.s32 %v1734, %v1736
    %v1738 = vrot.slane %v1724, %v1737
    %v1739 = vcombine.low %v1731, %v1738
    %1756 = vmatprep.subr.mxu0 0.0
    %1757 = vmatpush1.msra.mxu0 %v802
    %1758 = vmatprep.subr.mxu0 0.0
    %1759 = vmatpush1.msra.mxu0 %v801
    %1760 = vmatprep.subr.mxu0 0.0
    %1761 = vmatpush1.msra.mxu0 %v800
    %1762 = vmatprep.subr.mxu0 0.0
    %1763 = vmatpush1.msra.mxu0 %v799
    %1764 = vmatprep.subr.mxu0 0.0
    %1765 = vmatpush1.msra.mxu0 %v798
    %1766 = vmatprep.subr.mxu0 0.0
    %1767 = vmatpush1.msra.mxu0 %v797
    %1768 = vmatprep.subr.mxu0 0.0
    %1769 = vmatpush1.msra.mxu0 %v796
    %1770 = vmatprep.subr.mxu0 0.0
    %1771 = vmatpush1.msra.mxu0 %v795
    %1772 = vmatprep.subr.mxu0 0.0
    %1773 = vmatpush1.msra.mxu0 %v794
    %1774 = vmatprep.subr.mxu0 0.0
    %1775 = vmatpush1.msra.mxu0 %v793
    %1776 = vmatprep.subr.mxu0 0.0
    %1777 = vmatpush1.msra.mxu0 %v792
    %1778 = vmatprep.subr.mxu0 0.0
    %1779 = vmatpush1.msra.mxu0 %v791
    %1780 = vmatprep.subr.mxu0 0.0
    %1781 = vmatpush1.msra.mxu0 %v790
    %1782 = vmatprep.subr.mxu0 0.0
    %1783 = vmatpush1.msra.mxu0 %v789
    %1784 = vmatprep.subr.mxu0 0.0
    %1785 = vmatpush1.msra.mxu0 %v788
    %1786 = vmatprep.subr.mxu0 0.0
    %1787 = vmatpush1.msra.mxu0 %v787
    %1788 = vmatprep.subr.mxu0 0.0
    %1789 = vmatpush2.msra.mxu0 0.0
    %1790 = vmatprep.subr.mxu0 0.0
    %1791 = vmatpush2.msra.mxu0 0.0
    %1792 = vmatprep.subr.mxu0 0.0
    %1793 = vmatpush2.msra.mxu0 0.0
    %1794 = vmatprep.subr.mxu0 0.0
    %1795 = vmatpush2.msra.mxu0 0.0
    %1796 = vmatprep.subr.mxu0 0.0
    %1797 = vmatpush2.msra.mxu0 0.0
    %1798 = vmatprep.subr.mxu0 0.0
    %1799 = vmatpush2.msra.mxu0 0.0
    %1800 = vmatprep.subr.mxu0 0.0
    %1801 = vmatpush2.msra.mxu0 0.0
    %1802 = vmatprep.subr.mxu0 0.0
    %1803 = vmatpush2.msra.mxu0 0.0
    %1804 = vmatprep.subr.mxu0 0.0
    %1805 = vmatpush2.msra.mxu0 0.0
    %1806 = vmatprep.subr.mxu0 0.0
    %1807 = vmatpush2.msra.mxu0 0.0
    %1808 = vmatprep.subr.mxu0 0.0
    %1809 = vmatpush2.msra.mxu0 0.0
    %1810 = vmatprep.subr.mxu0 0.0
    %1811 = vmatpush2.msra.mxu0 0.0
    %1812 = vmatprep.subr.mxu0 0.0
    %1813 = vmatpush2.msra.mxu0 0.0
    %1814 = vmatprep.subr.mxu0 0.0
    %1815 = vmatpush2.msra.mxu0 0.0
    %1816 = vmatprep.subr.mxu0 0.0
    %1817 = vmatpush2.msra.mxu0 0.0
    %1818 = vmatprep.subr.mxu0 0.0
    %1819 = vmatpush2.msra.mxu0 0.0
    %1820 = vmatprep.mubr.f32.mxu0 0.0
    %1821 = vmatmul.mubr.f32.gmra.mxu0 %v1484
    %v1822 = vpop.f32.mrf.mxu0
    %v1823 = vadd.f32 %v1390, %v1822
    %v1824 = vpop.f32.mrf.mxu0
    %1825 = vmatprep.mubr.f32.mxu0 0.0
    %1826 = vmatmul.mubr.f32.gmra.mxu0 %v1501
    %v1827 = vpop.f32.mrf.mxu0
    %v1828 = vadd.f32 %v1395, %v1827
    %v1829 = vpop.f32.mrf.mxu0
    %1830 = vmatprep.mubr.f32.mxu0 0.0
    %1831 = vmatmul.mubr.f32.gmra.mxu0 %v1518
    %v1832 = vpop.f32.mrf.mxu0
    %v1833 = vadd.f32 %v1400, %v1832
    %v1834 = vpop.f32.mrf.mxu0
    %1835 = vmatprep.mubr.f32.mxu0 0.0
    %1836 = vmatmul.mubr.f32.gmra.mxu0 %v1535
    %v1837 = vpop.f32.mrf.mxu0
    %v1838 = vadd.f32 %v1405, %v1837
    %v1839 = vpop.f32.mrf.mxu0
    %1840 = vmatprep.mubr.f32.mxu0 0.0
    %1841 = vmatmul.mubr.f32.gmra.mxu0 %v1552
    %v1842 = vpop.f32.mrf.mxu0
    %v1843 = vadd.f32 %v1410, %v1842
    %v1844 = vpop.f32.mrf.mxu0
    %1845 = vmatprep.mubr.f32.mxu0 0.0
    %1846 = vmatmul.mubr.f32.gmra.mxu0 %v1569
    %v1847 = vpop.f32.mrf.mxu0
    %v1848 = vadd.f32 %v1415, %v1847
    %v1849 = vpop.f32.mrf.mxu0
    %1850 = vmatprep.mubr.f32.mxu0 0.0
    %1851 = vmatmul.mubr.f32.gmra.mxu0 %v1586
    %v1852 = vpop.f32.mrf.mxu0
    %v1853 = vadd.f32 %v1420, %v1852
    %v1854 = vpop.f32.mrf.mxu0
    %1855 = vmatprep.mubr.f32.mxu0 0.0
    %1856 = vmatmul.mubr.f32.gmra.mxu0 %v1603
    %v1857 = vpop.f32.mrf.mxu0
    %v1858 = vadd.f32 %v1425, %v1857
    %v1859 = vpop.f32.mrf.mxu0
    %1860 = vmatprep.mubr.f32.mxu0 0.0
    %1861 = vmatmul.mubr.f32.gmra.mxu0 %v1620
    %v1862 = vpop.f32.mrf.mxu0
    %v1863 = vadd.f32 %v1430, %v1862
    %v1864 = vpop.f32.mrf.mxu0
    %1865 = vmatprep.mubr.f32.mxu0 0.0
    %1866 = vmatmul.mubr.f32.gmra.mxu0 %v1637
    %v1867 = vpop.f32.mrf.mxu0
    %v1868 = vadd.f32 %v1435, %v1867
    %v1869 = vpop.f32.mrf.mxu0
    %1870 = vmatprep.mubr.f32.mxu0 0.0
    %1871 = vmatmul.mubr.f32.gmra.mxu0 %v1654
    %v1872 = vpop.f32.mrf.mxu0
    %v1873 = vadd.f32 %v1440, %v1872
    %v1874 = vpop.f32.mrf.mxu0
    %1875 = vmatprep.mubr.f32.mxu0 0.0
    %1876 = vmatmul.mubr.f32.gmra.mxu0 %v1671
    %v1877 = vpop.f32.mrf.mxu0
    %v1878 = vadd.f32 %v1445, %v1877
    %v1879 = vpop.f32.mrf.mxu0
    %1880 = vmatprep.mubr.f32.mxu0 0.0
    %1881 = vmatmul.mubr.f32.gmra.mxu0 %v1688
    %v1882 = vpop.f32.mrf.mxu0
    %v1883 = vadd.f32 %v1450, %v1882
    %v1884 = vpop.f32.mrf.mxu0
    %1885 = vmatprep.mubr.f32.mxu0 0.0
    %1886 = vmatmul.mubr.f32.gmra.mxu0 %v1705
    %v1887 = vpop.f32.mrf.mxu0
    %v1888 = vadd.f32 %v1455, %v1887
    %v1889 = vpop.f32.mrf.mxu0
    %1890 = vmatprep.mubr.f32.mxu0 0.0
    %1891 = vmatmul.mubr.f32.gmra.mxu0 %v1722
    %v1892 = vpop.f32.mrf.mxu0
    %v1893 = vadd.f32 %v1460, %v1892
    %v1894 = vpop.f32.mrf.mxu0
    %1895 = vmatprep.mubr.f32.mxu0 0.0
    %1896 = vmatmul.mubr.f32.gmra.mxu0 %v1739
    %v1897 = vpop.f32.mrf.mxu0
    %v1898 = vadd.f32 %v1465, %v1897
    %v1899 = vpop.f32.mrf.mxu0
    %1900 = vdwg.mxu0
    %s1901 = scalar_lea.vmem %s3, 256
    %v1902 = vld [vmem:[%s1901] sm:$0xff]
    %v1903 = vld [vmem:[%s1901 + $0x8] sm:$0xff]
    %v1904 = vld [vmem:[%s1901 + $0x10] sm:$0xff]
    %v1905 = vld [vmem:[%s1901 + $0x18] sm:$0xff]
    %v1906 = vld [vmem:[%s1901 + $0x20] sm:$0xff]
    %v1907 = vld [vmem:[%s1901 + $0x28] sm:$0xff]
    %v1908 = vld [vmem:[%s1901 + $0x30] sm:$0xff]
    %v1909 = vld [vmem:[%s1901 + $0x38] sm:$0xff]
    %v1910 = vld [vmem:[%s1901 + $0x40] sm:$0xff]
    %v1911 = vld [vmem:[%s1901 + $0x48] sm:$0xff]
    %v1912 = vld [vmem:[%s1901 + $0x50] sm:$0xff]
    %v1913 = vld [vmem:[%s1901 + $0x58] sm:$0xff]
    %v1914 = vld [vmem:[%s1901 + $0x60] sm:$0xff]
    %v1915 = vld [vmem:[%s1901 + $0x68] sm:$0xff]
    %v1916 = vld [vmem:[%s1901 + $0x70] sm:$0xff]
    %v1917 = vld [vmem:[%s1901 + $0x78] sm:$0xff]
    %v1918 = vcombine.low %v377, %v376
    %v1919 = vcombine.low %v378, %v386
    %v1921 = vunpack.c.l.s4 1983009808
    %v1922 = vunpack.c.0.s8 %v1921
    %v1923 = vlaneseq
    %v1924 = vshrl.u32 %v1923, 7
    %v1925 = vsub.s32 %v1922, %v1924
    %v1926 = vrot.slane %v1918, %v1925
    %v1928 = vunpack.c.l.s4 1983009808
    %v1929 = vunpack.c.0.s8 %v1928
    %v1930 = vlaneseq
    %v1931 = vshrl.u32 %v1930, 7
    %v1932 = vsub.s32 %v1929, %v1931
    %v1933 = vrot.slane %v1919, %v1932
    %v1934 = vcombine.low %v1926, %v1933
    %v1935 = vcombine.low %v393, %v395
    %v1936 = vcombine.low %v403, %v411
    %v1938 = vunpack.c.l.s4 1983009808
    %v1939 = vunpack.c.0.s8 %v1938
    %v1940 = vlaneseq
    %v1941 = vshrl.u32 %v1940, 7
    %v1942 = vsub.s32 %v1939, %v1941
    %v1943 = vrot.slane %v1935, %v1942
    %v1945 = vunpack.c.l.s4 1983009808
    %v1946 = vunpack.c.0.s8 %v1945
    %v1947 = vlaneseq
    %v1948 = vshrl.u32 %v1947, 7
    %v1949 = vsub.s32 %v1946, %v1948
    %v1950 = vrot.slane %v1936, %v1949
    %v1951 = vcombine.low %v1943, %v1950
    %v1952 = vcombine.low %v412, %v420
    %v1953 = vcombine.low %v428, %v427
    %v1955 = vunpack.c.l.s4 1983009808
    %v1956 = vunpack.c.0.s8 %v1955
    %v1957 = vlaneseq
    %v1958 = vshrl.u32 %v1957, 7
    %v1959 = vsub.s32 %v1956, %v1958
    %v1960 = vrot.slane %v1952, %v1959
    %v1962 = vunpack.c.l.s4 1983009808
    %v1963 = vunpack.c.0.s8 %v1962
    %v1964 = vlaneseq
    %v1965 = vshrl.u32 %v1964, 7
    %v1966 = vsub.s32 %v1963, %v1965
    %v1967 = vrot.slane %v1953, %v1966
    %v1968 = vcombine.low %v1960, %v1967
    %v1969 = vcombine.low %v437, %v445
    %v1970 = vcombine.low %v444, %v446
    %v1972 = vunpack.c.l.s4 1983009808
    %v1973 = vunpack.c.0.s8 %v1972
    %v1974 = vlaneseq
    %v1975 = vshrl.u32 %v1974, 7
    %v1976 = vsub.s32 %v1973, %v1975
    %v1977 = vrot.slane %v1969, %v1976
    %v1979 = vunpack.c.l.s4 1983009808
    %v1980 = vunpack.c.0.s8 %v1979
    %v1981 = vlaneseq
    %v1982 = vshrl.u32 %v1981, 7
    %v1983 = vsub.s32 %v1980, %v1982
    %v1984 = vrot.slane %v1970, %v1983
    %v1985 = vcombine.low %v1977, %v1984
    %v1986 = vcombine.low %v462, %v461
    %v1987 = vcombine.low %v463, %v471
    %v1989 = vunpack.c.l.s4 1983009808
    %v1990 = vunpack.c.0.s8 %v1989
    %v1991 = vlaneseq
    %v1992 = vshrl.u32 %v1991, 7
    %v1993 = vsub.s32 %v1990, %v1992
    %v1994 = vrot.slane %v1986, %v1993
    %v1996 = vunpack.c.l.s4 1983009808
    %v1997 = vunpack.c.0.s8 %v1996
    %v1998 = vlaneseq
    %v1999 = vshrl.u32 %v1998, 7
    %v2000 = vsub.s32 %v1997, %v1999
    %v2001 = vrot.slane %v1987, %v2000
    %v2002 = vcombine.low %v1994, %v2001
    %v2003 = vcombine.low %v478, %v480
    %v2004 = vcombine.low %v488, %v496
    %v2006 = vunpack.c.l.s4 1983009808
    %v2007 = vunpack.c.0.s8 %v2006
    %v2008 = vlaneseq
    %v2009 = vshrl.u32 %v2008, 7
    %v2010 = vsub.s32 %v2007, %v2009
    %v2011 = vrot.slane %v2003, %v2010
    %v2013 = vunpack.c.l.s4 1983009808
    %v2014 = vunpack.c.0.s8 %v2013
    %v2015 = vlaneseq
    %v2016 = vshrl.u32 %v2015, 7
    %v2017 = vsub.s32 %v2014, %v2016
    %v2018 = vrot.slane %v2004, %v2017
    %v2019 = vcombine.low %v2011, %v2018
    %v2020 = vcombine.low %v497, %v505
    %v2021 = vcombine.low %v513, %v512
    %v2023 = vunpack.c.l.s4 1983009808
    %v2024 = vunpack.c.0.s8 %v2023
    %v2025 = vlaneseq
    %v2026 = vshrl.u32 %v2025, 7
    %v2027 = vsub.s32 %v2024, %v2026
    %v2028 = vrot.slane %v2020, %v2027
    %v2030 = vunpack.c.l.s4 1983009808
    %v2031 = vunpack.c.0.s8 %v2030
    %v2032 = vlaneseq
    %v2033 = vshrl.u32 %v2032, 7
    %v2034 = vsub.s32 %v2031, %v2033
    %v2035 = vrot.slane %v2021, %v2034
    %v2036 = vcombine.low %v2028, %v2035
    %v2037 = vcombine.low %v522, %v530
    %v2038 = vcombine.low %v529, %v531
    %v2040 = vunpack.c.l.s4 1983009808
    %v2041 = vunpack.c.0.s8 %v2040
    %v2042 = vlaneseq
    %v2043 = vshrl.u32 %v2042, 7
    %v2044 = vsub.s32 %v2041, %v2043
    %v2045 = vrot.slane %v2037, %v2044
    %v2047 = vunpack.c.l.s4 1983009808
    %v2048 = vunpack.c.0.s8 %v2047
    %v2049 = vlaneseq
    %v2050 = vshrl.u32 %v2049, 7
    %v2051 = vsub.s32 %v2048, %v2050
    %v2052 = vrot.slane %v2038, %v2051
    %v2053 = vcombine.low %v2045, %v2052
    %v2054 = vcombine.low %v582, %v590
    %v2055 = vcombine.low %v598, %v597
    %v2057 = vunpack.c.l.s4 1983009808
    %v2058 = vunpack.c.0.s8 %v2057
    %v2059 = vlaneseq
    %v2060 = vshrl.u32 %v2059, 7
    %v2061 = vsub.s32 %v2058, %v2060
    %v2062 = vrot.slane %v2054, %v2061
    %v2064 = vunpack.c.l.s4 1983009808
    %v2065 = vunpack.c.0.s8 %v2064
    %v2066 = vlaneseq
    %v2067 = vshrl.u32 %v2066, 7
    %v2068 = vsub.s32 %v2065, %v2067
    %v2069 = vrot.slane %v2055, %v2068
    %v2070 = vcombine.low %v2062, %v2069
    %v2071 = vcombine.low %v607, %v615
    %v2072 = vcombine.low %v614, %v616
    %v2074 = vunpack.c.l.s4 1983009808
    %v2075 = vunpack.c.0.s8 %v2074
    %v2076 = vlaneseq
    %v2077 = vshrl.u32 %v2076, 7
    %v2078 = vsub.s32 %v2075, %v2077
    %v2079 = vrot.slane %v2071, %v2078
    %v2081 = vunpack.c.l.s4 1983009808
    %v2082 = vunpack.c.0.s8 %v2081
    %v2083 = vlaneseq
    %v2084 = vshrl.u32 %v2083, 7
    %v2085 = vsub.s32 %v2082, %v2084
    %v2086 = vrot.slane %v2072, %v2085
    %v2087 = vcombine.low %v2079, %v2086
    %v2088 = vcombine.low %v632, %v631
    %v2089 = vcombine.low %v633, %v641
    %v2091 = vunpack.c.l.s4 1983009808
    %v2092 = vunpack.c.0.s8 %v2091
    %v2093 = vlaneseq
    %v2094 = vshrl.u32 %v2093, 7
    %v2095 = vsub.s32 %v2092, %v2094
    %v2096 = vrot.slane %v2088, %v2095
    %v2098 = vunpack.c.l.s4 1983009808
    %v2099 = vunpack.c.0.s8 %v2098
    %v2100 = vlaneseq
    %v2101 = vshrl.u32 %v2100, 7
    %v2102 = vsub.s32 %v2099, %v2101
    %v2103 = vrot.slane %v2089, %v2102
    %v2104 = vcombine.low %v2096, %v2103
    %v2105 = vcombine.low %v648, %v650
    %v2106 = vcombine.low %v658, %v666
    %v2108 = vunpack.c.l.s4 1983009808
    %v2109 = vunpack.c.0.s8 %v2108
    %v2110 = vlaneseq
    %v2111 = vshrl.u32 %v2110, 7
    %v2112 = vsub.s32 %v2109, %v2111
    %v2113 = vrot.slane %v2105, %v2112
    %v2115 = vunpack.c.l.s4 1983009808
    %v2116 = vunpack.c.0.s8 %v2115
    %v2117 = vlaneseq
    %v2118 = vshrl.u32 %v2117, 7
    %v2119 = vsub.s32 %v2116, %v2118
    %v2120 = vrot.slane %v2106, %v2119
    %v2121 = vcombine.low %v2113, %v2120
    %v2122 = vcombine.low %v667, %v675
    %v2123 = vcombine.low %v683, %v682
    %v2125 = vunpack.c.l.s4 1983009808
    %v2126 = vunpack.c.0.s8 %v2125
    %v2127 = vlaneseq
    %v2128 = vshrl.u32 %v2127, 7
    %v2129 = vsub.s32 %v2126, %v2128
    %v2130 = vrot.slane %v2122, %v2129
    %v2132 = vunpack.c.l.s4 1983009808
    %v2133 = vunpack.c.0.s8 %v2132
    %v2134 = vlaneseq
    %v2135 = vshrl.u32 %v2134, 7
    %v2136 = vsub.s32 %v2133, %v2135
    %v2137 = vrot.slane %v2123, %v2136
    %v2138 = vcombine.low %v2130, %v2137
    %v2139 = vcombine.low %v692, %v700
    %v2140 = vcombine.low %v699, %v701
    %v2142 = vunpack.c.l.s4 1983009808
    %v2143 = vunpack.c.0.s8 %v2142
    %v2144 = vlaneseq
    %v2145 = vshrl.u32 %v2144, 7
    %v2146 = vsub.s32 %v2143, %v2145
    %v2147 = vrot.slane %v2139, %v2146
    %v2149 = vunpack.c.l.s4 1983009808
    %v2150 = vunpack.c.0.s8 %v2149
    %v2151 = vlaneseq
    %v2152 = vshrl.u32 %v2151, 7
    %v2153 = vsub.s32 %v2150, %v2152
    %v2154 = vrot.slane %v2140, %v2153
    %v2155 = vcombine.low %v2147, %v2154
    %v2156 = vcombine.low %v717, %v716
    %v2157 = vcombine.low %v718, %v726
    %v2159 = vunpack.c.l.s4 1983009808
    %v2160 = vunpack.c.0.s8 %v2159
    %v2161 = vlaneseq
    %v2162 = vshrl.u32 %v2161, 7
    %v2163 = vsub.s32 %v2160, %v2162
    %v2164 = vrot.slane %v2156, %v2163
    %v2166 = vunpack.c.l.s4 1983009808
    %v2167 = vunpack.c.0.s8 %v2166
    %v2168 = vlaneseq
    %v2169 = vshrl.u32 %v2168, 7
    %v2170 = vsub.s32 %v2167, %v2169
    %v2171 = vrot.slane %v2157, %v2170
    %v2172 = vcombine.low %v2164, %v2171
    %v2173 = vcombine.low %v733, %v735
    %v2174 = vcombine.low %v743, %v751
    %v2176 = vunpack.c.l.s4 1983009808
    %v2177 = vunpack.c.0.s8 %v2176
    %v2178 = vlaneseq
    %v2179 = vshrl.u32 %v2178, 7
    %v2180 = vsub.s32 %v2177, %v2179
    %v2181 = vrot.slane %v2173, %v2180
    %v2183 = vunpack.c.l.s4 1983009808
    %v2184 = vunpack.c.0.s8 %v2183
    %v2185 = vlaneseq
    %v2186 = vshrl.u32 %v2185, 7
    %v2187 = vsub.s32 %v2184, %v2186
    %v2188 = vrot.slane %v2174, %v2187
    %v2189 = vcombine.low %v2181, %v2188
    %2206 = vmatprep.subr.mxu0 0.0
    %2207 = vmatpush1.msra.mxu0 %v1917
    %2208 = vmatprep.subr.mxu0 0.0
    %2209 = vmatpush1.msra.mxu0 %v1916
    %2210 = vmatprep.subr.mxu0 0.0
    %2211 = vmatpush1.msra.mxu0 %v1915
    %2212 = vmatprep.subr.mxu0 0.0
    %2213 = vmatpush1.msra.mxu0 %v1914
    %2214 = vmatprep.subr.mxu0 0.0
    %2215 = vmatpush1.msra.mxu0 %v1913
    %2216 = vmatprep.subr.mxu0 0.0
    %2217 = vmatpush1.msra.mxu0 %v1912
    %2218 = vmatprep.subr.mxu0 0.0
    %2219 = vmatpush1.msra.mxu0 %v1911
    %2220 = vmatprep.subr.mxu0 0.0
    %2221 = vmatpush1.msra.mxu0 %v1910
    %2222 = vmatprep.subr.mxu0 0.0
    %2223 = vmatpush1.msra.mxu0 %v1909
    %2224 = vmatprep.subr.mxu0 0.0
    %2225 = vmatpush1.msra.mxu0 %v1908
    %2226 = vmatprep.subr.mxu0 0.0
    %2227 = vmatpush1.msra.mxu0 %v1907
    %2228 = vmatprep.subr.mxu0 0.0
    %2229 = vmatpush1.msra.mxu0 %v1906
    %2230 = vmatprep.subr.mxu0 0.0
    %2231 = vmatpush1.msra.mxu0 %v1905
    %2232 = vmatprep.subr.mxu0 0.0
    %2233 = vmatpush1.msra.mxu0 %v1904
    %2234 = vmatprep.subr.mxu0 0.0
    %2235 = vmatpush1.msra.mxu0 %v1903
    %2236 = vmatprep.subr.mxu0 0.0
    %2237 = vmatpush1.msra.mxu0 %v1902
    %2238 = vmatprep.subr.mxu0 0.0
    %2239 = vmatpush2.msra.mxu0 0.0
    %2240 = vmatprep.subr.mxu0 0.0
    %2241 = vmatpush2.msra.mxu0 0.0
    %2242 = vmatprep.subr.mxu0 0.0
    %2243 = vmatpush2.msra.mxu0 0.0
    %2244 = vmatprep.subr.mxu0 0.0
    %2245 = vmatpush2.msra.mxu0 0.0
    %2246 = vmatprep.subr.mxu0 0.0
    %2247 = vmatpush2.msra.mxu0 0.0
    %2248 = vmatprep.subr.mxu0 0.0
    %2249 = vmatpush2.msra.mxu0 0.0
    %2250 = vmatprep.subr.mxu0 0.0
    %2251 = vmatpush2.msra.mxu0 0.0
    %2252 = vmatprep.subr.mxu0 0.0
    %2253 = vmatpush2.msra.mxu0 0.0
    %2254 = vmatprep.subr.mxu0 0.0
    %2255 = vmatpush2.msra.mxu0 0.0
    %2256 = vmatprep.subr.mxu0 0.0
    %2257 = vmatpush2.msra.mxu0 0.0
    %2258 = vmatprep.subr.mxu0 0.0
    %2259 = vmatpush2.msra.mxu0 0.0
    %2260 = vmatprep.subr.mxu0 0.0
    %2261 = vmatpush2.msra.mxu0 0.0
    %2262 = vmatprep.subr.mxu0 0.0
    %2263 = vmatpush2.msra.mxu0 0.0
    %2264 = vmatprep.subr.mxu0 0.0
    %2265 = vmatpush2.msra.mxu0 0.0
    %2266 = vmatprep.subr.mxu0 0.0
    %2267 = vmatpush2.msra.mxu0 0.0
    %2268 = vmatprep.subr.mxu0 0.0
    %2269 = vmatpush2.msra.mxu0 0.0
    %2270 = vmatprep.mubr.f32.mxu0 0.0
    %2271 = vmatmul.mubr.f32.gmra.mxu0 %v1934
    %v2272 = vpop.f32.mrf.mxu0
    %v2273 = vadd.f32 0.0, %v2272
    %v2274 = vpop.f32.mrf.mxu0
    %2275 = vmatprep.mubr.f32.mxu0 0.0
    %2276 = vmatmul.mubr.f32.gmra.mxu0 %v1951
    %v2277 = vpop.f32.mrf.mxu0
    %v2278 = vadd.f32 0.0, %v2277
    %v2279 = vpop.f32.mrf.mxu0
    %2280 = vmatprep.mubr.f32.mxu0 0.0
    %2281 = vmatmul.mubr.f32.gmra.mxu0 %v1968
    %v2282 = vpop.f32.mrf.mxu0
    %v2283 = vadd.f32 0.0, %v2282
    %v2284 = vpop.f32.mrf.mxu0
    %2285 = vmatprep.mubr.f32.mxu0 0.0
    %2286 = vmatmul.mubr.f32.gmra.mxu0 %v1985
    %v2287 = vpop.f32.mrf.mxu0
    %v2288 = vadd.f32 0.0, %v2287
    %v2289 = vpop.f32.mrf.mxu0
    %2290 = vmatprep.mubr.f32.mxu0 0.0
    %2291 = vmatmul.mubr.f32.gmra.mxu0 %v2002
    %v2292 = vpop.f32.mrf.mxu0
    %v2293 = vadd.f32 0.0, %v2292
    %v2294 = vpop.f32.mrf.mxu0
    %2295 = vmatprep.mubr.f32.mxu0 0.0
    %2296 = vmatmul.mubr.f32.gmra.mxu0 %v2019
    %v2297 = vpop.f32.mrf.mxu0
    %v2298 = vadd.f32 0.0, %v2297
    %v2299 = vpop.f32.mrf.mxu0
    %2300 = vmatprep.mubr.f32.mxu0 0.0
    %2301 = vmatmul.mubr.f32.gmra.mxu0 %v2036
    %v2302 = vpop.f32.mrf.mxu0
    %v2303 = vadd.f32 0.0, %v2302
    %v2304 = vpop.f32.mrf.mxu0
    %2305 = vmatprep.mubr.f32.mxu0 0.0
    %2306 = vmatmul.mubr.f32.gmra.mxu0 %v2053
    %v2307 = vpop.f32.mrf.mxu0
    %v2308 = vadd.f32 0.0, %v2307
    %v2309 = vpop.f32.mrf.mxu0
    %2310 = vmatprep.mubr.f32.mxu0 0.0
    %2311 = vmatmul.mubr.f32.gmra.mxu0 %v2070
    %v2312 = vpop.f32.mrf.mxu0
    %v2313 = vadd.f32 0.0, %v2312
    %v2314 = vpop.f32.mrf.mxu0
    %2315 = vmatprep.mubr.f32.mxu0 0.0
    %2316 = vmatmul.mubr.f32.gmra.mxu0 %v2087
    %v2317 = vpop.f32.mrf.mxu0
    %v2318 = vadd.f32 0.0, %v2317
    %v2319 = vpop.f32.mrf.mxu0
    %2320 = vmatprep.mubr.f32.mxu0 0.0
    %2321 = vmatmul.mubr.f32.gmra.mxu0 %v2104
    %v2322 = vpop.f32.mrf.mxu0
    %v2323 = vadd.f32 0.0, %v2322
    %v2324 = vpop.f32.mrf.mxu0
    %2325 = vmatprep.mubr.f32.mxu0 0.0
    %2326 = vmatmul.mubr.f32.gmra.mxu0 %v2121
    %v2327 = vpop.f32.mrf.mxu0
    %v2328 = vadd.f32 0.0, %v2327
    %v2329 = vpop.f32.mrf.mxu0
    %2330 = vmatprep.mubr.f32.mxu0 0.0
    %2331 = vmatmul.mubr.f32.gmra.mxu0 %v2138
    %v2332 = vpop.f32.mrf.mxu0
    %v2333 = vadd.f32 0.0, %v2332
    %v2334 = vpop.f32.mrf.mxu0
    %2335 = vmatprep.mubr.f32.mxu0 0.0
    %2336 = vmatmul.mubr.f32.gmra.mxu0 %v2155
    %v2337 = vpop.f32.mrf.mxu0
    %v2338 = vadd.f32 0.0, %v2337
    %v2339 = vpop.f32.mrf.mxu0
    %2340 = vmatprep.mubr.f32.mxu0 0.0
    %2341 = vmatmul.mubr.f32.gmra.mxu0 %v2172
    %v2342 = vpop.f32.mrf.mxu0
    %v2343 = vadd.f32 0.0, %v2342
    %v2344 = vpop.f32.mrf.mxu0
    %2345 = vmatprep.mubr.f32.mxu0 0.0
    %2346 = vmatmul.mubr.f32.gmra.mxu0 %v2189
    %v2347 = vpop.f32.mrf.mxu0
    %v2348 = vadd.f32 0.0, %v2347
    %v2349 = vpop.f32.mrf.mxu0
    %2350 = vdwg.mxu0
    %v2351 = vadd.f32 %v1823, %v2273
    %v2352 = vadd.f32 %v1828, %v2278
    %v2353 = vadd.f32 %v1833, %v2283
    %v2354 = vadd.f32 %v1838, %v2288
    %v2355 = vadd.f32 %v1843, %v2293
    %v2356 = vadd.f32 %v1848, %v2298
    %v2357 = vadd.f32 %v1853, %v2303
    %v2358 = vadd.f32 %v1858, %v2308
    %v2359 = vadd.f32 %v1863, %v2313
    %v2360 = vadd.f32 %v1868, %v2318
    %v2361 = vadd.f32 %v1873, %v2323
    %v2362 = vadd.f32 %v1878, %v2328
    %v2363 = vadd.f32 %v1883, %v2333
    %v2364 = vadd.f32 %v1888, %v2338
    %v2365 = vadd.f32 %v1893, %v2343
    %v2366 = vadd.f32 %v1898, %v2348
    %s2367 = scalar_lea.vmem %s3, 384
    %v2368 = vld [vmem:[%s2367] sm:$0xff]
    %v2369 = vld [vmem:[%s2367 + $0x8] sm:$0xff]
    %v2370 = vld [vmem:[%s2367 + $0x10] sm:$0xff]
    %v2371 = vld [vmem:[%s2367 + $0x18] sm:$0xff]
    %v2372 = vld [vmem:[%s2367 + $0x20] sm:$0xff]
    %v2373 = vld [vmem:[%s2367 + $0x28] sm:$0xff]
    %v2374 = vld [vmem:[%s2367 + $0x30] sm:$0xff]
    %v2375 = vld [vmem:[%s2367 + $0x38] sm:$0xff]
    %v2376 = vld [vmem:[%s2367 + $0x40] sm:$0xff]
    %v2377 = vld [vmem:[%s2367 + $0x48] sm:$0xff]
    %v2378 = vld [vmem:[%s2367 + $0x50] sm:$0xff]
    %v2379 = vld [vmem:[%s2367 + $0x58] sm:$0xff]
    %v2380 = vld [vmem:[%s2367 + $0x60] sm:$0xff]
    %v2381 = vld [vmem:[%s2367 + $0x68] sm:$0xff]
    %v2382 = vld [vmem:[%s2367 + $0x70] sm:$0xff]
    %v2383 = vld [vmem:[%s2367 + $0x78] sm:$0xff]
    %v2384 = vcombine.low %v539, %v547
    %v2385 = vcombine.low %v546, %v548
    %v2387 = vunpack.c.l.s4 1983009808
    %v2388 = vunpack.c.0.s8 %v2387
    %v2389 = vlaneseq
    %v2390 = vshrl.u32 %v2389, 7
    %v2391 = vsub.s32 %v2388, %v2390
    %v2392 = vrot.slane %v2384, %v2391
    %v2394 = vunpack.c.l.s4 1983009808
    %v2395 = vunpack.c.0.s8 %v2394
    %v2396 = vlaneseq
    %v2397 = vshrl.u32 %v2396, 7
    %v2398 = vsub.s32 %v2395, %v2397
    %v2399 = vrot.slane %v2385, %v2398
    %v2400 = vcombine.low %v2392, %v2399
    %v2401 = vcombine.low %v750, %v752
    %v2402 = vcombine.low %v760, %v768
    %v2404 = vunpack.c.l.s4 1983009808
    %v2405 = vunpack.c.0.s8 %v2404
    %v2406 = vlaneseq
    %v2407 = vshrl.u32 %v2406, 7
    %v2408 = vsub.s32 %v2405, %v2407
    %v2409 = vrot.slane %v2401, %v2408
    %v2411 = vunpack.c.l.s4 1983009808
    %v2412 = vunpack.c.0.s8 %v2411
    %v2413 = vlaneseq
    %v2414 = vshrl.u32 %v2413, 7
    %v2415 = vsub.s32 %v2412, %v2414
    %v2416 = vrot.slane %v2402, %v2415
    %v2417 = vcombine.low %v2409, %v2416
    %2420 = vmatprep.subr.mxu0 0.0
    %2421 = vmatpush1.msra.mxu0 %v2383
    %2422 = vmatprep.subr.mxu0 0.0
    %2423 = vmatpush1.msra.mxu0 %v2382
    %2424 = vmatprep.subr.mxu0 0.0
    %2425 = vmatpush1.msra.mxu0 %v2381
    %2426 = vmatprep.subr.mxu0 0.0
    %2427 = vmatpush1.msra.mxu0 %v2380
    %2428 = vmatprep.subr.mxu0 0.0
    %2429 = vmatpush1.msra.mxu0 %v2379
    %2430 = vmatprep.subr.mxu0 0.0
    %2431 = vmatpush1.msra.mxu0 %v2378
    %2432 = vmatprep.subr.mxu0 0.0
    %2433 = vmatpush1.msra.mxu0 %v2377
    %2434 = vmatprep.subr.mxu0 0.0
    %2435 = vmatpush1.msra.mxu0 %v2376
    %2436 = vmatprep.subr.mxu0 0.0
    %2437 = vmatpush1.msra.mxu0 %v2375
    %2438 = vmatprep.subr.mxu0 0.0
    %2439 = vmatpush1.msra.mxu0 %v2374
    %2440 = vmatprep.subr.mxu0 0.0
    %2441 = vmatpush1.msra.mxu0 %v2373
    %2442 = vmatprep.subr.mxu0 0.0
    %2443 = vmatpush1.msra.mxu0 %v2372
    %2444 = vmatprep.subr.mxu0 0.0
    %2445 = vmatpush1.msra.mxu0 %v2371
    %2446 = vmatprep.subr.mxu0 0.0
    %2447 = vmatpush1.msra.mxu0 %v2370
    %2448 = vmatprep.subr.mxu0 0.0
    %2449 = vmatpush1.msra.mxu0 %v2369
    %2450 = vmatprep.subr.mxu0 0.0
    %2451 = vmatpush1.msra.mxu0 %v2368
    %2452 = vmatprep.subr.mxu0 0.0
    %2453 = vmatpush2.msra.mxu0 0.0
    %2454 = vmatprep.subr.mxu0 0.0
    %2455 = vmatpush2.msra.mxu0 0.0
    %2456 = vmatprep.subr.mxu0 0.0
    %2457 = vmatpush2.msra.mxu0 0.0
    %2458 = vmatprep.subr.mxu0 0.0
    %2459 = vmatpush2.msra.mxu0 0.0
    %2460 = vmatprep.subr.mxu0 0.0
    %2461 = vmatpush2.msra.mxu0 0.0
    %2462 = vmatprep.subr.mxu0 0.0
    %2463 = vmatpush2.msra.mxu0 0.0
    %2464 = vmatprep.subr.mxu0 0.0
    %2465 = vmatpush2.msra.mxu0 0.0
    %2466 = vmatprep.subr.mxu0 0.0
    %2467 = vmatpush2.msra.mxu0 0.0
    %2468 = vmatprep.subr.mxu0 0.0
    %2469 = vmatpush2.msra.mxu0 0.0
    %2470 = vmatprep.subr.mxu0 0.0
    %2471 = vmatpush2.msra.mxu0 0.0
    %2472 = vmatprep.subr.mxu0 0.0
    %2473 = vmatpush2.msra.mxu0 0.0
    %2474 = vmatprep.subr.mxu0 0.0
    %2475 = vmatpush2.msra.mxu0 0.0
    %2476 = vmatprep.subr.mxu0 0.0
    %2477 = vmatpush2.msra.mxu0 0.0
    %2478 = vmatprep.subr.mxu0 0.0
    %2479 = vmatpush2.msra.mxu0 0.0
    %2480 = vmatprep.subr.mxu0 0.0
    %2481 = vmatpush2.msra.mxu0 0.0
    %2482 = vmatprep.subr.mxu0 0.0
    %2483 = vmatpush2.msra.mxu0 0.0
    %2484 = vmatprep.mubr.f32.mxu0 0.0
    %2485 = vmatmul.mubr.f32.gmra.mxu0 %v1501
    %v2486 = vpop.f32.mrf.mxu0
    %v2487 = vadd.f32 0.0, %v2486
    %v2488 = vpop.f32.mrf.mxu0
    %2489 = vmatprep.mubr.f32.mxu0 0.0
    %2490 = vmatmul.mubr.f32.gmra.mxu0 %v1518
    %v2491 = vpop.f32.mrf.mxu0
    %v2492 = vadd.f32 0.0, %v2491
    %v2493 = vpop.f32.mrf.mxu0
    %2494 = vmatprep.mubr.f32.mxu0 0.0
    %2495 = vmatmul.mubr.f32.gmra.mxu0 %v1535
    %v2496 = vpop.f32.mrf.mxu0
    %v2497 = vadd.f32 0.0, %v2496
    %v2498 = vpop.f32.mrf.mxu0
    %2499 = vmatprep.mubr.f32.mxu0 0.0
    %2500 = vmatmul.mubr.f32.gmra.mxu0 %v1552
    %v2501 = vpop.f32.mrf.mxu0
    %v2502 = vadd.f32 0.0, %v2501
    %v2503 = vpop.f32.mrf.mxu0
    %2504 = vmatprep.mubr.f32.mxu0 0.0
    %2505 = vmatmul.mubr.f32.gmra.mxu0 %v1569
    %v2506 = vpop.f32.mrf.mxu0
    %v2507 = vadd.f32 0.0, %v2506
    %v2508 = vpop.f32.mrf.mxu0
    %2509 = vmatprep.mubr.f32.mxu0 0.0
    %2510 = vmatmul.mubr.f32.gmra.mxu0 %v1586
    %v2511 = vpop.f32.mrf.mxu0
    %v2512 = vadd.f32 0.0, %v2511
    %v2513 = vpop.f32.mrf.mxu0
    %2514 = vmatprep.mubr.f32.mxu0 0.0
    %2515 = vmatmul.mubr.f32.gmra.mxu0 %v1603
    %v2516 = vpop.f32.mrf.mxu0
    %v2517 = vadd.f32 0.0, %v2516
    %v2518 = vpop.f32.mrf.mxu0
    %2519 = vmatprep.mubr.f32.mxu0 0.0
    %2520 = vmatmul.mubr.f32.gmra.mxu0 %v2400
    %v2521 = vpop.f32.mrf.mxu0
    %v2522 = vadd.f32 0.0, %v2521
    %v2523 = vpop.f32.mrf.mxu0
    %2524 = vmatprep.mubr.f32.mxu0 0.0
    %2525 = vmatmul.mubr.f32.gmra.mxu0 %v1637
    %v2526 = vpop.f32.mrf.mxu0
    %v2527 = vadd.f32 0.0, %v2526
    %v2528 = vpop.f32.mrf.mxu0
    %2529 = vmatprep.mubr.f32.mxu0 0.0
    %2530 = vmatmul.mubr.f32.gmra.mxu0 %v1654
    %v2531 = vpop.f32.mrf.mxu0
    %v2532 = vadd.f32 0.0, %v2531
    %v2533 = vpop.f32.mrf.mxu0
    %2534 = vmatprep.mubr.f32.mxu0 0.0
    %2535 = vmatmul.mubr.f32.gmra.mxu0 %v1671
    %v2536 = vpop.f32.mrf.mxu0
    %v2537 = vadd.f32 0.0, %v2536
    %v2538 = vpop.f32.mrf.mxu0
    %2539 = vmatprep.mubr.f32.mxu0 0.0
    %2540 = vmatmul.mubr.f32.gmra.mxu0 %v1688
    %v2541 = vpop.f32.mrf.mxu0
    %v2542 = vadd.f32 0.0, %v2541
    %v2543 = vpop.f32.mrf.mxu0
    %2544 = vmatprep.mubr.f32.mxu0 0.0
    %2545 = vmatmul.mubr.f32.gmra.mxu0 %v1705
    %v2546 = vpop.f32.mrf.mxu0
    %v2547 = vadd.f32 0.0, %v2546
    %v2548 = vpop.f32.mrf.mxu0
    %2549 = vmatprep.mubr.f32.mxu0 0.0
    %2550 = vmatmul.mubr.f32.gmra.mxu0 %v1722
    %v2551 = vpop.f32.mrf.mxu0
    %v2552 = vadd.f32 0.0, %v2551
    %v2553 = vpop.f32.mrf.mxu0
    %2554 = vmatprep.mubr.f32.mxu0 0.0
    %2555 = vmatmul.mubr.f32.gmra.mxu0 %v1739
    %v2556 = vpop.f32.mrf.mxu0
    %v2557 = vadd.f32 0.0, %v2556
    %v2558 = vpop.f32.mrf.mxu0
    %2559 = vmatprep.mubr.f32.mxu0 0.0
    %2560 = vmatmul.mubr.f32.gmra.mxu0 %v2417
    %v2561 = vpop.f32.mrf.mxu0
    %v2562 = vadd.f32 0.0, %v2561
    %v2563 = vpop.f32.mrf.mxu0
    %2564 = vdwg.mxu0
    %v2565 = vadd.f32 %v2351, %v2487
    %v2566 = vadd.f32 %v2352, %v2492
    %v2567 = vadd.f32 %v2353, %v2497
    %v2568 = vadd.f32 %v2354, %v2502
    %v2569 = vadd.f32 %v2355, %v2507
    %v2570 = vadd.f32 %v2356, %v2512
    %v2571 = vadd.f32 %v2357, %v2517
    %v2572 = vadd.f32 %v2358, %v2522
    %v2573 = vadd.f32 %v2359, %v2527
    %v2574 = vadd.f32 %v2360, %v2532
    %v2575 = vadd.f32 %v2361, %v2537
    %v2576 = vadd.f32 %v2362, %v2542
    %v2577 = vadd.f32 %v2363, %v2547
    %v2578 = vadd.f32 %v2364, %v2552
    %v2579 = vadd.f32 %v2365, %v2557
    %v2580 = vadd.f32 %v2366, %v2562
    %v2581 = vrot.slane %v539, 7
    %v2582 = vrot.slane %v2581, 2
    %v2583 = vrot.slane %v547, 7
    %v2584 = vsel %vm809, %v2582, %v2583
    %v2585 = vrot.slane %v2583, 2
    %v2586 = vrot.slane %v546, 7
    %v2587 = vsel %vm809, %v2585, %v2586
    %v2588 = vrot.slane %v2586, 2
    %v2589 = vrot.slane %v548, 7
    %v2590 = vsel %vm809, %v2588, %v2589
    %v2591 = vrot.slane %v2589, 2
    %v2592 = vrot.slane %v556, 7
    %v2593 = vsel %vm809, %v2591, %v2592
    %v2594 = vrot.slane %v750, 7
    %v2595 = vrot.slane %v2594, 2
    %v2596 = vrot.slane %v752, 7
    %v2597 = vsel %vm809, %v2595, %v2596
    %v2598 = vrot.slane %v2596, 2
    %v2599 = vrot.slane %v760, 7
    %v2600 = vsel %vm809, %v2598, %v2599
    %v2601 = vrot.slane %v2599, 2
    %v2602 = vrot.slane %v768, 7
    %v2603 = vsel %vm809, %v2601, %v2602
    %v2604 = vrot.slane %v2602, 2
    %v2605 = vrot.slane %v767, 7
    %v2606 = vsel %vm809, %v2604, %v2605
    %s2607 = scalar_lea.vmem %s3, 512
    %v2608 = vld [vmem:[%s2607] sm:$0xff]
    %v2609 = vld [vmem:[%s2607 + $0x8] sm:$0xff]
    %v2610 = vld [vmem:[%s2607 + $0x10] sm:$0xff]
    %v2611 = vld [vmem:[%s2607 + $0x18] sm:$0xff]
    %v2612 = vld [vmem:[%s2607 + $0x20] sm:$0xff]
    %v2613 = vld [vmem:[%s2607 + $0x28] sm:$0xff]
    %v2614 = vld [vmem:[%s2607 + $0x30] sm:$0xff]
    %v2615 = vld [vmem:[%s2607 + $0x38] sm:$0xff]
    %v2616 = vld [vmem:[%s2607 + $0x40] sm:$0xff]
    %v2617 = vld [vmem:[%s2607 + $0x48] sm:$0xff]
    %v2618 = vld [vmem:[%s2607 + $0x50] sm:$0xff]
    %v2619 = vld [vmem:[%s2607 + $0x58] sm:$0xff]
    %v2620 = vld [vmem:[%s2607 + $0x60] sm:$0xff]
    %v2621 = vld [vmem:[%s2607 + $0x68] sm:$0xff]
    %v2622 = vld [vmem:[%s2607 + $0x70] sm:$0xff]
    %v2623 = vld [vmem:[%s2607 + $0x78] sm:$0xff]
    %v2624 = vcombine.low %v2584, %v2587
    %v2625 = vcombine.low %v2590, %v2593
    %v2627 = vunpack.c.l.s4 1983009808
    %v2628 = vunpack.c.0.s8 %v2627
    %v2629 = vlaneseq
    %v2630 = vshrl.u32 %v2629, 7
    %v2631 = vsub.s32 %v2628, %v2630
    %v2632 = vrot.slane %v2624, %v2631
    %v2634 = vunpack.c.l.s4 1983009808
    %v2635 = vunpack.c.0.s8 %v2634
    %v2636 = vlaneseq
    %v2637 = vshrl.u32 %v2636, 7
    %v2638 = vsub.s32 %v2635, %v2637
    %v2639 = vrot.slane %v2625, %v2638
    %v2640 = vcombine.low %v2632, %v2639
    %v2641 = vcombine.low %v2597, %v2600
    %v2642 = vcombine.low %v2603, %v2606
    %v2644 = vunpack.c.l.s4 1983009808
    %v2645 = vunpack.c.0.s8 %v2644
    %v2646 = vlaneseq
    %v2647 = vshrl.u32 %v2646, 7
    %v2648 = vsub.s32 %v2645, %v2647
    %v2649 = vrot.slane %v2641, %v2648
    %v2651 = vunpack.c.l.s4 1983009808
    %v2652 = vunpack.c.0.s8 %v2651
    %v2653 = vlaneseq
    %v2654 = vshrl.u32 %v2653, 7
    %v2655 = vsub.s32 %v2652, %v2654
    %v2656 = vrot.slane %v2642, %v2655
    %v2657 = vcombine.low %v2649, %v2656
    %2660 = vmatprep.subr.mxu0 0.0
    %2661 = vmatpush1.msra.mxu0 %v2623
    %2662 = vmatprep.subr.mxu0 0.0
    %2663 = vmatpush1.msra.mxu0 %v2622
    %2664 = vmatprep.subr.mxu0 0.0
    %2665 = vmatpush1.msra.mxu0 %v2621
    %2666 = vmatprep.subr.mxu0 0.0
    %2667 = vmatpush1.msra.mxu0 %v2620
    %2668 = vmatprep.subr.mxu0 0.0
    %2669 = vmatpush1.msra.mxu0 %v2619
    %2670 = vmatprep.subr.mxu0 0.0
    %2671 = vmatpush1.msra.mxu0 %v2618
    %2672 = vmatprep.subr.mxu0 0.0
    %2673 = vmatpush1.msra.mxu0 %v2617
    %2674 = vmatprep.subr.mxu0 0.0
    %2675 = vmatpush1.msra.mxu0 %v2616
    %2676 = vmatprep.subr.mxu0 0.0
    %2677 = vmatpush1.msra.mxu0 %v2615
    %2678 = vmatprep.subr.mxu0 0.0
    %2679 = vmatpush1.msra.mxu0 %v2614
    %2680 = vmatprep.subr.mxu0 0.0
    %2681 = vmatpush1.msra.mxu0 %v2613
    %2682 = vmatprep.subr.mxu0 0.0
    %2683 = vmatpush1.msra.mxu0 %v2612
    %2684 = vmatprep.subr.mxu0 0.0
    %2685 = vmatpush1.msra.mxu0 %v2611
    %2686 = vmatprep.subr.mxu0 0.0
    %2687 = vmatpush1.msra.mxu0 %v2610
    %2688 = vmatprep.subr.mxu0 0.0
    %2689 = vmatpush1.msra.mxu0 %v2609
    %2690 = vmatprep.subr.mxu0 0.0
    %2691 = vmatpush1.msra.mxu0 %v2608
    %2692 = vmatprep.subr.mxu0 0.0
    %2693 = vmatpush2.msra.mxu0 0.0
    %2694 = vmatprep.subr.mxu0 0.0
    %2695 = vmatpush2.msra.mxu0 0.0
    %2696 = vmatprep.subr.mxu0 0.0
    %2697 = vmatpush2.msra.mxu0 0.0
    %2698 = vmatprep.subr.mxu0 0.0
    %2699 = vmatpush2.msra.mxu0 0.0
    %2700 = vmatprep.subr.mxu0 0.0
    %2701 = vmatpush2.msra.mxu0 0.0
    %2702 = vmatprep.subr.mxu0 0.0
    %2703 = vmatpush2.msra.mxu0 0.0
    %2704 = vmatprep.subr.mxu0 0.0
    %2705 = vmatpush2.msra.mxu0 0.0
    %2706 = vmatprep.subr.mxu0 0.0
    %2707 = vmatpush2.msra.mxu0 0.0
    %2708 = vmatprep.subr.mxu0 0.0
    %2709 = vmatpush2.msra.mxu0 0.0
    %2710 = vmatprep.subr.mxu0 0.0
    %2711 = vmatpush2.msra.mxu0 0.0
    %2712 = vmatprep.subr.mxu0 0.0
    %2713 = vmatpush2.msra.mxu0 0.0
    %2714 = vmatprep.subr.mxu0 0.0
    %2715 = vmatpush2.msra.mxu0 0.0
    %2716 = vmatprep.subr.mxu0 0.0
    %2717 = vmatpush2.msra.mxu0 0.0
    %2718 = vmatprep.subr.mxu0 0.0
    %2719 = vmatpush2.msra.mxu0 0.0
    %2720 = vmatprep.subr.mxu0 0.0
    %2721 = vmatpush2.msra.mxu0 0.0
    %2722 = vmatprep.subr.mxu0 0.0
    %2723 = vmatpush2.msra.mxu0 0.0
    %2724 = vmatprep.mubr.f32.mxu0 0.0
    %2725 = vmatmul.mubr.f32.gmra.mxu0 %v1068
    %v2726 = vpop.f32.mrf.mxu0
    %v2727 = vadd.f32 0.0, %v2726
    %v2728 = vpop.f32.mrf.mxu0
    %2729 = vmatprep.mubr.f32.mxu0 0.0
    %2730 = vmatmul.mubr.f32.gmra.mxu0 %v1085
    %v2731 = vpop.f32.mrf.mxu0
    %v2732 = vadd.f32 0.0, %v2731
    %v2733 = vpop.f32.mrf.mxu0
    %2734 = vmatprep.mubr.f32.mxu0 0.0
    %2735 = vmatmul.mubr.f32.gmra.mxu0 %v1102
    %v2736 = vpop.f32.mrf.mxu0
    %v2737 = vadd.f32 0.0, %v2736
    %v2738 = vpop.f32.mrf.mxu0
    %2739 = vmatprep.mubr.f32.mxu0 0.0
    %2740 = vmatmul.mubr.f32.gmra.mxu0 %v1119
    %v2741 = vpop.f32.mrf.mxu0
    %v2742 = vadd.f32 0.0, %v2741
    %v2743 = vpop.f32.mrf.mxu0
    %2744 = vmatprep.mubr.f32.mxu0 0.0
    %2745 = vmatmul.mubr.f32.gmra.mxu0 %v1136
    %v2746 = vpop.f32.mrf.mxu0
    %v2747 = vadd.f32 0.0, %v2746
    %v2748 = vpop.f32.mrf.mxu0
    %2749 = vmatprep.mubr.f32.mxu0 0.0
    %2750 = vmatmul.mubr.f32.gmra.mxu0 %v1153
    %v2751 = vpop.f32.mrf.mxu0
    %v2752 = vadd.f32 0.0, %v2751
    %v2753 = vpop.f32.mrf.mxu0
    %2754 = vmatprep.mubr.f32.mxu0 0.0
    %2755 = vmatmul.mubr.f32.gmra.mxu0 %v1170
    %v2756 = vpop.f32.mrf.mxu0
    %v2757 = vadd.f32 0.0, %v2756
    %v2758 = vpop.f32.mrf.mxu0
    %2759 = vmatprep.mubr.f32.mxu0 0.0
    %2760 = vmatmul.mubr.f32.gmra.mxu0 %v2640
    %v2761 = vpop.f32.mrf.mxu0
    %v2762 = vadd.f32 0.0, %v2761
    %v2763 = vpop.f32.mrf.mxu0
    %2764 = vmatprep.mubr.f32.mxu0 0.0
    %2765 = vmatmul.mubr.f32.gmra.mxu0 %v1204
    %v2766 = vpop.f32.mrf.mxu0
    %v2767 = vadd.f32 0.0, %v2766
    %v2768 = vpop.f32.mrf.mxu0
    %2769 = vmatprep.mubr.f32.mxu0 0.0
    %2770 = vmatmul.mubr.f32.gmra.mxu0 %v1221
    %v2771 = vpop.f32.mrf.mxu0
    %v2772 = vadd.f32 0.0, %v2771
    %v2773 = vpop.f32.mrf.mxu0
    %2774 = vmatprep.mubr.f32.mxu0 0.0
    %2775 = vmatmul.mubr.f32.gmra.mxu0 %v1238
    %v2776 = vpop.f32.mrf.mxu0
    %v2777 = vadd.f32 0.0, %v2776
    %v2778 = vpop.f32.mrf.mxu0
    %2779 = vmatprep.mubr.f32.mxu0 0.0
    %2780 = vmatmul.mubr.f32.gmra.mxu0 %v1255
    %v2781 = vpop.f32.mrf.mxu0
    %v2782 = vadd.f32 0.0, %v2781
    %v2783 = vpop.f32.mrf.mxu0
    %2784 = vmatprep.mubr.f32.mxu0 0.0
    %2785 = vmatmul.mubr.f32.gmra.mxu0 %v1272
    %v2786 = vpop.f32.mrf.mxu0
    %v2787 = vadd.f32 0.0, %v2786
    %v2788 = vpop.f32.mrf.mxu0
    %2789 = vmatprep.mubr.f32.mxu0 0.0
    %2790 = vmatmul.mubr.f32.gmra.mxu0 %v1289
    %v2791 = vpop.f32.mrf.mxu0
    %v2792 = vadd.f32 0.0, %v2791
    %v2793 = vpop.f32.mrf.mxu0
    %2794 = vmatprep.mubr.f32.mxu0 0.0
    %2795 = vmatmul.mubr.f32.gmra.mxu0 %v1306
    %v2796 = vpop.f32.mrf.mxu0
    %v2797 = vadd.f32 0.0, %v2796
    %v2798 = vpop.f32.mrf.mxu0
    %2799 = vmatprep.mubr.f32.mxu0 0.0
    %2800 = vmatmul.mubr.f32.gmra.mxu0 %v2657
    %v2801 = vpop.f32.mrf.mxu0
    %v2802 = vadd.f32 0.0, %v2801
    %v2803 = vpop.f32.mrf.mxu0
    %2804 = vdwg.mxu0
    %v2805 = vadd.f32 %v2565, %v2727
    %v2806 = vadd.f32 %v2566, %v2732
    %v2807 = vadd.f32 %v2567, %v2737
    %v2808 = vadd.f32 %v2568, %v2742
    %v2809 = vadd.f32 %v2569, %v2747
    %v2810 = vadd.f32 %v2570, %v2752
    %v2811 = vadd.f32 %v2571, %v2757
    %v2812 = vadd.f32 %v2572, %v2762
    %v2813 = vadd.f32 %v2573, %v2767
    %v2814 = vadd.f32 %v2574, %v2772
    %v2815 = vadd.f32 %v2575, %v2777
    %v2816 = vadd.f32 %v2576, %v2782
    %v2817 = vadd.f32 %v2577, %v2787
    %v2818 = vadd.f32 %v2578, %v2792
    %v2819 = vadd.f32 %v2579, %v2797
    %v2820 = vadd.f32 %v2580, %v2802
    %s2821 = scalar_lea.vmem %s3, 640
    %v2822 = vld [vmem:[%s2821] sm:$0xff]
    %v2823 = vld [vmem:[%s2821 + $0x8] sm:$0xff]
    %v2824 = vld [vmem:[%s2821 + $0x10] sm:$0xff]
    %v2825 = vld [vmem:[%s2821 + $0x18] sm:$0xff]
    %v2826 = vld [vmem:[%s2821 + $0x20] sm:$0xff]
    %v2827 = vld [vmem:[%s2821 + $0x28] sm:$0xff]
    %v2828 = vld [vmem:[%s2821 + $0x30] sm:$0xff]
    %v2829 = vld [vmem:[%s2821 + $0x38] sm:$0xff]
    %v2830 = vld [vmem:[%s2821 + $0x40] sm:$0xff]
    %v2831 = vld [vmem:[%s2821 + $0x48] sm:$0xff]
    %v2832 = vld [vmem:[%s2821 + $0x50] sm:$0xff]
    %v2833 = vld [vmem:[%s2821 + $0x58] sm:$0xff]
    %v2834 = vld [vmem:[%s2821 + $0x60] sm:$0xff]
    %v2835 = vld [vmem:[%s2821 + $0x68] sm:$0xff]
    %v2836 = vld [vmem:[%s2821 + $0x70] sm:$0xff]
    %v2837 = vld [vmem:[%s2821 + $0x78] sm:$0xff]
    %v2838 = vcombine.low %v547, %v546
    %v2839 = vcombine.low %v548, %v556
    %v2841 = vunpack.c.l.s4 1983009808
    %v2842 = vunpack.c.0.s8 %v2841
    %v2843 = vlaneseq
    %v2844 = vshrl.u32 %v2843, 7
    %v2845 = vsub.s32 %v2842, %v2844
    %v2846 = vrot.slane %v2838, %v2845
    %v2848 = vunpack.c.l.s4 1983009808
    %v2849 = vunpack.c.0.s8 %v2848
    %v2850 = vlaneseq
    %v2851 = vshrl.u32 %v2850, 7
    %v2852 = vsub.s32 %v2849, %v2851
    %v2853 = vrot.slane %v2839, %v2852
    %v2854 = vcombine.low %v2846, %v2853
    %v2855 = vcombine.low %v752, %v760
    %v2856 = vcombine.low %v768, %v767
    %v2858 = vunpack.c.l.s4 1983009808
    %v2859 = vunpack.c.0.s8 %v2858
    %v2860 = vlaneseq
    %v2861 = vshrl.u32 %v2860, 7
    %v2862 = vsub.s32 %v2859, %v2861
    %v2863 = vrot.slane %v2855, %v2862
    %v2865 = vunpack.c.l.s4 1983009808
    %v2866 = vunpack.c.0.s8 %v2865
    %v2867 = vlaneseq
    %v2868 = vshrl.u32 %v2867, 7
    %v2869 = vsub.s32 %v2866, %v2868
    %v2870 = vrot.slane %v2856, %v2869
    %v2871 = vcombine.low %v2863, %v2870
    %2874 = vmatprep.subr.mxu0 0.0
    %2875 = vmatpush1.msra.mxu0 %v2837
    %2876 = vmatprep.subr.mxu0 0.0
    %2877 = vmatpush1.msra.mxu0 %v2836
    %2878 = vmatprep.subr.mxu0 0.0
    %2879 = vmatpush1.msra.mxu0 %v2835
    %2880 = vmatprep.subr.mxu0 0.0
    %2881 = vmatpush1.msra.mxu0 %v2834
    %2882 = vmatprep.subr.mxu0 0.0
    %2883 = vmatpush1.msra.mxu0 %v2833
    %2884 = vmatprep.subr.mxu0 0.0
    %2885 = vmatpush1.msra.mxu0 %v2832
    %2886 = vmatprep.subr.mxu0 0.0
    %2887 = vmatpush1.msra.mxu0 %v2831
    %2888 = vmatprep.subr.mxu0 0.0
    %2889 = vmatpush1.msra.mxu0 %v2830
    %2890 = vmatprep.subr.mxu0 0.0
    %2891 = vmatpush1.msra.mxu0 %v2829
    %2892 = vmatprep.subr.mxu0 0.0
    %2893 = vmatpush1.msra.mxu0 %v2828
    %2894 = vmatprep.subr.mxu0 0.0
    %2895 = vmatpush1.msra.mxu0 %v2827
    %2896 = vmatprep.subr.mxu0 0.0
    %2897 = vmatpush1.msra.mxu0 %v2826
    %2898 = vmatprep.subr.mxu0 0.0
    %2899 = vmatpush1.msra.mxu0 %v2825
    %2900 = vmatprep.subr.mxu0 0.0
    %2901 = vmatpush1.msra.mxu0 %v2824
    %2902 = vmatprep.subr.mxu0 0.0
    %2903 = vmatpush1.msra.mxu0 %v2823
    %2904 = vmatprep.subr.mxu0 0.0
    %2905 = vmatpush1.msra.mxu0 %v2822
    %2906 = vmatprep.subr.mxu0 0.0
    %2907 = vmatpush2.msra.mxu0 0.0
    %2908 = vmatprep.subr.mxu0 0.0
    %2909 = vmatpush2.msra.mxu0 0.0
    %2910 = vmatprep.subr.mxu0 0.0
    %2911 = vmatpush2.msra.mxu0 0.0
    %2912 = vmatprep.subr.mxu0 0.0
    %2913 = vmatpush2.msra.mxu0 0.0
    %2914 = vmatprep.subr.mxu0 0.0
    %2915 = vmatpush2.msra.mxu0 0.0
    %2916 = vmatprep.subr.mxu0 0.0
    %2917 = vmatpush2.msra.mxu0 0.0
    %2918 = vmatprep.subr.mxu0 0.0
    %2919 = vmatpush2.msra.mxu0 0.0
    %2920 = vmatprep.subr.mxu0 0.0
    %2921 = vmatpush2.msra.mxu0 0.0
    %2922 = vmatprep.subr.mxu0 0.0
    %2923 = vmatpush2.msra.mxu0 0.0
    %2924 = vmatprep.subr.mxu0 0.0
    %2925 = vmatpush2.msra.mxu0 0.0
    %2926 = vmatprep.subr.mxu0 0.0
    %2927 = vmatpush2.msra.mxu0 0.0
    %2928 = vmatprep.subr.mxu0 0.0
    %2929 = vmatpush2.msra.mxu0 0.0
    %2930 = vmatprep.subr.mxu0 0.0
    %2931 = vmatpush2.msra.mxu0 0.0
    %2932 = vmatprep.subr.mxu0 0.0
    %2933 = vmatpush2.msra.mxu0 0.0
    %2934 = vmatprep.subr.mxu0 0.0
    %2935 = vmatpush2.msra.mxu0 0.0
    %2936 = vmatprep.subr.mxu0 0.0
    %2937 = vmatpush2.msra.mxu0 0.0
    %2938 = vmatprep.mubr.f32.mxu0 0.0
    %2939 = vmatmul.mubr.f32.gmra.mxu0 %v1951
    %v2940 = vpop.f32.mrf.mxu0
    %v2941 = vadd.f32 0.0, %v2940
    %v2942 = vpop.f32.mrf.mxu0
    %2943 = vmatprep.mubr.f32.mxu0 0.0
    %2944 = vmatmul.mubr.f32.gmra.mxu0 %v1968
    %v2945 = vpop.f32.mrf.mxu0
    %v2946 = vadd.f32 0.0, %v2945
    %v2947 = vpop.f32.mrf.mxu0
    %2948 = vmatprep.mubr.f32.mxu0 0.0
    %2949 = vmatmul.mubr.f32.gmra.mxu0 %v1985
    %v2950 = vpop.f32.mrf.mxu0
    %v2951 = vadd.f32 0.0, %v2950
    %v2952 = vpop.f32.mrf.mxu0
    %2953 = vmatprep.mubr.f32.mxu0 0.0
    %2954 = vmatmul.mubr.f32.gmra.mxu0 %v2002
    %v2955 = vpop.f32.mrf.mxu0
    %v2956 = vadd.f32 0.0, %v2955
    %v2957 = vpop.f32.mrf.mxu0
    %2958 = vmatprep.mubr.f32.mxu0 0.0
    %2959 = vmatmul.mubr.f32.gmra.mxu0 %v2019
    %v2960 = vpop.f32.mrf.mxu0
    %v2961 = vadd.f32 0.0, %v2960
    %v2962 = vpop.f32.mrf.mxu0
    %2963 = vmatprep.mubr.f32.mxu0 0.0
    %2964 = vmatmul.mubr.f32.gmra.mxu0 %v2036
    %v2965 = vpop.f32.mrf.mxu0
    %v2966 = vadd.f32 0.0, %v2965
    %v2967 = vpop.f32.mrf.mxu0
    %2968 = vmatprep.mubr.f32.mxu0 0.0
    %2969 = vmatmul.mubr.f32.gmra.mxu0 %v2053
    %v2970 = vpop.f32.mrf.mxu0
    %v2971 = vadd.f32 0.0, %v2970
    %v2972 = vpop.f32.mrf.mxu0
    %2973 = vmatprep.mubr.f32.mxu0 0.0
    %2974 = vmatmul.mubr.f32.gmra.mxu0 %v2854
    %v2975 = vpop.f32.mrf.mxu0
    %v2976 = vadd.f32 0.0, %v2975
    %v2977 = vpop.f32.mrf.mxu0
    %2978 = vmatprep.mubr.f32.mxu0 0.0
    %2979 = vmatmul.mubr.f32.gmra.mxu0 %v2087
    %v2980 = vpop.f32.mrf.mxu0
    %v2981 = vadd.f32 0.0, %v2980
    %v2982 = vpop.f32.mrf.mxu0
    %2983 = vmatprep.mubr.f32.mxu0 0.0
    %2984 = vmatmul.mubr.f32.gmra.mxu0 %v2104
    %v2985 = vpop.f32.mrf.mxu0
    %v2986 = vadd.f32 0.0, %v2985
    %v2987 = vpop.f32.mrf.mxu0
    %2988 = vmatprep.mubr.f32.mxu0 0.0
    %2989 = vmatmul.mubr.f32.gmra.mxu0 %v2121
    %v2990 = vpop.f32.mrf.mxu0
    %v2991 = vadd.f32 0.0, %v2990
    %v2992 = vpop.f32.mrf.mxu0
    %2993 = vmatprep.mubr.f32.mxu0 0.0
    %2994 = vmatmul.mubr.f32.gmra.mxu0 %v2138
    %v2995 = vpop.f32.mrf.mxu0
    %v2996 = vadd.f32 0.0, %v2995
    %v2997 = vpop.f32.mrf.mxu0
    %2998 = vmatprep.mubr.f32.mxu0 0.0
    %2999 = vmatmul.mubr.f32.gmra.mxu0 %v2155
    %v3000 = vpop.f32.mrf.mxu0
    %v3001 = vadd.f32 0.0, %v3000
    %v3002 = vpop.f32.mrf.mxu0
    %3003 = vmatprep.mubr.f32.mxu0 0.0
    %3004 = vmatmul.mubr.f32.gmra.mxu0 %v2172
    %v3005 = vpop.f32.mrf.mxu0
    %v3006 = vadd.f32 0.0, %v3005
    %v3007 = vpop.f32.mrf.mxu0
    %3008 = vmatprep.mubr.f32.mxu0 0.0
    %3009 = vmatmul.mubr.f32.gmra.mxu0 %v2189
    %v3010 = vpop.f32.mrf.mxu0
    %v3011 = vadd.f32 0.0, %v3010
    %v3012 = vpop.f32.mrf.mxu0
    %3013 = vmatprep.mubr.f32.mxu0 0.0
    %3014 = vmatmul.mubr.f32.gmra.mxu0 %v2871
    %v3015 = vpop.f32.mrf.mxu0
    %v3016 = vadd.f32 0.0, %v3015
    %v3017 = vpop.f32.mrf.mxu0
    %3018 = vdwg.mxu0
    %v3019 = vadd.f32 %v2805, %v2941
    %v3020 = vadd.f32 %v2806, %v2946
    %v3021 = vadd.f32 %v2807, %v2951
    %v3022 = vadd.f32 %v2808, %v2956
    %v3023 = vadd.f32 %v2809, %v2961
    %v3024 = vadd.f32 %v2810, %v2966
    %v3025 = vadd.f32 %v2811, %v2971
    %v3026 = vadd.f32 %v2812, %v2976
    %v3027 = vadd.f32 %v2813, %v2981
    %v3028 = vadd.f32 %v2814, %v2986
    %v3029 = vadd.f32 %v2815, %v2991
    %v3030 = vadd.f32 %v2816, %v2996
    %v3031 = vadd.f32 %v2817, %v3001
    %v3032 = vadd.f32 %v2818, %v3006
    %v3033 = vadd.f32 %v2819, %v3011
    %v3034 = vadd.f32 %v2820, %v3016
    %s3035 = scalar_lea.vmem %s3, 768
    %v3036 = vld [vmem:[%s3035] sm:$0xff]
    %v3037 = vld [vmem:[%s3035 + $0x8] sm:$0xff]
    %v3038 = vld [vmem:[%s3035 + $0x10] sm:$0xff]
    %v3039 = vld [vmem:[%s3035 + $0x18] sm:$0xff]
    %v3040 = vld [vmem:[%s3035 + $0x20] sm:$0xff]
    %v3041 = vld [vmem:[%s3035 + $0x28] sm:$0xff]
    %v3042 = vld [vmem:[%s3035 + $0x30] sm:$0xff]
    %v3043 = vld [vmem:[%s3035 + $0x38] sm:$0xff]
    %v3044 = vld [vmem:[%s3035 + $0x40] sm:$0xff]
    %v3045 = vld [vmem:[%s3035 + $0x48] sm:$0xff]
    %v3046 = vld [vmem:[%s3035 + $0x50] sm:$0xff]
    %v3047 = vld [vmem:[%s3035 + $0x58] sm:$0xff]
    %v3048 = vld [vmem:[%s3035 + $0x60] sm:$0xff]
    %v3049 = vld [vmem:[%s3035 + $0x68] sm:$0xff]
    %v3050 = vld [vmem:[%s3035 + $0x70] sm:$0xff]
    %v3051 = vld [vmem:[%s3035 + $0x78] sm:$0xff]
    %v3052 = vcombine.low %v564, %v563
    %v3053 = vcombine.low %v565, %v573
    %v3055 = vunpack.c.l.s4 1983009808
    %v3056 = vunpack.c.0.s8 %v3055
    %v3057 = vlaneseq
    %v3058 = vshrl.u32 %v3057, 7
    %v3059 = vsub.s32 %v3056, %v3058
    %v3060 = vrot.slane %v3052, %v3059
    %v3062 = vunpack.c.l.s4 1983009808
    %v3063 = vunpack.c.0.s8 %v3062
    %v3064 = vlaneseq
    %v3065 = vshrl.u32 %v3064, 7
    %v3066 = vsub.s32 %v3063, %v3065
    %v3067 = vrot.slane %v3053, %v3066
    %v3068 = vcombine.low %v3060, %v3067
    %v3069 = vcombine.low %v769, %v777
    %v3070 = vcombine.low %v785, %v784
    %v3072 = vunpack.c.l.s4 1983009808
    %v3073 = vunpack.c.0.s8 %v3072
    %v3074 = vlaneseq
    %v3075 = vshrl.u32 %v3074, 7
    %v3076 = vsub.s32 %v3073, %v3075
    %v3077 = vrot.slane %v3069, %v3076
    %v3079 = vunpack.c.l.s4 1983009808
    %v3080 = vunpack.c.0.s8 %v3079
    %v3081 = vlaneseq
    %v3082 = vshrl.u32 %v3081, 7
    %v3083 = vsub.s32 %v3080, %v3082
    %v3084 = vrot.slane %v3070, %v3083
    %v3085 = vcombine.low %v3077, %v3084
    %3088 = vmatprep.subr.mxu0 0.0
    %3089 = vmatpush1.msra.mxu0 %v3051
    %3090 = vmatprep.subr.mxu0 0.0
    %3091 = vmatpush1.msra.mxu0 %v3050
    %3092 = vmatprep.subr.mxu0 0.0
    %3093 = vmatpush1.msra.mxu0 %v3049
    %3094 = vmatprep.subr.mxu0 0.0
    %3095 = vmatpush1.msra.mxu0 %v3048
    %3096 = vmatprep.subr.mxu0 0.0
    %3097 = vmatpush1.msra.mxu0 %v3047
    %3098 = vmatprep.subr.mxu0 0.0
    %3099 = vmatpush1.msra.mxu0 %v3046
    %3100 = vmatprep.subr.mxu0 0.0
    %3101 = vmatpush1.msra.mxu0 %v3045
    %3102 = vmatprep.subr.mxu0 0.0
    %3103 = vmatpush1.msra.mxu0 %v3044
    %3104 = vmatprep.subr.mxu0 0.0
    %3105 = vmatpush1.msra.mxu0 %v3043
    %3106 = vmatprep.subr.mxu0 0.0
    %3107 = vmatpush1.msra.mxu0 %v3042
    %3108 = vmatprep.subr.mxu0 0.0
    %3109 = vmatpush1.msra.mxu0 %v3041
    %3110 = vmatprep.subr.mxu0 0.0
    %3111 = vmatpush1.msra.mxu0 %v3040
    %3112 = vmatprep.subr.mxu0 0.0
    %3113 = vmatpush1.msra.mxu0 %v3039
    %3114 = vmatprep.subr.mxu0 0.0
    %3115 = vmatpush1.msra.mxu0 %v3038
    %3116 = vmatprep.subr.mxu0 0.0
    %3117 = vmatpush1.msra.mxu0 %v3037
    %3118 = vmatprep.subr.mxu0 0.0
    %3119 = vmatpush1.msra.mxu0 %v3036
    %3120 = vmatprep.subr.mxu0 0.0
    %3121 = vmatpush2.msra.mxu0 0.0
    %3122 = vmatprep.subr.mxu0 0.0
    %3123 = vmatpush2.msra.mxu0 0.0
    %3124 = vmatprep.subr.mxu0 0.0
    %3125 = vmatpush2.msra.mxu0 0.0
    %3126 = vmatprep.subr.mxu0 0.0
    %3127 = vmatpush2.msra.mxu0 0.0
    %3128 = vmatprep.subr.mxu0 0.0
    %3129 = vmatpush2.msra.mxu0 0.0
    %3130 = vmatprep.subr.mxu0 0.0
    %3131 = vmatpush2.msra.mxu0 0.0
    %3132 = vmatprep.subr.mxu0 0.0
    %3133 = vmatpush2.msra.mxu0 0.0
    %3134 = vmatprep.subr.mxu0 0.0
    %3135 = vmatpush2.msra.mxu0 0.0
    %3136 = vmatprep.subr.mxu0 0.0
    %3137 = vmatpush2.msra.mxu0 0.0
    %3138 = vmatprep.subr.mxu0 0.0
    %3139 = vmatpush2.msra.mxu0 0.0
    %3140 = vmatprep.subr.mxu0 0.0
    %3141 = vmatpush2.msra.mxu0 0.0
    %3142 = vmatprep.subr.mxu0 0.0
    %3143 = vmatpush2.msra.mxu0 0.0
    %3144 = vmatprep.subr.mxu0 0.0
    %3145 = vmatpush2.msra.mxu0 0.0
    %3146 = vmatprep.subr.mxu0 0.0
    %3147 = vmatpush2.msra.mxu0 0.0
    %3148 = vmatprep.subr.mxu0 0.0
    %3149 = vmatpush2.msra.mxu0 0.0
    %3150 = vmatprep.subr.mxu0 0.0
    %3151 = vmatpush2.msra.mxu0 0.0
    %3152 = vmatprep.mubr.f32.mxu0 0.0
    %3153 = vmatmul.mubr.f32.gmra.mxu0 %v1518
    %v3154 = vpop.f32.mrf.mxu0
    %v3155 = vadd.f32 0.0, %v3154
    %v3156 = vpop.f32.mrf.mxu0
    %3157 = vmatprep.mubr.f32.mxu0 0.0
    %3158 = vmatmul.mubr.f32.gmra.mxu0 %v1535
    %v3159 = vpop.f32.mrf.mxu0
    %v3160 = vadd.f32 0.0, %v3159
    %v3161 = vpop.f32.mrf.mxu0
    %3162 = vmatprep.mubr.f32.mxu0 0.0
    %3163 = vmatmul.mubr.f32.gmra.mxu0 %v1552
    %v3164 = vpop.f32.mrf.mxu0
    %v3165 = vadd.f32 0.0, %v3164
    %v3166 = vpop.f32.mrf.mxu0
    %3167 = vmatprep.mubr.f32.mxu0 0.0
    %3168 = vmatmul.mubr.f32.gmra.mxu0 %v1569
    %v3169 = vpop.f32.mrf.mxu0
    %v3170 = vadd.f32 0.0, %v3169
    %v3171 = vpop.f32.mrf.mxu0
    %3172 = vmatprep.mubr.f32.mxu0 0.0
    %3173 = vmatmul.mubr.f32.gmra.mxu0 %v1586
    %v3174 = vpop.f32.mrf.mxu0
    %v3175 = vadd.f32 0.0, %v3174
    %v3176 = vpop.f32.mrf.mxu0
    %3177 = vmatprep.mubr.f32.mxu0 0.0
    %3178 = vmatmul.mubr.f32.gmra.mxu0 %v1603
    %v3179 = vpop.f32.mrf.mxu0
    %v3180 = vadd.f32 0.0, %v3179
    %v3181 = vpop.f32.mrf.mxu0
    %3182 = vmatprep.mubr.f32.mxu0 0.0
    %3183 = vmatmul.mubr.f32.gmra.mxu0 %v2400
    %v3184 = vpop.f32.mrf.mxu0
    %v3185 = vadd.f32 0.0, %v3184
    %v3186 = vpop.f32.mrf.mxu0
    %3187 = vmatprep.mubr.f32.mxu0 0.0
    %3188 = vmatmul.mubr.f32.gmra.mxu0 %v3068
    %v3189 = vpop.f32.mrf.mxu0
    %v3190 = vadd.f32 0.0, %v3189
    %v3191 = vpop.f32.mrf.mxu0
    %3192 = vmatprep.mubr.f32.mxu0 0.0
    %3193 = vmatmul.mubr.f32.gmra.mxu0 %v1654
    %v3194 = vpop.f32.mrf.mxu0
    %v3195 = vadd.f32 0.0, %v3194
    %v3196 = vpop.f32.mrf.mxu0
    %3197 = vmatprep.mubr.f32.mxu0 0.0
    %3198 = vmatmul.mubr.f32.gmra.mxu0 %v1671
    %v3199 = vpop.f32.mrf.mxu0
    %v3200 = vadd.f32 0.0, %v3199
    %v3201 = vpop.f32.mrf.mxu0
    %3202 = vmatprep.mubr.f32.mxu0 0.0
    %3203 = vmatmul.mubr.f32.gmra.mxu0 %v1688
    %v3204 = vpop.f32.mrf.mxu0
    %v3205 = vadd.f32 0.0, %v3204
    %v3206 = vpop.f32.mrf.mxu0
    %3207 = vmatprep.mubr.f32.mxu0 0.0
    %3208 = vmatmul.mubr.f32.gmra.mxu0 %v1705
    %v3209 = vpop.f32.mrf.mxu0
    %v3210 = vadd.f32 0.0, %v3209
    %v3211 = vpop.f32.mrf.mxu0
    %3212 = vmatprep.mubr.f32.mxu0 0.0
    %3213 = vmatmul.mubr.f32.gmra.mxu0 %v1722
    %v3214 = vpop.f32.mrf.mxu0
    %v3215 = vadd.f32 0.0, %v3214
    %v3216 = vpop.f32.mrf.mxu0
    %3217 = vmatprep.mubr.f32.mxu0 0.0
    %3218 = vmatmul.mubr.f32.gmra.mxu0 %v1739
    %v3219 = vpop.f32.mrf.mxu0
    %v3220 = vadd.f32 0.0, %v3219
    %v3221 = vpop.f32.mrf.mxu0
    %3222 = vmatprep.mubr.f32.mxu0 0.0
    %3223 = vmatmul.mubr.f32.gmra.mxu0 %v2417
    %v3224 = vpop.f32.mrf.mxu0
    %v3225 = vadd.f32 0.0, %v3224
    %v3226 = vpop.f32.mrf.mxu0
    %3227 = vmatprep.mubr.f32.mxu0 0.0
    %3228 = vmatmul.mubr.f32.gmra.mxu0 %v3085
    %v3229 = vpop.f32.mrf.mxu0
    %v3230 = vadd.f32 0.0, %v3229
    %v3231 = vpop.f32.mrf.mxu0
    %3232 = vdwg.mxu0
    %v3233 = vadd.f32 %v3019, %v3155
    %v3234 = vadd.f32 %v3020, %v3160
    %v3235 = vadd.f32 %v3021, %v3165
    %v3236 = vadd.f32 %v3022, %v3170
    %v3237 = vadd.f32 %v3023, %v3175
    %v3238 = vadd.f32 %v3024, %v3180
    %v3239 = vadd.f32 %v3025, %v3185
    %v3240 = vadd.f32 %v3026, %v3190
    %v3241 = vadd.f32 %v3027, %v3195
    %v3242 = vadd.f32 %v3028, %v3200
    %v3243 = vadd.f32 %v3029, %v3205
    %v3244 = vadd.f32 %v3030, %v3210
    %v3245 = vadd.f32 %v3031, %v3215
    %v3246 = vadd.f32 %v3032, %v3220
    %v3247 = vadd.f32 %v3033, %v3225
    %v3248 = vadd.f32 %v3034, %v3230
    %v3249 = vrot.slane %v564, 7
    %v3250 = vrot.slane %v3249, 2
    %v3251 = vrot.slane %v563, 7
    %v3252 = vsel %vm809, %v3250, %v3251
    %v3253 = vrot.slane %v3251, 2
    %v3254 = vrot.slane %v565, 7
    %v3255 = vsel %vm809, %v3253, %v3254
    %v3256 = vrot.slane %v3254, 2
    %v3257 = vrot.slane %v573, 7
    %v3258 = vsel %vm809, %v3256, %v3257
    %v3259 = vrot.slane %v3257, 2
    %v3260 = vrot.slane %v581, 7
    %v3261 = vsel %vm809, %v3259, %v3260
    %v3262 = vrot.slane %v769, 7
    %v3263 = vrot.slane %v3262, 2
    %v3264 = vrot.slane %v777, 7
    %v3265 = vsel %vm809, %v3263, %v3264
    %v3266 = vrot.slane %v3264, 2
    %v3267 = vrot.slane %v785, 7
    %v3268 = vsel %vm809, %v3266, %v3267
    %v3269 = vrot.slane %v3267, 2
    %v3270 = vrot.slane %v784, 7
    %v3271 = vsel %vm809, %v3269, %v3270
    %v3272 = vrot.slane %v3270, 2
    %v3273 = vrot.slane %v786, 7
    %v3274 = vsel %vm809, %v3272, %v3273
    %s3275 = scalar_lea.vmem %s3, 896
    %v3276 = vld [vmem:[%s3275] sm:$0xff]
    %v3277 = vld [vmem:[%s3275 + $0x8] sm:$0xff]
    %v3278 = vld [vmem:[%s3275 + $0x10] sm:$0xff]
    %v3279 = vld [vmem:[%s3275 + $0x18] sm:$0xff]
    %v3280 = vld [vmem:[%s3275 + $0x20] sm:$0xff]
    %v3281 = vld [vmem:[%s3275 + $0x28] sm:$0xff]
    %v3282 = vld [vmem:[%s3275 + $0x30] sm:$0xff]
    %v3283 = vld [vmem:[%s3275 + $0x38] sm:$0xff]
    %v3284 = vld [vmem:[%s3275 + $0x40] sm:$0xff]
    %v3285 = vld [vmem:[%s3275 + $0x48] sm:$0xff]
    %v3286 = vld [vmem:[%s3275 + $0x50] sm:$0xff]
    %v3287 = vld [vmem:[%s3275 + $0x58] sm:$0xff]
    %v3288 = vld [vmem:[%s3275 + $0x60] sm:$0xff]
    %v3289 = vld [vmem:[%s3275 + $0x68] sm:$0xff]
    %v3290 = vld [vmem:[%s3275 + $0x70] sm:$0xff]
    %v3291 = vld [vmem:[%s3275 + $0x78] sm:$0xff]
    %v3292 = vcombine.low %v3252, %v3255
    %v3293 = vcombine.low %v3258, %v3261
    %v3295 = vunpack.c.l.s4 1983009808
    %v3296 = vunpack.c.0.s8 %v3295
    %v3297 = vlaneseq
    %v3298 = vshrl.u32 %v3297, 7
    %v3299 = vsub.s32 %v3296, %v3298
    %v3300 = vrot.slane %v3292, %v3299
    %v3302 = vunpack.c.l.s4 1983009808
    %v3303 = vunpack.c.0.s8 %v3302
    %v3304 = vlaneseq
    %v3305 = vshrl.u32 %v3304, 7
    %v3306 = vsub.s32 %v3303, %v3305
    %v3307 = vrot.slane %v3293, %v3306
    %v3308 = vcombine.low %v3300, %v3307
    %v3309 = vcombine.low %v3265, %v3268
    %v3310 = vcombine.low %v3271, %v3274
    %v3312 = vunpack.c.l.s4 1983009808
    %v3313 = vunpack.c.0.s8 %v3312
    %v3314 = vlaneseq
    %v3315 = vshrl.u32 %v3314, 7
    %v3316 = vsub.s32 %v3313, %v3315
    %v3317 = vrot.slane %v3309, %v3316
    %v3319 = vunpack.c.l.s4 1983009808
    %v3320 = vunpack.c.0.s8 %v3319
    %v3321 = vlaneseq
    %v3322 = vshrl.u32 %v3321, 7
    %v3323 = vsub.s32 %v3320, %v3322
    %v3324 = vrot.slane %v3310, %v3323
    %v3325 = vcombine.low %v3317, %v3324
    %3328 = vmatprep.subr.mxu0 0.0
    %3329 = vmatpush1.msra.mxu0 %v3291
    %3330 = vmatprep.subr.mxu0 0.0
    %3331 = vmatpush1.msra.mxu0 %v3290
    %3332 = vmatprep.subr.mxu0 0.0
    %3333 = vmatpush1.msra.mxu0 %v3289
    %3334 = vmatprep.subr.mxu0 0.0
    %3335 = vmatpush1.msra.mxu0 %v3288
    %3336 = vmatprep.subr.mxu0 0.0
    %3337 = vmatpush1.msra.mxu0 %v3287
    %3338 = vmatprep.subr.mxu0 0.0
    %3339 = vmatpush1.msra.mxu0 %v3286
    %3340 = vmatprep.subr.mxu0 0.0
    %3341 = vmatpush1.msra.mxu0 %v3285
    %3342 = vmatprep.subr.mxu0 0.0
    %3343 = vmatpush1.msra.mxu0 %v3284
    %3344 = vmatprep.subr.mxu0 0.0
    %3345 = vmatpush1.msra.mxu0 %v3283
    %3346 = vmatprep.subr.mxu0 0.0
    %3347 = vmatpush1.msra.mxu0 %v3282
    %3348 = vmatprep.subr.mxu0 0.0
    %3349 = vmatpush1.msra.mxu0 %v3281
    %3350 = vmatprep.subr.mxu0 0.0
    %3351 = vmatpush1.msra.mxu0 %v3280
    %3352 = vmatprep.subr.mxu0 0.0
    %3353 = vmatpush1.msra.mxu0 %v3279
    %3354 = vmatprep.subr.mxu0 0.0
    %3355 = vmatpush1.msra.mxu0 %v3278
    %3356 = vmatprep.subr.mxu0 0.0
    %3357 = vmatpush1.msra.mxu0 %v3277
    %3358 = vmatprep.subr.mxu0 0.0
    %3359 = vmatpush1.msra.mxu0 %v3276
    %3360 = vmatprep.subr.mxu0 0.0
    %3361 = vmatpush2.msra.mxu0 0.0
    %3362 = vmatprep.subr.mxu0 0.0
    %3363 = vmatpush2.msra.mxu0 0.0
    %3364 = vmatprep.subr.mxu0 0.0
    %3365 = vmatpush2.msra.mxu0 0.0
    %3366 = vmatprep.subr.mxu0 0.0
    %3367 = vmatpush2.msra.mxu0 0.0
    %3368 = vmatprep.subr.mxu0 0.0
    %3369 = vmatpush2.msra.mxu0 0.0
    %3370 = vmatprep.subr.mxu0 0.0
    %3371 = vmatpush2.msra.mxu0 0.0
    %3372 = vmatprep.subr.mxu0 0.0
    %3373 = vmatpush2.msra.mxu0 0.0
    %3374 = vmatprep.subr.mxu0 0.0
    %3375 = vmatpush2.msra.mxu0 0.0
    %3376 = vmatprep.subr.mxu0 0.0
    %3377 = vmatpush2.msra.mxu0 0.0
    %3378 = vmatprep.subr.mxu0 0.0
    %3379 = vmatpush2.msra.mxu0 0.0
    %3380 = vmatprep.subr.mxu0 0.0
    %3381 = vmatpush2.msra.mxu0 0.0
    %3382 = vmatprep.subr.mxu0 0.0
    %3383 = vmatpush2.msra.mxu0 0.0
    %3384 = vmatprep.subr.mxu0 0.0
    %3385 = vmatpush2.msra.mxu0 0.0
    %3386 = vmatprep.subr.mxu0 0.0
    %3387 = vmatpush2.msra.mxu0 0.0
    %3388 = vmatprep.subr.mxu0 0.0
    %3389 = vmatpush2.msra.mxu0 0.0
    %3390 = vmatprep.subr.mxu0 0.0
    %3391 = vmatpush2.msra.mxu0 0.0
    %3392 = vmatprep.mubr.f32.mxu0 0.0
    %3393 = vmatmul.mubr.f32.gmra.mxu0 %v1085
    %v3394 = vpop.f32.mrf.mxu0
    %v3395 = vadd.f32 0.0, %v3394
    %v3396 = vpop.f32.mrf.mxu0
    %3397 = vmatprep.mubr.f32.mxu0 0.0
    %3398 = vmatmul.mubr.f32.gmra.mxu0 %v1102
    %v3399 = vpop.f32.mrf.mxu0
    %v3400 = vadd.f32 0.0, %v3399
    %v3401 = vpop.f32.mrf.mxu0
    %3402 = vmatprep.mubr.f32.mxu0 0.0
    %3403 = vmatmul.mubr.f32.gmra.mxu0 %v1119
    %v3404 = vpop.f32.mrf.mxu0
    %v3405 = vadd.f32 0.0, %v3404
    %v3406 = vpop.f32.mrf.mxu0
    %3407 = vmatprep.mubr.f32.mxu0 0.0
    %3408 = vmatmul.mubr.f32.gmra.mxu0 %v1136
    %v3409 = vpop.f32.mrf.mxu0
    %v3410 = vadd.f32 0.0, %v3409
    %v3411 = vpop.f32.mrf.mxu0
    %3412 = vmatprep.mubr.f32.mxu0 0.0
    %3413 = vmatmul.mubr.f32.gmra.mxu0 %v1153
    %v3414 = vpop.f32.mrf.mxu0
    %v3415 = vadd.f32 0.0, %v3414
    %v3416 = vpop.f32.mrf.mxu0
    %3417 = vmatprep.mubr.f32.mxu0 0.0
    %3418 = vmatmul.mubr.f32.gmra.mxu0 %v1170
    %v3419 = vpop.f32.mrf.mxu0
    %v3420 = vadd.f32 0.0, %v3419
    %v3421 = vpop.f32.mrf.mxu0
    %3422 = vmatprep.mubr.f32.mxu0 0.0
    %3423 = vmatmul.mubr.f32.gmra.mxu0 %v2640
    %v3424 = vpop.f32.mrf.mxu0
    %v3425 = vadd.f32 0.0, %v3424
    %v3426 = vpop.f32.mrf.mxu0
    %3427 = vmatprep.mubr.f32.mxu0 0.0
    %3428 = vmatmul.mubr.f32.gmra.mxu0 %v3308
    %v3429 = vpop.f32.mrf.mxu0
    %v3430 = vadd.f32 0.0, %v3429
    %v3431 = vpop.f32.mrf.mxu0
    %3432 = vmatprep.mubr.f32.mxu0 0.0
    %3433 = vmatmul.mubr.f32.gmra.mxu0 %v1221
    %v3434 = vpop.f32.mrf.mxu0
    %v3435 = vadd.f32 0.0, %v3434
    %v3436 = vpop.f32.mrf.mxu0
    %3437 = vmatprep.mubr.f32.mxu0 0.0
    %3438 = vmatmul.mubr.f32.gmra.mxu0 %v1238
    %v3439 = vpop.f32.mrf.mxu0
    %v3440 = vadd.f32 0.0, %v3439
    %v3441 = vpop.f32.mrf.mxu0
    %3442 = vmatprep.mubr.f32.mxu0 0.0
    %3443 = vmatmul.mubr.f32.gmra.mxu0 %v1255
    %v3444 = vpop.f32.mrf.mxu0
    %v3445 = vadd.f32 0.0, %v3444
    %v3446 = vpop.f32.mrf.mxu0
    %3447 = vmatprep.mubr.f32.mxu0 0.0
    %3448 = vmatmul.mubr.f32.gmra.mxu0 %v1272
    %v3449 = vpop.f32.mrf.mxu0
    %v3450 = vadd.f32 0.0, %v3449
    %v3451 = vpop.f32.mrf.mxu0
    %3452 = vmatprep.mubr.f32.mxu0 0.0
    %3453 = vmatmul.mubr.f32.gmra.mxu0 %v1289
    %v3454 = vpop.f32.mrf.mxu0
    %v3455 = vadd.f32 0.0, %v3454
    %v3456 = vpop.f32.mrf.mxu0
    %3457 = vmatprep.mubr.f32.mxu0 0.0
    %3458 = vmatmul.mubr.f32.gmra.mxu0 %v1306
    %v3459 = vpop.f32.mrf.mxu0
    %v3460 = vadd.f32 0.0, %v3459
    %v3461 = vpop.f32.mrf.mxu0
    %3462 = vmatprep.mubr.f32.mxu0 0.0
    %3463 = vmatmul.mubr.f32.gmra.mxu0 %v2657
    %v3464 = vpop.f32.mrf.mxu0
    %v3465 = vadd.f32 0.0, %v3464
    %v3466 = vpop.f32.mrf.mxu0
    %3467 = vmatprep.mubr.f32.mxu0 0.0
    %3468 = vmatmul.mubr.f32.gmra.mxu0 %v3325
    %v3469 = vpop.f32.mrf.mxu0
    %v3470 = vadd.f32 0.0, %v3469
    %v3471 = vpop.f32.mrf.mxu0
    %3472 = vdwg.mxu0
    %v3473 = vadd.f32 %v3233, %v3395
    %v3474 = vadd.f32 %v3234, %v3400
    %v3475 = vadd.f32 %v3235, %v3405
    %v3476 = vadd.f32 %v3236, %v3410
    %v3477 = vadd.f32 %v3237, %v3415
    %v3478 = vadd.f32 %v3238, %v3420
    %v3479 = vadd.f32 %v3239, %v3425
    %v3480 = vadd.f32 %v3240, %v3430
    %v3481 = vadd.f32 %v3241, %v3435
    %v3482 = vadd.f32 %v3242, %v3440
    %v3483 = vadd.f32 %v3243, %v3445
    %v3484 = vadd.f32 %v3244, %v3450
    %v3485 = vadd.f32 %v3245, %v3455
    %v3486 = vadd.f32 %v3246, %v3460
    %v3487 = vadd.f32 %v3247, %v3465
    %v3488 = vadd.f32 %v3248, %v3470
    %s3489 = scalar_lea.vmem %s3, 1024
    %v3490 = vld [vmem:[%s3489] sm:$0xff]
    %v3491 = vld [vmem:[%s3489 + $0x8] sm:$0xff]
    %v3492 = vld [vmem:[%s3489 + $0x10] sm:$0xff]
    %v3493 = vld [vmem:[%s3489 + $0x18] sm:$0xff]
    %v3494 = vld [vmem:[%s3489 + $0x20] sm:$0xff]
    %v3495 = vld [vmem:[%s3489 + $0x28] sm:$0xff]
    %v3496 = vld [vmem:[%s3489 + $0x30] sm:$0xff]
    %v3497 = vld [vmem:[%s3489 + $0x38] sm:$0xff]
    %v3498 = vld [vmem:[%s3489 + $0x40] sm:$0xff]
    %v3499 = vld [vmem:[%s3489 + $0x48] sm:$0xff]
    %v3500 = vld [vmem:[%s3489 + $0x50] sm:$0xff]
    %v3501 = vld [vmem:[%s3489 + $0x58] sm:$0xff]
    %v3502 = vld [vmem:[%s3489 + $0x60] sm:$0xff]
    %v3503 = vld [vmem:[%s3489 + $0x68] sm:$0xff]
    %v3504 = vld [vmem:[%s3489 + $0x70] sm:$0xff]
    %v3505 = vld [vmem:[%s3489 + $0x78] sm:$0xff]
    %v3506 = vcombine.low %v563, %v565
    %v3507 = vcombine.low %v573, %v581
    %v3509 = vunpack.c.l.s4 1983009808
    %v3510 = vunpack.c.0.s8 %v3509
    %v3511 = vlaneseq
    %v3512 = vshrl.u32 %v3511, 7
    %v3513 = vsub.s32 %v3510, %v3512
    %v3514 = vrot.slane %v3506, %v3513
    %v3516 = vunpack.c.l.s4 1983009808
    %v3517 = vunpack.c.0.s8 %v3516
    %v3518 = vlaneseq
    %v3519 = vshrl.u32 %v3518, 7
    %v3520 = vsub.s32 %v3517, %v3519
    %v3521 = vrot.slane %v3507, %v3520
    %v3522 = vcombine.low %v3514, %v3521
    %v3523 = vcombine.low %v777, %v785
    %v3524 = vcombine.low %v784, %v786
    %v3526 = vunpack.c.l.s4 1983009808
    %v3527 = vunpack.c.0.s8 %v3526
    %v3528 = vlaneseq
    %v3529 = vshrl.u32 %v3528, 7
    %v3530 = vsub.s32 %v3527, %v3529
    %v3531 = vrot.slane %v3523, %v3530
    %v3533 = vunpack.c.l.s4 1983009808
    %v3534 = vunpack.c.0.s8 %v3533
    %v3535 = vlaneseq
    %v3536 = vshrl.u32 %v3535, 7
    %v3537 = vsub.s32 %v3534, %v3536
    %v3538 = vrot.slane %v3524, %v3537
    %v3539 = vcombine.low %v3531, %v3538
    %3542 = vmatprep.subr.mxu0 0.0
    %3543 = vmatpush1.msra.mxu0 %v3505
    %3544 = vmatprep.subr.mxu0 0.0
    %3545 = vmatpush1.msra.mxu0 %v3504
    %3546 = vmatprep.subr.mxu0 0.0
    %3547 = vmatpush1.msra.mxu0 %v3503
    %3548 = vmatprep.subr.mxu0 0.0
    %3549 = vmatpush1.msra.mxu0 %v3502
    %3550 = vmatprep.subr.mxu0 0.0
    %3551 = vmatpush1.msra.mxu0 %v3501
    %3552 = vmatprep.subr.mxu0 0.0
    %3553 = vmatpush1.msra.mxu0 %v3500
    %3554 = vmatprep.subr.mxu0 0.0
    %3555 = vmatpush1.msra.mxu0 %v3499
    %3556 = vmatprep.subr.mxu0 0.0
    %3557 = vmatpush1.msra.mxu0 %v3498
    %3558 = vmatprep.subr.mxu0 0.0
    %3559 = vmatpush1.msra.mxu0 %v3497
    %3560 = vmatprep.subr.mxu0 0.0
    %3561 = vmatpush1.msra.mxu0 %v3496
    %3562 = vmatprep.subr.mxu0 0.0
    %3563 = vmatpush1.msra.mxu0 %v3495
    %3564 = vmatprep.subr.mxu0 0.0
    %3565 = vmatpush1.msra.mxu0 %v3494
    %3566 = vmatprep.subr.mxu0 0.0
    %3567 = vmatpush1.msra.mxu0 %v3493
    %3568 = vmatprep.subr.mxu0 0.0
    %3569 = vmatpush1.msra.mxu0 %v3492
    %3570 = vmatprep.subr.mxu0 0.0
    %3571 = vmatpush1.msra.mxu0 %v3491
    %3572 = vmatprep.subr.mxu0 0.0
    %3573 = vmatpush1.msra.mxu0 %v3490
    %3574 = vmatprep.subr.mxu0 0.0
    %3575 = vmatpush2.msra.mxu0 0.0
    %3576 = vmatprep.subr.mxu0 0.0
    %3577 = vmatpush2.msra.mxu0 0.0
    %3578 = vmatprep.subr.mxu0 0.0
    %3579 = vmatpush2.msra.mxu0 0.0
    %3580 = vmatprep.subr.mxu0 0.0
    %3581 = vmatpush2.msra.mxu0 0.0
    %3582 = vmatprep.subr.mxu0 0.0
    %3583 = vmatpush2.msra.mxu0 0.0
    %3584 = vmatprep.subr.mxu0 0.0
    %3585 = vmatpush2.msra.mxu0 0.0
    %3586 = vmatprep.subr.mxu0 0.0
    %3587 = vmatpush2.msra.mxu0 0.0
    %3588 = vmatprep.subr.mxu0 0.0
    %3589 = vmatpush2.msra.mxu0 0.0
    %3590 = vmatprep.subr.mxu0 0.0
    %3591 = vmatpush2.msra.mxu0 0.0
    %3592 = vmatprep.subr.mxu0 0.0
    %3593 = vmatpush2.msra.mxu0 0.0
    %3594 = vmatprep.subr.mxu0 0.0
    %3595 = vmatpush2.msra.mxu0 0.0
    %3596 = vmatprep.subr.mxu0 0.0
    %3597 = vmatpush2.msra.mxu0 0.0
    %3598 = vmatprep.subr.mxu0 0.0
    %3599 = vmatpush2.msra.mxu0 0.0
    %3600 = vmatprep.subr.mxu0 0.0
    %3601 = vmatpush2.msra.mxu0 0.0
    %3602 = vmatprep.subr.mxu0 0.0
    %3603 = vmatpush2.msra.mxu0 0.0
    %3604 = vmatprep.subr.mxu0 0.0
    %3605 = vmatpush2.msra.mxu0 0.0
    %3606 = vmatprep.mubr.f32.mxu0 0.0
    %3607 = vmatmul.mubr.f32.gmra.mxu0 %v1968
    %v3608 = vpop.f32.mrf.mxu0
    %v3609 = vadd.f32 0.0, %v3608
    %v3610 = vpop.f32.mrf.mxu0
    %3611 = vmatprep.mubr.f32.mxu0 0.0
    %3612 = vmatmul.mubr.f32.gmra.mxu0 %v1985
    %v3613 = vpop.f32.mrf.mxu0
    %v3614 = vadd.f32 0.0, %v3613
    %v3615 = vpop.f32.mrf.mxu0
    %3616 = vmatprep.mubr.f32.mxu0 0.0
    %3617 = vmatmul.mubr.f32.gmra.mxu0 %v2002
    %v3618 = vpop.f32.mrf.mxu0
    %v3619 = vadd.f32 0.0, %v3618
    %v3620 = vpop.f32.mrf.mxu0
    %3621 = vmatprep.mubr.f32.mxu0 0.0
    %3622 = vmatmul.mubr.f32.gmra.mxu0 %v2019
    %v3623 = vpop.f32.mrf.mxu0
    %v3624 = vadd.f32 0.0, %v3623
    %v3625 = vpop.f32.mrf.mxu0
    %3626 = vmatprep.mubr.f32.mxu0 0.0
    %3627 = vmatmul.mubr.f32.gmra.mxu0 %v2036
    %v3628 = vpop.f32.mrf.mxu0
    %v3629 = vadd.f32 0.0, %v3628
    %v3630 = vpop.f32.mrf.mxu0
    %3631 = vmatprep.mubr.f32.mxu0 0.0
    %3632 = vmatmul.mubr.f32.gmra.mxu0 %v2053
    %v3633 = vpop.f32.mrf.mxu0
    %v3634 = vadd.f32 0.0, %v3633
    %v3635 = vpop.f32.mrf.mxu0
    %3636 = vmatprep.mubr.f32.mxu0 0.0
    %3637 = vmatmul.mubr.f32.gmra.mxu0 %v2854
    %v3638 = vpop.f32.mrf.mxu0
    %v3639 = vadd.f32 0.0, %v3638
    %v3640 = vpop.f32.mrf.mxu0
    %3641 = vmatprep.mubr.f32.mxu0 0.0
    %3642 = vmatmul.mubr.f32.gmra.mxu0 %v3522
    %v3643 = vpop.f32.mrf.mxu0
    %v3644 = vadd.f32 0.0, %v3643
    %v3645 = vpop.f32.mrf.mxu0
    %3646 = vmatprep.mubr.f32.mxu0 0.0
    %3647 = vmatmul.mubr.f32.gmra.mxu0 %v2104
    %v3648 = vpop.f32.mrf.mxu0
    %v3649 = vadd.f32 0.0, %v3648
    %v3650 = vpop.f32.mrf.mxu0
    %3651 = vmatprep.mubr.f32.mxu0 0.0
    %3652 = vmatmul.mubr.f32.gmra.mxu0 %v2121
    %v3653 = vpop.f32.mrf.mxu0
    %v3654 = vadd.f32 0.0, %v3653
    %v3655 = vpop.f32.mrf.mxu0
    %3656 = vmatprep.mubr.f32.mxu0 0.0
    %3657 = vmatmul.mubr.f32.gmra.mxu0 %v2138
    %v3658 = vpop.f32.mrf.mxu0
    %v3659 = vadd.f32 0.0, %v3658
    %v3660 = vpop.f32.mrf.mxu0
    %3661 = vmatprep.mubr.f32.mxu0 0.0
    %3662 = vmatmul.mubr.f32.gmra.mxu0 %v2155
    %v3663 = vpop.f32.mrf.mxu0
    %v3664 = vadd.f32 0.0, %v3663
    %v3665 = vpop.f32.mrf.mxu0
    %3666 = vmatprep.mubr.f32.mxu0 0.0
    %3667 = vmatmul.mubr.f32.gmra.mxu0 %v2172
    %v3668 = vpop.f32.mrf.mxu0
    %v3669 = vadd.f32 0.0, %v3668
    %v3670 = vpop.f32.mrf.mxu0
    %3671 = vmatprep.mubr.f32.mxu0 0.0
    %3672 = vmatmul.mubr.f32.gmra.mxu0 %v2189
    %v3673 = vpop.f32.mrf.mxu0
    %v3674 = vadd.f32 0.0, %v3673
    %v3675 = vpop.f32.mrf.mxu0
    %3676 = vmatprep.mubr.f32.mxu0 0.0
    %3677 = vmatmul.mubr.f32.gmra.mxu0 %v2871
    %v3678 = vpop.f32.mrf.mxu0
    %v3679 = vadd.f32 0.0, %v3678
    %v3680 = vpop.f32.mrf.mxu0
    %3681 = vmatprep.mubr.f32.mxu0 0.0
    %3682 = vmatmul.mubr.f32.gmra.mxu0 %v3539
    %v3683 = vpop.f32.mrf.mxu0
    %v3684 = vadd.f32 0.0, %v3683
    %v3685 = vpop.f32.mrf.mxu0
    %3686 = vdwg.mxu0
    %v3687 = vadd.f32 %v3473, %v3609
    %v3688 = vadd.f32 %v3474, %v3614
    %v3689 = vadd.f32 %v3475, %v3619
    %v3690 = vadd.f32 %v3476, %v3624
    %v3691 = vadd.f32 %v3477, %v3629
    %v3692 = vadd.f32 %v3478, %v3634
    %v3693 = vadd.f32 %v3479, %v3639
    %v3694 = vadd.f32 %v3480, %v3644
    %v3695 = vadd.f32 %v3481, %v3649
    %v3696 = vadd.f32 %v3482, %v3654
    %v3697 = vadd.f32 %v3483, %v3659
    %v3698 = vadd.f32 %v3484, %v3664
    %v3699 = vadd.f32 %v3485, %v3669
    %v3700 = vadd.f32 %v3486, %v3674
    %v3701 = vadd.f32 %v3487, %v3679
    %v3702 = vadd.f32 %v3488, %v3684
    %v3703 = vld [vmem:[%s4] sm:$0x1]
    %v3705 = vlaneseq
    %v3706 = vshrl.u32 %v3705, 7
    %v3707 = vsub.s32 0, %v3706
    %v3708 = vrot.slane %v3703, %v3707
    %v3710 = vadd.f32 %v3687, %v3708
    %v3711 = vadd.f32 %v3688, %v3708
    %v3712 = vadd.f32 %v3689, %v3708
    %v3713 = vadd.f32 %v3690, %v3708
    %v3714 = vadd.f32 %v3691, %v3708
    %v3715 = vadd.f32 %v3692, %v3708
    %v3716 = vadd.f32 %v3693, %v3708
    %v3717 = vadd.f32 %v3694, %v3708
    %v3718 = vadd.f32 %v3695, %v3708
    %v3719 = vadd.f32 %v3696, %v3708
    %v3720 = vadd.f32 %v3697, %v3708
    %v3721 = vadd.f32 %v3698, %v3708
    %v3722 = vadd.f32 %v3699, %v3708
    %v3723 = vadd.f32 %v3700, %v3708
    %v3724 = vadd.f32 %v3701, %v3708
    %v3725 = vadd.f32 %v3702, %v3708
    %v3726 = vmax.f32 %v3710, 0.0
    %v3727 = vmax.f32 %v3711, 0.0
    %v3728 = vmax.f32 %v3712, 0.0
    %v3729 = vmax.f32 %v3713, 0.0
    %v3730 = vmax.f32 %v3714, 0.0
    %v3731 = vmax.f32 %v3715, 0.0
    %v3732 = vmax.f32 %v3716, 0.0
    %v3733 = vmax.f32 %v3717, 0.0
    %v3734 = vmax.f32 %v3718, 0.0
    %v3735 = vmax.f32 %v3719, 0.0
    %v3736 = vmax.f32 %v3720, 0.0
    %v3737 = vmax.f32 %v3721, 0.0
    %v3738 = vmax.f32 %v3722, 0.0
    %v3739 = vmax.f32 %v3723, 0.0
    %v3740 = vmax.f32 %v3724, 0.0
    %v3741 = vmax.f32 %v3725, 0.0
    %v3742 = vmax.f32 %v3726, %v3727
    %v3743 = vmax.f32 %v3728, %v3729
    %v3744 = vmax.f32 %v3730, %v3731
    %v3745 = vmax.f32 %v3732, %v3733
    %v3746 = vmax.f32 %v3734, %v3735
    %v3747 = vmax.f32 %v3736, %v3737
    %v3748 = vmax.f32 %v3738, %v3739
    %v3749 = vmax.f32 %v3740, %v3741
    %v3758 = vcombine.high %v3742, %v3742
    %v3760 = vunpack.c.l.s4 1983009808
    %v3761 = vunpack.c.0.s8 %v3760
    %v3762 = vlaneseq
    %v3763 = vshrl.u32 %v3762, 7
    %v3764 = vsub.s32 %v3761, %v3763
    %v3765 = vrot.slane %v3742, %v3764
    %v3767 = vunpack.c.l.s4 1983009808
    %v3768 = vunpack.c.0.s8 %v3767
    %v3769 = vlaneseq
    %v3770 = vshrl.u32 %v3769, 7
    %v3771 = vsub.s32 %v3768, %v3770
    %v3772 = vrot.slane %v3758, %v3771
    %v3773 = vcombine.high %v3765, %v3765
    %v3774 = vcombine.high %v3772, %v3772
    %v3775 = vcombine.high %v3743, %v3743
    %v3777 = vunpack.c.l.s4 1983009808
    %v3778 = vunpack.c.0.s8 %v3777
    %v3779 = vlaneseq
    %v3780 = vshrl.u32 %v3779, 7
    %v3781 = vsub.s32 %v3778, %v3780
    %v3782 = vrot.slane %v3743, %v3781
    %v3784 = vunpack.c.l.s4 1983009808
    %v3785 = vunpack.c.0.s8 %v3784
    %v3786 = vlaneseq
    %v3787 = vshrl.u32 %v3786, 7
    %v3788 = vsub.s32 %v3785, %v3787
    %v3789 = vrot.slane %v3775, %v3788
    %v3790 = vcombine.high %v3782, %v3782
    %v3791 = vcombine.high %v3789, %v3789
    %v3792 = vcombine.high %v3744, %v3744
    %v3794 = vunpack.c.l.s4 1983009808
    %v3795 = vunpack.c.0.s8 %v3794
    %v3796 = vlaneseq
    %v3797 = vshrl.u32 %v3796, 7
    %v3798 = vsub.s32 %v3795, %v3797
    %v3799 = vrot.slane %v3744, %v3798
    %v3801 = vunpack.c.l.s4 1983009808
    %v3802 = vunpack.c.0.s8 %v3801
    %v3803 = vlaneseq
    %v3804 = vshrl.u32 %v3803, 7
    %v3805 = vsub.s32 %v3802, %v3804
    %v3806 = vrot.slane %v3792, %v3805
    %v3807 = vcombine.high %v3799, %v3799
    %v3808 = vcombine.high %v3806, %v3806
    %v3809 = vcombine.high %v3745, %v3745
    %v3811 = vunpack.c.l.s4 1983009808
    %v3812 = vunpack.c.0.s8 %v3811
    %v3813 = vlaneseq
    %v3814 = vshrl.u32 %v3813, 7
    %v3815 = vsub.s32 %v3812, %v3814
    %v3816 = vrot.slane %v3745, %v3815
    %v3818 = vunpack.c.l.s4 1983009808
    %v3819 = vunpack.c.0.s8 %v3818
    %v3820 = vlaneseq
    %v3821 = vshrl.u32 %v3820, 7
    %v3822 = vsub.s32 %v3819, %v3821
    %v3823 = vrot.slane %v3809, %v3822
    %v3824 = vcombine.high %v3816, %v3816
    %v3825 = vcombine.high %v3823, %v3823
    %v3826 = vcombine.high %v3746, %v3746
    %v3828 = vunpack.c.l.s4 1983009808
    %v3829 = vunpack.c.0.s8 %v3828
    %v3830 = vlaneseq
    %v3831 = vshrl.u32 %v3830, 7
    %v3832 = vsub.s32 %v3829, %v3831
    %v3833 = vrot.slane %v3746, %v3832
    %v3835 = vunpack.c.l.s4 1983009808
    %v3836 = vunpack.c.0.s8 %v3835
    %v3837 = vlaneseq
    %v3838 = vshrl.u32 %v3837, 7
    %v3839 = vsub.s32 %v3836, %v3838
    %v3840 = vrot.slane %v3826, %v3839
    %v3841 = vcombine.high %v3833, %v3833
    %v3842 = vcombine.high %v3840, %v3840
    %v3843 = vcombine.high %v3747, %v3747
    %v3845 = vunpack.c.l.s4 1983009808
    %v3846 = vunpack.c.0.s8 %v3845
    %v3847 = vlaneseq
    %v3848 = vshrl.u32 %v3847, 7
    %v3849 = vsub.s32 %v3846, %v3848
    %v3850 = vrot.slane %v3747, %v3849
    %v3852 = vunpack.c.l.s4 1983009808
    %v3853 = vunpack.c.0.s8 %v3852
    %v3854 = vlaneseq
    %v3855 = vshrl.u32 %v3854, 7
    %v3856 = vsub.s32 %v3853, %v3855
    %v3857 = vrot.slane %v3843, %v3856
    %v3858 = vcombine.high %v3850, %v3850
    %v3859 = vcombine.high %v3857, %v3857
    %v3860 = vcombine.high %v3748, %v3748
    %v3862 = vunpack.c.l.s4 1983009808
    %v3863 = vunpack.c.0.s8 %v3862
    %v3864 = vlaneseq
    %v3865 = vshrl.u32 %v3864, 7
    %v3866 = vsub.s32 %v3863, %v3865
    %v3867 = vrot.slane %v3748, %v3866
    %v3869 = vunpack.c.l.s4 1983009808
    %v3870 = vunpack.c.0.s8 %v3869
    %v3871 = vlaneseq
    %v3872 = vshrl.u32 %v3871, 7
    %v3873 = vsub.s32 %v3870, %v3872
    %v3874 = vrot.slane %v3860, %v3873
    %v3875 = vcombine.high %v3867, %v3867
    %v3876 = vcombine.high %v3874, %v3874
    %v3877 = vcombine.high %v3749, %v3749
    %v3879 = vunpack.c.l.s4 1983009808
    %v3880 = vunpack.c.0.s8 %v3879
    %v3881 = vlaneseq
    %v3882 = vshrl.u32 %v3881, 7
    %v3883 = vsub.s32 %v3880, %v3882
    %v3884 = vrot.slane %v3749, %v3883
    %v3886 = vunpack.c.l.s4 1983009808
    %v3887 = vunpack.c.0.s8 %v3886
    %v3888 = vlaneseq
    %v3889 = vshrl.u32 %v3888, 7
    %v3890 = vsub.s32 %v3887, %v3889
    %v3891 = vrot.slane %v3877, %v3890
    %v3892 = vcombine.high %v3884, %v3884
    %v3893 = vcombine.high %v3891, %v3891
    %v3926 = vrot.slane %v3765, 7
    %v3927 = vrot.slane %v3926, 2
    %v3928 = vrot.slane %v3773, 7
    %v3929 = vrot.slane %v3928, 2
    %v3930 = vrot.slane %v3772, 7
    %v3931 = vrot.slane %v3930, 2
    %v3932 = vrot.slane %v3774, 7
    %v3933 = vrot.slane %v3932, 2
    %v3934 = vrot.slane %v3782, 7
    %v3935 = vrot.slane %v3934, 2
    %v3936 = vrot.slane %v3790, 7
    %v3937 = vrot.slane %v3936, 2
    %v3938 = vrot.slane %v3789, 7
    %v3939 = vrot.slane %v3938, 2
    %v3940 = vrot.slane %v3791, 7
    %v3941 = vrot.slane %v3940, 2
    %v3942 = vrot.slane %v3799, 7
    %v3943 = vrot.slane %v3942, 2
    %v3944 = vrot.slane %v3807, 7
    %v3945 = vrot.slane %v3944, 2
    %v3946 = vrot.slane %v3806, 7
    %v3947 = vrot.slane %v3946, 2
    %v3948 = vrot.slane %v3808, 7
    %v3949 = vrot.slane %v3948, 2
    %v3950 = vrot.slane %v3816, 7
    %v3951 = vrot.slane %v3950, 2
    %v3952 = vrot.slane %v3824, 7
    %v3953 = vrot.slane %v3952, 2
    %v3954 = vrot.slane %v3823, 7
    %v3955 = vrot.slane %v3954, 2
    %v3956 = vrot.slane %v3825, 7
    %v3957 = vrot.slane %v3956, 2
    %v3958 = vrot.slane %v3833, 7
    %v3959 = vrot.slane %v3958, 2
    %v3960 = vrot.slane %v3841, 7
    %v3961 = vrot.slane %v3960, 2
    %v3962 = vrot.slane %v3840, 7
    %v3963 = vrot.slane %v3962, 2
    %v3964 = vrot.slane %v3842, 7
    %v3965 = vrot.slane %v3964, 2
    %v3966 = vrot.slane %v3850, 7
    %v3967 = vrot.slane %v3966, 2
    %v3968 = vrot.slane %v3858, 7
    %v3969 = vrot.slane %v3968, 2
    %v3970 = vrot.slane %v3857, 7
    %v3971 = vrot.slane %v3970, 2
    %v3972 = vrot.slane %v3859, 7
    %v3973 = vrot.slane %v3972, 2
    %v3974 = vrot.slane %v3867, 7
    %v3975 = vrot.slane %v3974, 2
    %v3976 = vrot.slane %v3875, 7
    %v3977 = vrot.slane %v3976, 2
    %v3978 = vrot.slane %v3874, 7
    %v3979 = vrot.slane %v3978, 2
    %v3980 = vrot.slane %v3876, 7
    %v3981 = vrot.slane %v3980, 2
    %v3982 = vrot.slane %v3884, 7
    %v3983 = vrot.slane %v3982, 2
    %v3984 = vrot.slane %v3892, 7
    %v3985 = vrot.slane %v3984, 2
    %v3986 = vrot.slane %v3891, 7
    %v3987 = vrot.slane %v3986, 2
    %v3988 = vrot.slane %v3893, 7
    %v3989 = vrot.slane %v3988, 2
    %v4022 = vmax.f32 %v3765, %v3927
    %v4023 = vmax.f32 %v3773, %v3929
    %v4024 = vmax.f32 %v3772, %v3931
    %v4025 = vmax.f32 %v3774, %v3933
    %v4026 = vmax.f32 %v3782, %v3935
    %v4027 = vmax.f32 %v3790, %v3937
    %v4028 = vmax.f32 %v3789, %v3939
    %v4029 = vmax.f32 %v3791, %v3941
    %v4030 = vmax.f32 %v3799, %v3943
    %v4031 = vmax.f32 %v3807, %v3945
    %v4032 = vmax.f32 %v3806, %v3947
    %v4033 = vmax.f32 %v3808, %v3949
    %v4034 = vmax.f32 %v3816, %v3951
    %v4035 = vmax.f32 %v3824, %v3953
    %v4036 = vmax.f32 %v3823, %v3955
    %v4037 = vmax.f32 %v3825, %v3957
    %v4038 = vmax.f32 %v3833, %v3959
    %v4039 = vmax.f32 %v3841, %v3961
    %v4040 = vmax.f32 %v3840, %v3963
    %v4041 = vmax.f32 %v3842, %v3965
    %v4042 = vmax.f32 %v3850, %v3967
    %v4043 = vmax.f32 %v3858, %v3969
    %v4044 = vmax.f32 %v3857, %v3971
    %v4045 = vmax.f32 %v3859, %v3973
    %v4046 = vmax.f32 %v3867, %v3975
    %v4047 = vmax.f32 %v3875, %v3977
    %v4048 = vmax.f32 %v3874, %v3979
    %v4049 = vmax.f32 %v3876, %v3981
    %v4050 = vmax.f32 %v3884, %v3983
    %v4051 = vmax.f32 %v3892, %v3985
    %v4052 = vmax.f32 %v3891, %v3987
    %v4053 = vmax.f32 %v3893, %v3989
    %v4054 = vld [vmem:[%s5] sm:$0xff]
    %v4055 = vld [vmem:[%s5 + $0x8] sm:$0xff]
    %v4056 = vld [vmem:[%s5 + $0x10] sm:$0xff]
    %v4057 = vld [vmem:[%s5 + $0x18] sm:$0xff]
    %v4058 = vld [vmem:[%s5 + $0x20] sm:$0xff]
    %v4059 = vld [vmem:[%s5 + $0x28] sm:$0xff]
    %v4060 = vld [vmem:[%s5 + $0x30] sm:$0xff]
    %v4061 = vld [vmem:[%s5 + $0x38] sm:$0xff]
    %v4062 = vld [vmem:[%s5 + $0x40] sm:$0xff]
    %v4063 = vld [vmem:[%s5 + $0x48] sm:$0xff]
    %v4064 = vld [vmem:[%s5 + $0x50] sm:$0xff]
    %v4065 = vld [vmem:[%s5 + $0x58] sm:$0xff]
    %v4066 = vld [vmem:[%s5 + $0x60] sm:$0xff]
    %v4067 = vld [vmem:[%s5 + $0x68] sm:$0xff]
    %v4068 = vld [vmem:[%s5 + $0x70] sm:$0xff]
    %v4069 = vld [vmem:[%s5 + $0x78] sm:$0xff]
    %s4070 = scalar_lea.vmem %s5, 128
    %v4071 = vld [vmem:[%s4070] sm:$0xff]
    %v4072 = vld [vmem:[%s4070 + $0x8] sm:$0xff]
    %v4073 = vld [vmem:[%s4070 + $0x10] sm:$0xff]
    %v4074 = vld [vmem:[%s4070 + $0x18] sm:$0xff]
    %v4075 = vld [vmem:[%s4070 + $0x20] sm:$0xff]
    %v4076 = vld [vmem:[%s4070 + $0x28] sm:$0xff]
    %v4077 = vld [vmem:[%s4070 + $0x30] sm:$0xff]
    %v4078 = vld [vmem:[%s4070 + $0x38] sm:$0xff]
    %v4079 = vld [vmem:[%s4070 + $0x40] sm:$0xff]
    %v4080 = vld [vmem:[%s4070 + $0x48] sm:$0xff]
    %v4081 = vld [vmem:[%s4070 + $0x50] sm:$0xff]
    %v4082 = vld [vmem:[%s4070 + $0x58] sm:$0xff]
    %v4083 = vld [vmem:[%s4070 + $0x60] sm:$0xff]
    %v4084 = vld [vmem:[%s4070 + $0x68] sm:$0xff]
    %v4085 = vld [vmem:[%s4070 + $0x70] sm:$0xff]
    %v4086 = vld [vmem:[%s4070 + $0x78] sm:$0xff]
    %v4095 = vlaneseq
    %v4096 = vshrl.u32 %v4095, 7
    %v4097 = vsub.s32 0, %v4096
    %v4098 = vrot.slane %v4023, %v4097
    %v4099 = vlaneseq
    %v4100 = vshrl.u32 %v4099, 7
    %v4101 = vsub.s32 0, %v4100
    %v4102 = vrot.slane %v4024, %v4101
    %v4103 = vlaneseq
    %v4104 = vshrl.u32 %v4103, 7
    %v4105 = vsub.s32 0, %v4104
    %v4106 = vrot.slane %v4027, %v4105
    %v4107 = vlaneseq
    %v4108 = vshrl.u32 %v4107, 7
    %v4109 = vsub.s32 0, %v4108
    %v4110 = vrot.slane %v4028, %v4109
    %v4111 = vlaneseq
    %v4112 = vshrl.u32 %v4111, 7
    %v4113 = vsub.s32 0, %v4112
    %v4114 = vrot.slane %v4039, %v4113
    %v4115 = vlaneseq
    %v4116 = vshrl.u32 %v4115, 7
    %v4117 = vsub.s32 0, %v4116
    %v4118 = vrot.slane %v4040, %v4117
    %v4119 = vlaneseq
    %v4120 = vshrl.u32 %v4119, 7
    %v4121 = vsub.s32 0, %v4120
    %v4122 = vrot.slane %v4043, %v4121
    %v4123 = vlaneseq
    %v4124 = vshrl.u32 %v4123, 7
    %v4125 = vsub.s32 0, %v4124
    %v4126 = vrot.slane %v4044, %v4125
    %vm4127 = vcmask 1041409
    %v4128 = vsel %vm4127, %v4102, %v4098
    %v4129 = vsel %vm804, %v4106, %v4128
    %vm4130 = vcmask 1043459
    %v4131 = vsel %vm4130, %v4110, %v4129
    %v4132 = vsel %vm806, %v4114, %v4131
    %vm4133 = vcmask 1045509
    %v4134 = vsel %vm4133, %v4118, %v4132
    %v4135 = vsel %vm808, %v4122, %v4134
    %vm4136 = vcmask 1047559
    %v4137 = vsel %vm4136, %v4126, %v4135
    %4139 = vmatprep.subr.mxu0 0.0
    %4140 = vmatpush1.msra.mxu0 %v4086
    %4141 = vmatprep.subr.mxu0 0.0
    %4142 = vmatpush1.msra.mxu0 %v4085
    %4143 = vmatprep.subr.mxu0 0.0
    %4144 = vmatpush1.msra.mxu0 %v4084
    %4145 = vmatprep.subr.mxu0 0.0
    %4146 = vmatpush1.msra.mxu0 %v4083
    %4147 = vmatprep.subr.mxu0 0.0
    %4148 = vmatpush1.msra.mxu0 %v4082
    %4149 = vmatprep.subr.mxu0 0.0
    %4150 = vmatpush1.msra.mxu0 %v4081
    %4151 = vmatprep.subr.mxu0 0.0
    %4152 = vmatpush1.msra.mxu0 %v4080
    %4153 = vmatprep.subr.mxu0 0.0
    %4154 = vmatpush1.msra.mxu0 %v4079
    %4155 = vmatprep.subr.mxu0 0.0
    %4156 = vmatpush1.msra.mxu0 %v4078
    %4157 = vmatprep.subr.mxu0 0.0
    %4158 = vmatpush1.msra.mxu0 %v4077
    %4159 = vmatprep.subr.mxu0 0.0
    %4160 = vmatpush1.msra.mxu0 %v4076
    %4161 = vmatprep.subr.mxu0 0.0
    %4162 = vmatpush1.msra.mxu0 %v4075
    %4163 = vmatprep.subr.mxu0 0.0
    %4164 = vmatpush1.msra.mxu0 %v4074
    %4165 = vmatprep.subr.mxu0 0.0
    %4166 = vmatpush1.msra.mxu0 %v4073
    %4167 = vmatprep.subr.mxu0 0.0
    %4168 = vmatpush1.msra.mxu0 %v4072
    %4169 = vmatprep.subr.mxu0 0.0
    %4170 = vmatpush1.msra.mxu0 %v4071
    %4171 = vmatprep.subr.mxu0 0.0
    %4172 = vmatpush2.msra.mxu0 0.0
    %4173 = vmatprep.subr.mxu0 0.0
    %4174 = vmatpush2.msra.mxu0 0.0
    %4175 = vmatprep.subr.mxu0 0.0
    %4176 = vmatpush2.msra.mxu0 0.0
    %4177 = vmatprep.subr.mxu0 0.0
    %4178 = vmatpush2.msra.mxu0 0.0
    %4179 = vmatprep.subr.mxu0 0.0
    %4180 = vmatpush2.msra.mxu0 0.0
    %4181 = vmatprep.subr.mxu0 0.0
    %4182 = vmatpush2.msra.mxu0 0.0
    %4183 = vmatprep.subr.mxu0 0.0
    %4184 = vmatpush2.msra.mxu0 0.0
    %4185 = vmatprep.subr.mxu0 0.0
    %4186 = vmatpush2.msra.mxu0 0.0
    %4187 = vmatprep.subr.mxu0 0.0
    %4188 = vmatpush2.msra.mxu0 0.0
    %4189 = vmatprep.subr.mxu0 0.0
    %4190 = vmatpush2.msra.mxu0 0.0
    %4191 = vmatprep.subr.mxu0 0.0
    %4192 = vmatpush2.msra.mxu0 0.0
    %4193 = vmatprep.subr.mxu0 0.0
    %4194 = vmatpush2.msra.mxu0 0.0
    %4195 = vmatprep.subr.mxu0 0.0
    %4196 = vmatpush2.msra.mxu0 0.0
    %4197 = vmatprep.subr.mxu0 0.0
    %4198 = vmatpush2.msra.mxu0 0.0
    %4199 = vmatprep.subr.mxu0 0.0
    %4200 = vmatpush2.msra.mxu0 0.0
    %4201 = vmatprep.subr.mxu0 0.0
    %4202 = vmatpush2.msra.mxu0 0.0
    %4203 = vmatprep.mubr.f32.mxu0 0.0
    %4204 = vmatmul.mubr.f32.gmra.mxu0 %v4137
    %v4205 = vpop.f32.mrf.mxu0
    %v4206 = vadd.f32 0.0, %v4205
    %v4207 = vpop.f32.mrf.mxu0
    %4208 = vdwg.mxu0
    %v4213 = vlaneseq
    %v4214 = vshrl.u32 %v4213, 7
    %v4215 = vsub.s32 0, %v4214
    %v4216 = vrot.slane %v4022, %v4215
    %v4217 = vlaneseq
    %v4218 = vshrl.u32 %v4217, 7
    %v4219 = vsub.s32 0, %v4218
    %v4220 = vrot.slane %v4026, %v4219
    %v4221 = vlaneseq
    %v4222 = vshrl.u32 %v4221, 7
    %v4223 = vsub.s32 0, %v4222
    %v4224 = vrot.slane %v4038, %v4223
    %v4225 = vlaneseq
    %v4226 = vshrl.u32 %v4225, 7
    %v4227 = vsub.s32 0, %v4226
    %v4228 = vrot.slane %v4042, %v4227
    %v4229 = vsel %vm4127, %v4098, %v4216
    %v4230 = vsel %vm804, %v4220, %v4229
    %v4231 = vsel %vm4130, %v4106, %v4230
    %v4232 = vsel %vm806, %v4224, %v4231
    %v4233 = vsel %vm4133, %v4114, %v4232
    %v4234 = vsel %vm808, %v4228, %v4233
    %v4235 = vsel %vm4136, %v4122, %v4234
    %4237 = vmatprep.subr.mxu0 0.0
    %4238 = vmatpush1.msra.mxu0 %v4069
    %4239 = vmatprep.subr.mxu0 0.0
    %4240 = vmatpush1.msra.mxu0 %v4068
    %4241 = vmatprep.subr.mxu0 0.0
    %4242 = vmatpush1.msra.mxu0 %v4067
    %4243 = vmatprep.subr.mxu0 0.0
    %4244 = vmatpush1.msra.mxu0 %v4066
    %4245 = vmatprep.subr.mxu0 0.0
    %4246 = vmatpush1.msra.mxu0 %v4065
    %4247 = vmatprep.subr.mxu0 0.0
    %4248 = vmatpush1.msra.mxu0 %v4064
    %4249 = vmatprep.subr.mxu0 0.0
    %4250 = vmatpush1.msra.mxu0 %v4063
    %4251 = vmatprep.subr.mxu0 0.0
    %4252 = vmatpush1.msra.mxu0 %v4062
    %4253 = vmatprep.subr.mxu0 0.0
    %4254 = vmatpush1.msra.mxu0 %v4061
    %4255 = vmatprep.subr.mxu0 0.0
    %4256 = vmatpush1.msra.mxu0 %v4060
    %4257 = vmatprep.subr.mxu0 0.0
    %4258 = vmatpush1.msra.mxu0 %v4059
    %4259 = vmatprep.subr.mxu0 0.0
    %4260 = vmatpush1.msra.mxu0 %v4058
    %4261 = vmatprep.subr.mxu0 0.0
    %4262 = vmatpush1.msra.mxu0 %v4057
    %4263 = vmatprep.subr.mxu0 0.0
    %4264 = vmatpush1.msra.mxu0 %v4056
    %4265 = vmatprep.subr.mxu0 0.0
    %4266 = vmatpush1.msra.mxu0 %v4055
    %4267 = vmatprep.subr.mxu0 0.0
    %4268 = vmatpush1.msra.mxu0 %v4054
    %4269 = vmatprep.subr.mxu0 0.0
    %4270 = vmatpush2.msra.mxu0 0.0
    %4271 = vmatprep.subr.mxu0 0.0
    %4272 = vmatpush2.msra.mxu0 0.0
    %4273 = vmatprep.subr.mxu0 0.0
    %4274 = vmatpush2.msra.mxu0 0.0
    %4275 = vmatprep.subr.mxu0 0.0
    %4276 = vmatpush2.msra.mxu0 0.0
    %4277 = vmatprep.subr.mxu0 0.0
    %4278 = vmatpush2.msra.mxu0 0.0
    %4279 = vmatprep.subr.mxu0 0.0
    %4280 = vmatpush2.msra.mxu0 0.0
    %4281 = vmatprep.subr.mxu0 0.0
    %4282 = vmatpush2.msra.mxu0 0.0
    %4283 = vmatprep.subr.mxu0 0.0
    %4284 = vmatpush2.msra.mxu0 0.0
    %4285 = vmatprep.subr.mxu0 0.0
    %4286 = vmatpush2.msra.mxu0 0.0
    %4287 = vmatprep.subr.mxu0 0.0
    %4288 = vmatpush2.msra.mxu0 0.0
    %4289 = vmatprep.subr.mxu0 0.0
    %4290 = vmatpush2.msra.mxu0 0.0
    %4291 = vmatprep.subr.mxu0 0.0
    %4292 = vmatpush2.msra.mxu0 0.0
    %4293 = vmatprep.subr.mxu0 0.0
    %4294 = vmatpush2.msra.mxu0 0.0
    %4295 = vmatprep.subr.mxu0 0.0
    %4296 = vmatpush2.msra.mxu0 0.0
    %4297 = vmatprep.subr.mxu0 0.0
    %4298 = vmatpush2.msra.mxu0 0.0
    %4299 = vmatprep.subr.mxu0 0.0
    %4300 = vmatpush2.msra.mxu0 0.0
    %4301 = vmatprep.mubr.f32.mxu0 0.0
    %4302 = vmatmul.mubr.f32.gmra.mxu0 %v4235
    %v4303 = vpop.f32.mrf.mxu0
    %v4304 = vadd.f32 %v4206, %v4303
    %v4305 = vpop.f32.mrf.mxu0
    %4306 = vdwg.mxu0
    %s4307 = scalar_lea.vmem %s5, 256
    %v4308 = vld [vmem:[%s4307] sm:$0xff]
    %v4309 = vld [vmem:[%s4307 + $0x8] sm:$0xff]
    %v4310 = vld [vmem:[%s4307 + $0x10] sm:$0xff]
    %v4311 = vld [vmem:[%s4307 + $0x18] sm:$0xff]
    %v4312 = vld [vmem:[%s4307 + $0x20] sm:$0xff]
    %v4313 = vld [vmem:[%s4307 + $0x28] sm:$0xff]
    %v4314 = vld [vmem:[%s4307 + $0x30] sm:$0xff]
    %v4315 = vld [vmem:[%s4307 + $0x38] sm:$0xff]
    %v4316 = vld [vmem:[%s4307 + $0x40] sm:$0xff]
    %v4317 = vld [vmem:[%s4307 + $0x48] sm:$0xff]
    %v4318 = vld [vmem:[%s4307 + $0x50] sm:$0xff]
    %v4319 = vld [vmem:[%s4307 + $0x58] sm:$0xff]
    %v4320 = vld [vmem:[%s4307 + $0x60] sm:$0xff]
    %v4321 = vld [vmem:[%s4307 + $0x68] sm:$0xff]
    %v4322 = vld [vmem:[%s4307 + $0x70] sm:$0xff]
    %v4323 = vld [vmem:[%s4307 + $0x78] sm:$0xff]
    %v4328 = vlaneseq
    %v4329 = vshrl.u32 %v4328, 7
    %v4330 = vsub.s32 0, %v4329
    %v4331 = vrot.slane %v4025, %v4330
    %v4332 = vlaneseq
    %v4333 = vshrl.u32 %v4332, 7
    %v4334 = vsub.s32 0, %v4333
    %v4335 = vrot.slane %v4029, %v4334
    %v4336 = vlaneseq
    %v4337 = vshrl.u32 %v4336, 7
    %v4338 = vsub.s32 0, %v4337
    %v4339 = vrot.slane %v4041, %v4338
    %v4340 = vlaneseq
    %v4341 = vshrl.u32 %v4340, 7
    %v4342 = vsub.s32 0, %v4341
    %v4343 = vrot.slane %v4045, %v4342
    %v4344 = vsel %vm4127, %v4331, %v4102
    %v4345 = vsel %vm804, %v4110, %v4344
    %v4346 = vsel %vm4130, %v4335, %v4345
    %v4347 = vsel %vm806, %v4118, %v4346
    %v4348 = vsel %vm4133, %v4339, %v4347
    %v4349 = vsel %vm808, %v4126, %v4348
    %v4350 = vsel %vm4136, %v4343, %v4349
    %4352 = vmatprep.subr.mxu0 0.0
    %4353 = vmatpush1.msra.mxu0 %v4323
    %4354 = vmatprep.subr.mxu0 0.0
    %4355 = vmatpush1.msra.mxu0 %v4322
    %4356 = vmatprep.subr.mxu0 0.0
    %4357 = vmatpush1.msra.mxu0 %v4321
    %4358 = vmatprep.subr.mxu0 0.0
    %4359 = vmatpush1.msra.mxu0 %v4320
    %4360 = vmatprep.subr.mxu0 0.0
    %4361 = vmatpush1.msra.mxu0 %v4319
    %4362 = vmatprep.subr.mxu0 0.0
    %4363 = vmatpush1.msra.mxu0 %v4318
    %4364 = vmatprep.subr.mxu0 0.0
    %4365 = vmatpush1.msra.mxu0 %v4317
    %4366 = vmatprep.subr.mxu0 0.0
    %4367 = vmatpush1.msra.mxu0 %v4316
    %4368 = vmatprep.subr.mxu0 0.0
    %4369 = vmatpush1.msra.mxu0 %v4315
    %4370 = vmatprep.subr.mxu0 0.0
    %4371 = vmatpush1.msra.mxu0 %v4314
    %4372 = vmatprep.subr.mxu0 0.0
    %4373 = vmatpush1.msra.mxu0 %v4313
    %4374 = vmatprep.subr.mxu0 0.0
    %4375 = vmatpush1.msra.mxu0 %v4312
    %4376 = vmatprep.subr.mxu0 0.0
    %4377 = vmatpush1.msra.mxu0 %v4311
    %4378 = vmatprep.subr.mxu0 0.0
    %4379 = vmatpush1.msra.mxu0 %v4310
    %4380 = vmatprep.subr.mxu0 0.0
    %4381 = vmatpush1.msra.mxu0 %v4309
    %4382 = vmatprep.subr.mxu0 0.0
    %4383 = vmatpush1.msra.mxu0 %v4308
    %4384 = vmatprep.subr.mxu0 0.0
    %4385 = vmatpush2.msra.mxu0 0.0
    %4386 = vmatprep.subr.mxu0 0.0
    %4387 = vmatpush2.msra.mxu0 0.0
    %4388 = vmatprep.subr.mxu0 0.0
    %4389 = vmatpush2.msra.mxu0 0.0
    %4390 = vmatprep.subr.mxu0 0.0
    %4391 = vmatpush2.msra.mxu0 0.0
    %4392 = vmatprep.subr.mxu0 0.0
    %4393 = vmatpush2.msra.mxu0 0.0
    %4394 = vmatprep.subr.mxu0 0.0
    %4395 = vmatpush2.msra.mxu0 0.0
    %4396 = vmatprep.subr.mxu0 0.0
    %4397 = vmatpush2.msra.mxu0 0.0
    %4398 = vmatprep.subr.mxu0 0.0
    %4399 = vmatpush2.msra.mxu0 0.0
    %4400 = vmatprep.subr.mxu0 0.0
    %4401 = vmatpush2.msra.mxu0 0.0
    %4402 = vmatprep.subr.mxu0 0.0
    %4403 = vmatpush2.msra.mxu0 0.0
    %4404 = vmatprep.subr.mxu0 0.0
    %4405 = vmatpush2.msra.mxu0 0.0
    %4406 = vmatprep.subr.mxu0 0.0
    %4407 = vmatpush2.msra.mxu0 0.0
    %4408 = vmatprep.subr.mxu0 0.0
    %4409 = vmatpush2.msra.mxu0 0.0
    %4410 = vmatprep.subr.mxu0 0.0
    %4411 = vmatpush2.msra.mxu0 0.0
    %4412 = vmatprep.subr.mxu0 0.0
    %4413 = vmatpush2.msra.mxu0 0.0
    %4414 = vmatprep.subr.mxu0 0.0
    %4415 = vmatpush2.msra.mxu0 0.0
    %4416 = vmatprep.mubr.f32.mxu0 0.0
    %4417 = vmatmul.mubr.f32.gmra.mxu0 %v4350
    %v4418 = vpop.f32.mrf.mxu0
    %v4419 = vadd.f32 0.0, %v4418
    %v4420 = vpop.f32.mrf.mxu0
    %4421 = vdwg.mxu0
    %v4422 = vadd.f32 %v4304, %v4419
    %s4423 = scalar_lea.vmem %s5, 384
    %v4424 = vld [vmem:[%s4423] sm:$0xff]
    %v4425 = vld [vmem:[%s4423 + $0x8] sm:$0xff]
    %v4426 = vld [vmem:[%s4423 + $0x10] sm:$0xff]
    %v4427 = vld [vmem:[%s4423 + $0x18] sm:$0xff]
    %v4428 = vld [vmem:[%s4423 + $0x20] sm:$0xff]
    %v4429 = vld [vmem:[%s4423 + $0x28] sm:$0xff]
    %v4430 = vld [vmem:[%s4423 + $0x30] sm:$0xff]
    %v4431 = vld [vmem:[%s4423 + $0x38] sm:$0xff]
    %v4432 = vld [vmem:[%s4423 + $0x40] sm:$0xff]
    %v4433 = vld [vmem:[%s4423 + $0x48] sm:$0xff]
    %v4434 = vld [vmem:[%s4423 + $0x50] sm:$0xff]
    %v4435 = vld [vmem:[%s4423 + $0x58] sm:$0xff]
    %v4436 = vld [vmem:[%s4423 + $0x60] sm:$0xff]
    %v4437 = vld [vmem:[%s4423 + $0x68] sm:$0xff]
    %v4438 = vld [vmem:[%s4423 + $0x70] sm:$0xff]
    %v4439 = vld [vmem:[%s4423 + $0x78] sm:$0xff]
    %v4444 = vlaneseq
    %v4445 = vshrl.u32 %v4444, 7
    %v4446 = vsub.s32 0, %v4445
    %v4447 = vrot.slane %v4030, %v4446
    %v4448 = vlaneseq
    %v4449 = vshrl.u32 %v4448, 7
    %v4450 = vsub.s32 0, %v4449
    %v4451 = vrot.slane %v4031, %v4450
    %v4452 = vlaneseq
    %v4453 = vshrl.u32 %v4452, 7
    %v4454 = vsub.s32 0, %v4453
    %v4455 = vrot.slane %v4046, %v4454
    %v4456 = vlaneseq
    %v4457 = vshrl.u32 %v4456, 7
    %v4458 = vsub.s32 0, %v4457
    %v4459 = vrot.slane %v4047, %v4458
    %v4460 = vsel %vm4127, %v4106, %v4220
    %v4461 = vsel %vm804, %v4447, %v4460
    %v4462 = vsel %vm4130, %v4451, %v4461
    %v4463 = vsel %vm806, %v4228, %v4462
    %v4464 = vsel %vm4133, %v4122, %v4463
    %v4465 = vsel %vm808, %v4455, %v4464
    %v4466 = vsel %vm4136, %v4459, %v4465
    %4468 = vmatprep.subr.mxu0 0.0
    %4469 = vmatpush1.msra.mxu0 %v4439
    %4470 = vmatprep.subr.mxu0 0.0
    %4471 = vmatpush1.msra.mxu0 %v4438
    %4472 = vmatprep.subr.mxu0 0.0
    %4473 = vmatpush1.msra.mxu0 %v4437
    %4474 = vmatprep.subr.mxu0 0.0
    %4475 = vmatpush1.msra.mxu0 %v4436
    %4476 = vmatprep.subr.mxu0 0.0
    %4477 = vmatpush1.msra.mxu0 %v4435
    %4478 = vmatprep.subr.mxu0 0.0
    %4479 = vmatpush1.msra.mxu0 %v4434
    %4480 = vmatprep.subr.mxu0 0.0
    %4481 = vmatpush1.msra.mxu0 %v4433
    %4482 = vmatprep.subr.mxu0 0.0
    %4483 = vmatpush1.msra.mxu0 %v4432
    %4484 = vmatprep.subr.mxu0 0.0
    %4485 = vmatpush1.msra.mxu0 %v4431
    %4486 = vmatprep.subr.mxu0 0.0
    %4487 = vmatpush1.msra.mxu0 %v4430
    %4488 = vmatprep.subr.mxu0 0.0
    %4489 = vmatpush1.msra.mxu0 %v4429
    %4490 = vmatprep.subr.mxu0 0.0
    %4491 = vmatpush1.msra.mxu0 %v4428
    %4492 = vmatprep.subr.mxu0 0.0
    %4493 = vmatpush1.msra.mxu0 %v4427
    %4494 = vmatprep.subr.mxu0 0.0
    %4495 = vmatpush1.msra.mxu0 %v4426
    %4496 = vmatprep.subr.mxu0 0.0
    %4497 = vmatpush1.msra.mxu0 %v4425
    %4498 = vmatprep.subr.mxu0 0.0
    %4499 = vmatpush1.msra.mxu0 %v4424
    %4500 = vmatprep.subr.mxu0 0.0
    %4501 = vmatpush2.msra.mxu0 0.0
    %4502 = vmatprep.subr.mxu0 0.0
    %4503 = vmatpush2.msra.mxu0 0.0
    %4504 = vmatprep.subr.mxu0 0.0
    %4505 = vmatpush2.msra.mxu0 0.0
    %4506 = vmatprep.subr.mxu0 0.0
    %4507 = vmatpush2.msra.mxu0 0.0
    %4508 = vmatprep.subr.mxu0 0.0
    %4509 = vmatpush2.msra.mxu0 0.0
    %4510 = vmatprep.subr.mxu0 0.0
    %4511 = vmatpush2.msra.mxu0 0.0
    %4512 = vmatprep.subr.mxu0 0.0
    %4513 = vmatpush2.msra.mxu0 0.0
    %4514 = vmatprep.subr.mxu0 0.0
    %4515 = vmatpush2.msra.mxu0 0.0
    %4516 = vmatprep.subr.mxu0 0.0
    %4517 = vmatpush2.msra.mxu0 0.0
    %4518 = vmatprep.subr.mxu0 0.0
    %4519 = vmatpush2.msra.mxu0 0.0
    %4520 = vmatprep.subr.mxu0 0.0
    %4521 = vmatpush2.msra.mxu0 0.0
    %4522 = vmatprep.subr.mxu0 0.0
    %4523 = vmatpush2.msra.mxu0 0.0
    %4524 = vmatprep.subr.mxu0 0.0
    %4525 = vmatpush2.msra.mxu0 0.0
    %4526 = vmatprep.subr.mxu0 0.0
    %4527 = vmatpush2.msra.mxu0 0.0
    %4528 = vmatprep.subr.mxu0 0.0
    %4529 = vmatpush2.msra.mxu0 0.0
    %4530 = vmatprep.subr.mxu0 0.0
    %4531 = vmatpush2.msra.mxu0 0.0
    %4532 = vmatprep.mubr.f32.mxu0 0.0
    %4533 = vmatmul.mubr.f32.gmra.mxu0 %v4466
    %v4534 = vpop.f32.mrf.mxu0
    %v4535 = vadd.f32 0.0, %v4534
    %v4536 = vpop.f32.mrf.mxu0
    %4537 = vdwg.mxu0
    %v4538 = vadd.f32 %v4422, %v4535
    %s4539 = scalar_lea.vmem %s5, 512
    %v4540 = vld [vmem:[%s4539] sm:$0xff]
    %v4541 = vld [vmem:[%s4539 + $0x8] sm:$0xff]
    %v4542 = vld [vmem:[%s4539 + $0x10] sm:$0xff]
    %v4543 = vld [vmem:[%s4539 + $0x18] sm:$0xff]
    %v4544 = vld [vmem:[%s4539 + $0x20] sm:$0xff]
    %v4545 = vld [vmem:[%s4539 + $0x28] sm:$0xff]
    %v4546 = vld [vmem:[%s4539 + $0x30] sm:$0xff]
    %v4547 = vld [vmem:[%s4539 + $0x38] sm:$0xff]
    %v4548 = vld [vmem:[%s4539 + $0x40] sm:$0xff]
    %v4549 = vld [vmem:[%s4539 + $0x48] sm:$0xff]
    %v4550 = vld [vmem:[%s4539 + $0x50] sm:$0xff]
    %v4551 = vld [vmem:[%s4539 + $0x58] sm:$0xff]
    %v4552 = vld [vmem:[%s4539 + $0x60] sm:$0xff]
    %v4553 = vld [vmem:[%s4539 + $0x68] sm:$0xff]
    %v4554 = vld [vmem:[%s4539 + $0x70] sm:$0xff]
    %v4555 = vld [vmem:[%s4539 + $0x78] sm:$0xff]
    %v4558 = vlaneseq
    %v4559 = vshrl.u32 %v4558, 7
    %v4560 = vsub.s32 0, %v4559
    %v4561 = vrot.slane %v4032, %v4560
    %v4562 = vlaneseq
    %v4563 = vshrl.u32 %v4562, 7
    %v4564 = vsub.s32 0, %v4563
    %v4565 = vrot.slane %v4048, %v4564
    %v4566 = vsel %vm4127, %v4110, %v4106
    %v4567 = vsel %vm804, %v4451, %v4566
    %v4568 = vsel %vm4130, %v4561, %v4567
    %v4569 = vsel %vm806, %v4122, %v4568
    %v4570 = vsel %vm4133, %v4126, %v4569
    %v4571 = vsel %vm808, %v4459, %v4570
    %v4572 = vsel %vm4136, %v4565, %v4571
    %4574 = vmatprep.subr.mxu0 0.0
    %4575 = vmatpush1.msra.mxu0 %v4555
    %4576 = vmatprep.subr.mxu0 0.0
    %4577 = vmatpush1.msra.mxu0 %v4554
    %4578 = vmatprep.subr.mxu0 0.0
    %4579 = vmatpush1.msra.mxu0 %v4553
    %4580 = vmatprep.subr.mxu0 0.0
    %4581 = vmatpush1.msra.mxu0 %v4552
    %4582 = vmatprep.subr.mxu0 0.0
    %4583 = vmatpush1.msra.mxu0 %v4551
    %4584 = vmatprep.subr.mxu0 0.0
    %4585 = vmatpush1.msra.mxu0 %v4550
    %4586 = vmatprep.subr.mxu0 0.0
    %4587 = vmatpush1.msra.mxu0 %v4549
    %4588 = vmatprep.subr.mxu0 0.0
    %4589 = vmatpush1.msra.mxu0 %v4548
    %4590 = vmatprep.subr.mxu0 0.0
    %4591 = vmatpush1.msra.mxu0 %v4547
    %4592 = vmatprep.subr.mxu0 0.0
    %4593 = vmatpush1.msra.mxu0 %v4546
    %4594 = vmatprep.subr.mxu0 0.0
    %4595 = vmatpush1.msra.mxu0 %v4545
    %4596 = vmatprep.subr.mxu0 0.0
    %4597 = vmatpush1.msra.mxu0 %v4544
    %4598 = vmatprep.subr.mxu0 0.0
    %4599 = vmatpush1.msra.mxu0 %v4543
    %4600 = vmatprep.subr.mxu0 0.0
    %4601 = vmatpush1.msra.mxu0 %v4542
    %4602 = vmatprep.subr.mxu0 0.0
    %4603 = vmatpush1.msra.mxu0 %v4541
    %4604 = vmatprep.subr.mxu0 0.0
    %4605 = vmatpush1.msra.mxu0 %v4540
    %4606 = vmatprep.subr.mxu0 0.0
    %4607 = vmatpush2.msra.mxu0 0.0
    %4608 = vmatprep.subr.mxu0 0.0
    %4609 = vmatpush2.msra.mxu0 0.0
    %4610 = vmatprep.subr.mxu0 0.0
    %4611 = vmatpush2.msra.mxu0 0.0
    %4612 = vmatprep.subr.mxu0 0.0
    %4613 = vmatpush2.msra.mxu0 0.0
    %4614 = vmatprep.subr.mxu0 0.0
    %4615 = vmatpush2.msra.mxu0 0.0
    %4616 = vmatprep.subr.mxu0 0.0
    %4617 = vmatpush2.msra.mxu0 0.0
    %4618 = vmatprep.subr.mxu0 0.0
    %4619 = vmatpush2.msra.mxu0 0.0
    %4620 = vmatprep.subr.mxu0 0.0
    %4621 = vmatpush2.msra.mxu0 0.0
    %4622 = vmatprep.subr.mxu0 0.0
    %4623 = vmatpush2.msra.mxu0 0.0
    %4624 = vmatprep.subr.mxu0 0.0
    %4625 = vmatpush2.msra.mxu0 0.0
    %4626 = vmatprep.subr.mxu0 0.0
    %4627 = vmatpush2.msra.mxu0 0.0
    %4628 = vmatprep.subr.mxu0 0.0
    %4629 = vmatpush2.msra.mxu0 0.0
    %4630 = vmatprep.subr.mxu0 0.0
    %4631 = vmatpush2.msra.mxu0 0.0
    %4632 = vmatprep.subr.mxu0 0.0
    %4633 = vmatpush2.msra.mxu0 0.0
    %4634 = vmatprep.subr.mxu0 0.0
    %4635 = vmatpush2.msra.mxu0 0.0
    %4636 = vmatprep.subr.mxu0 0.0
    %4637 = vmatpush2.msra.mxu0 0.0
    %4638 = vmatprep.mubr.f32.mxu0 0.0
    %4639 = vmatmul.mubr.f32.gmra.mxu0 %v4572
    %v4640 = vpop.f32.mrf.mxu0
    %v4641 = vadd.f32 0.0, %v4640
    %v4642 = vpop.f32.mrf.mxu0
    %4643 = vdwg.mxu0
    %v4644 = vadd.f32 %v4538, %v4641
    %s4645 = scalar_lea.vmem %s5, 640
    %v4646 = vld [vmem:[%s4645] sm:$0xff]
    %v4647 = vld [vmem:[%s4645 + $0x8] sm:$0xff]
    %v4648 = vld [vmem:[%s4645 + $0x10] sm:$0xff]
    %v4649 = vld [vmem:[%s4645 + $0x18] sm:$0xff]
    %v4650 = vld [vmem:[%s4645 + $0x20] sm:$0xff]
    %v4651 = vld [vmem:[%s4645 + $0x28] sm:$0xff]
    %v4652 = vld [vmem:[%s4645 + $0x30] sm:$0xff]
    %v4653 = vld [vmem:[%s4645 + $0x38] sm:$0xff]
    %v4654 = vld [vmem:[%s4645 + $0x40] sm:$0xff]
    %v4655 = vld [vmem:[%s4645 + $0x48] sm:$0xff]
    %v4656 = vld [vmem:[%s4645 + $0x50] sm:$0xff]
    %v4657 = vld [vmem:[%s4645 + $0x58] sm:$0xff]
    %v4658 = vld [vmem:[%s4645 + $0x60] sm:$0xff]
    %v4659 = vld [vmem:[%s4645 + $0x68] sm:$0xff]
    %v4660 = vld [vmem:[%s4645 + $0x70] sm:$0xff]
    %v4661 = vld [vmem:[%s4645 + $0x78] sm:$0xff]
    %v4664 = vlaneseq
    %v4665 = vshrl.u32 %v4664, 7
    %v4666 = vsub.s32 0, %v4665
    %v4667 = vrot.slane %v4033, %v4666
    %v4668 = vlaneseq
    %v4669 = vshrl.u32 %v4668, 7
    %v4670 = vsub.s32 0, %v4669
    %v4671 = vrot.slane %v4049, %v4670
    %v4672 = vsel %vm4127, %v4335, %v4110
    %v4673 = vsel %vm804, %v4561, %v4672
    %v4674 = vsel %vm4130, %v4667, %v4673
    %v4675 = vsel %vm806, %v4126, %v4674
    %v4676 = vsel %vm4133, %v4343, %v4675
    %v4677 = vsel %vm808, %v4565, %v4676
    %v4678 = vsel %vm4136, %v4671, %v4677
    %4680 = vmatprep.subr.mxu0 0.0
    %4681 = vmatpush1.msra.mxu0 %v4661
    %4682 = vmatprep.subr.mxu0 0.0
    %4683 = vmatpush1.msra.mxu0 %v4660
    %4684 = vmatprep.subr.mxu0 0.0
    %4685 = vmatpush1.msra.mxu0 %v4659
    %4686 = vmatprep.subr.mxu0 0.0
    %4687 = vmatpush1.msra.mxu0 %v4658
    %4688 = vmatprep.subr.mxu0 0.0
    %4689 = vmatpush1.msra.mxu0 %v4657
    %4690 = vmatprep.subr.mxu0 0.0
    %4691 = vmatpush1.msra.mxu0 %v4656
    %4692 = vmatprep.subr.mxu0 0.0
    %4693 = vmatpush1.msra.mxu0 %v4655
    %4694 = vmatprep.subr.mxu0 0.0
    %4695 = vmatpush1.msra.mxu0 %v4654
    %4696 = vmatprep.subr.mxu0 0.0
    %4697 = vmatpush1.msra.mxu0 %v4653
    %4698 = vmatprep.subr.mxu0 0.0
    %4699 = vmatpush1.msra.mxu0 %v4652
    %4700 = vmatprep.subr.mxu0 0.0
    %4701 = vmatpush1.msra.mxu0 %v4651
    %4702 = vmatprep.subr.mxu0 0.0
    %4703 = vmatpush1.msra.mxu0 %v4650
    %4704 = vmatprep.subr.mxu0 0.0
    %4705 = vmatpush1.msra.mxu0 %v4649
    %4706 = vmatprep.subr.mxu0 0.0
    %4707 = vmatpush1.msra.mxu0 %v4648
    %4708 = vmatprep.subr.mxu0 0.0
    %4709 = vmatpush1.msra.mxu0 %v4647
    %4710 = vmatprep.subr.mxu0 0.0
    %4711 = vmatpush1.msra.mxu0 %v4646
    %4712 = vmatprep.subr.mxu0 0.0
    %4713 = vmatpush2.msra.mxu0 0.0
    %4714 = vmatprep.subr.mxu0 0.0
    %4715 = vmatpush2.msra.mxu0 0.0
    %4716 = vmatprep.subr.mxu0 0.0
    %4717 = vmatpush2.msra.mxu0 0.0
    %4718 = vmatprep.subr.mxu0 0.0
    %4719 = vmatpush2.msra.mxu0 0.0
    %4720 = vmatprep.subr.mxu0 0.0
    %4721 = vmatpush2.msra.mxu0 0.0
    %4722 = vmatprep.subr.mxu0 0.0
    %4723 = vmatpush2.msra.mxu0 0.0
    %4724 = vmatprep.subr.mxu0 0.0
    %4725 = vmatpush2.msra.mxu0 0.0
    %4726 = vmatprep.subr.mxu0 0.0
    %4727 = vmatpush2.msra.mxu0 0.0
    %4728 = vmatprep.subr.mxu0 0.0
    %4729 = vmatpush2.msra.mxu0 0.0
    %4730 = vmatprep.subr.mxu0 0.0
    %4731 = vmatpush2.msra.mxu0 0.0
    %4732 = vmatprep.subr.mxu0 0.0
    %4733 = vmatpush2.msra.mxu0 0.0
    %4734 = vmatprep.subr.mxu0 0.0
    %4735 = vmatpush2.msra.mxu0 0.0
    %4736 = vmatprep.subr.mxu0 0.0
    %4737 = vmatpush2.msra.mxu0 0.0
    %4738 = vmatprep.subr.mxu0 0.0
    %4739 = vmatpush2.msra.mxu0 0.0
    %4740 = vmatprep.subr.mxu0 0.0
    %4741 = vmatpush2.msra.mxu0 0.0
    %4742 = vmatprep.subr.mxu0 0.0
    %4743 = vmatpush2.msra.mxu0 0.0
    %4744 = vmatprep.mubr.f32.mxu0 0.0
    %4745 = vmatmul.mubr.f32.gmra.mxu0 %v4678
    %v4746 = vpop.f32.mrf.mxu0
    %v4747 = vadd.f32 0.0, %v4746
    %v4748 = vpop.f32.mrf.mxu0
    %4749 = vdwg.mxu0
    %v4750 = vadd.f32 %v4644, %v4747
    %s4751 = scalar_lea.vmem %s5, 768
    %v4752 = vld [vmem:[%s4751] sm:$0xff]
    %v4753 = vld [vmem:[%s4751 + $0x8] sm:$0xff]
    %v4754 = vld [vmem:[%s4751 + $0x10] sm:$0xff]
    %v4755 = vld [vmem:[%s4751 + $0x18] sm:$0xff]
    %v4756 = vld [vmem:[%s4751 + $0x20] sm:$0xff]
    %v4757 = vld [vmem:[%s4751 + $0x28] sm:$0xff]
    %v4758 = vld [vmem:[%s4751 + $0x30] sm:$0xff]
    %v4759 = vld [vmem:[%s4751 + $0x38] sm:$0xff]
    %v4760 = vld [vmem:[%s4751 + $0x40] sm:$0xff]
    %v4761 = vld [vmem:[%s4751 + $0x48] sm:$0xff]
    %v4762 = vld [vmem:[%s4751 + $0x50] sm:$0xff]
    %v4763 = vld [vmem:[%s4751 + $0x58] sm:$0xff]
    %v4764 = vld [vmem:[%s4751 + $0x60] sm:$0xff]
    %v4765 = vld [vmem:[%s4751 + $0x68] sm:$0xff]
    %v4766 = vld [vmem:[%s4751 + $0x70] sm:$0xff]
    %v4767 = vld [vmem:[%s4751 + $0x78] sm:$0xff]
    %v4772 = vlaneseq
    %v4773 = vshrl.u32 %v4772, 7
    %v4774 = vsub.s32 0, %v4773
    %v4775 = vrot.slane %v4034, %v4774
    %v4776 = vlaneseq
    %v4777 = vshrl.u32 %v4776, 7
    %v4778 = vsub.s32 0, %v4777
    %v4779 = vrot.slane %v4035, %v4778
    %v4780 = vlaneseq
    %v4781 = vshrl.u32 %v4780, 7
    %v4782 = vsub.s32 0, %v4781
    %v4783 = vrot.slane %v4050, %v4782
    %v4784 = vlaneseq
    %v4785 = vshrl.u32 %v4784, 7
    %v4786 = vsub.s32 0, %v4785
    %v4787 = vrot.slane %v4051, %v4786
    %v4788 = vsel %vm4127, %v4451, %v4447
    %v4789 = vsel %vm804, %v4775, %v4788
    %v4790 = vsel %vm4130, %v4779, %v4789
    %v4791 = vsel %vm806, %v4455, %v4790
    %v4792 = vsel %vm4133, %v4459, %v4791
    %v4793 = vsel %vm808, %v4783, %v4792
    %v4794 = vsel %vm4136, %v4787, %v4793
    %4796 = vmatprep.subr.mxu0 0.0
    %4797 = vmatpush1.msra.mxu0 %v4767
    %4798 = vmatprep.subr.mxu0 0.0
    %4799 = vmatpush1.msra.mxu0 %v4766
    %4800 = vmatprep.subr.mxu0 0.0
    %4801 = vmatpush1.msra.mxu0 %v4765
    %4802 = vmatprep.subr.mxu0 0.0
    %4803 = vmatpush1.msra.mxu0 %v4764
    %4804 = vmatprep.subr.mxu0 0.0
    %4805 = vmatpush1.msra.mxu0 %v4763
    %4806 = vmatprep.subr.mxu0 0.0
    %4807 = vmatpush1.msra.mxu0 %v4762
    %4808 = vmatprep.subr.mxu0 0.0
    %4809 = vmatpush1.msra.mxu0 %v4761
    %4810 = vmatprep.subr.mxu0 0.0
    %4811 = vmatpush1.msra.mxu0 %v4760
    %4812 = vmatprep.subr.mxu0 0.0
    %4813 = vmatpush1.msra.mxu0 %v4759
    %4814 = vmatprep.subr.mxu0 0.0
    %4815 = vmatpush1.msra.mxu0 %v4758
    %4816 = vmatprep.subr.mxu0 0.0
    %4817 = vmatpush1.msra.mxu0 %v4757
    %4818 = vmatprep.subr.mxu0 0.0
    %4819 = vmatpush1.msra.mxu0 %v4756
    %4820 = vmatprep.subr.mxu0 0.0
    %4821 = vmatpush1.msra.mxu0 %v4755
    %4822 = vmatprep.subr.mxu0 0.0
    %4823 = vmatpush1.msra.mxu0 %v4754
    %4824 = vmatprep.subr.mxu0 0.0
    %4825 = vmatpush1.msra.mxu0 %v4753
    %4826 = vmatprep.subr.mxu0 0.0
    %4827 = vmatpush1.msra.mxu0 %v4752
    %4828 = vmatprep.subr.mxu0 0.0
    %4829 = vmatpush2.msra.mxu0 0.0
    %4830 = vmatprep.subr.mxu0 0.0
    %4831 = vmatpush2.msra.mxu0 0.0
    %4832 = vmatprep.subr.mxu0 0.0
    %4833 = vmatpush2.msra.mxu0 0.0
    %4834 = vmatprep.subr.mxu0 0.0
    %4835 = vmatpush2.msra.mxu0 0.0
    %4836 = vmatprep.subr.mxu0 0.0
    %4837 = vmatpush2.msra.mxu0 0.0
    %4838 = vmatprep.subr.mxu0 0.0
    %4839 = vmatpush2.msra.mxu0 0.0
    %4840 = vmatprep.subr.mxu0 0.0
    %4841 = vmatpush2.msra.mxu0 0.0
    %4842 = vmatprep.subr.mxu0 0.0
    %4843 = vmatpush2.msra.mxu0 0.0
    %4844 = vmatprep.subr.mxu0 0.0
    %4845 = vmatpush2.msra.mxu0 0.0
    %4846 = vmatprep.subr.mxu0 0.0
    %4847 = vmatpush2.msra.mxu0 0.0
    %4848 = vmatprep.subr.mxu0 0.0
    %4849 = vmatpush2.msra.mxu0 0.0
    %4850 = vmatprep.subr.mxu0 0.0
    %4851 = vmatpush2.msra.mxu0 0.0
    %4852 = vmatprep.subr.mxu0 0.0
    %4853 = vmatpush2.msra.mxu0 0.0
    %4854 = vmatprep.subr.mxu0 0.0
    %4855 = vmatpush2.msra.mxu0 0.0
    %4856 = vmatprep.subr.mxu0 0.0
    %4857 = vmatpush2.msra.mxu0 0.0
    %4858 = vmatprep.subr.mxu0 0.0
    %4859 = vmatpush2.msra.mxu0 0.0
    %4860 = vmatprep.mubr.f32.mxu0 0.0
    %4861 = vmatmul.mubr.f32.gmra.mxu0 %v4794
    %v4862 = vpop.f32.mrf.mxu0
    %v4863 = vadd.f32 0.0, %v4862
    %v4864 = vpop.f32.mrf.mxu0
    %4865 = vdwg.mxu0
    %v4866 = vadd.f32 %v4750, %v4863
    %s4867 = scalar_lea.vmem %s5, 896
    %v4868 = vld [vmem:[%s4867] sm:$0xff]
    %v4869 = vld [vmem:[%s4867 + $0x8] sm:$0xff]
    %v4870 = vld [vmem:[%s4867 + $0x10] sm:$0xff]
    %v4871 = vld [vmem:[%s4867 + $0x18] sm:$0xff]
    %v4872 = vld [vmem:[%s4867 + $0x20] sm:$0xff]
    %v4873 = vld [vmem:[%s4867 + $0x28] sm:$0xff]
    %v4874 = vld [vmem:[%s4867 + $0x30] sm:$0xff]
    %v4875 = vld [vmem:[%s4867 + $0x38] sm:$0xff]
    %v4876 = vld [vmem:[%s4867 + $0x40] sm:$0xff]
    %v4877 = vld [vmem:[%s4867 + $0x48] sm:$0xff]
    %v4878 = vld [vmem:[%s4867 + $0x50] sm:$0xff]
    %v4879 = vld [vmem:[%s4867 + $0x58] sm:$0xff]
    %v4880 = vld [vmem:[%s4867 + $0x60] sm:$0xff]
    %v4881 = vld [vmem:[%s4867 + $0x68] sm:$0xff]
    %v4882 = vld [vmem:[%s4867 + $0x70] sm:$0xff]
    %v4883 = vld [vmem:[%s4867 + $0x78] sm:$0xff]
    %v4886 = vlaneseq
    %v4887 = vshrl.u32 %v4886, 7
    %v4888 = vsub.s32 0, %v4887
    %v4889 = vrot.slane %v4036, %v4888
    %v4890 = vlaneseq
    %v4891 = vshrl.u32 %v4890, 7
    %v4892 = vsub.s32 0, %v4891
    %v4893 = vrot.slane %v4052, %v4892
    %v4894 = vsel %vm4127, %v4561, %v4451
    %v4895 = vsel %vm804, %v4779, %v4894
    %v4896 = vsel %vm4130, %v4889, %v4895
    %v4897 = vsel %vm806, %v4459, %v4896
    %v4898 = vsel %vm4133, %v4565, %v4897
    %v4899 = vsel %vm808, %v4787, %v4898
    %v4900 = vsel %vm4136, %v4893, %v4899
    %4902 = vmatprep.subr.mxu0 0.0
    %4903 = vmatpush1.msra.mxu0 %v4883
    %4904 = vmatprep.subr.mxu0 0.0
    %4905 = vmatpush1.msra.mxu0 %v4882
    %4906 = vmatprep.subr.mxu0 0.0
    %4907 = vmatpush1.msra.mxu0 %v4881
    %4908 = vmatprep.subr.mxu0 0.0
    %4909 = vmatpush1.msra.mxu0 %v4880
    %4910 = vmatprep.subr.mxu0 0.0
    %4911 = vmatpush1.msra.mxu0 %v4879
    %4912 = vmatprep.subr.mxu0 0.0
    %4913 = vmatpush1.msra.mxu0 %v4878
    %4914 = vmatprep.subr.mxu0 0.0
    %4915 = vmatpush1.msra.mxu0 %v4877
    %4916 = vmatprep.subr.mxu0 0.0
    %4917 = vmatpush1.msra.mxu0 %v4876
    %4918 = vmatprep.subr.mxu0 0.0
    %4919 = vmatpush1.msra.mxu0 %v4875
    %4920 = vmatprep.subr.mxu0 0.0
    %4921 = vmatpush1.msra.mxu0 %v4874
    %4922 = vmatprep.subr.mxu0 0.0
    %4923 = vmatpush1.msra.mxu0 %v4873
    %4924 = vmatprep.subr.mxu0 0.0
    %4925 = vmatpush1.msra.mxu0 %v4872
    %4926 = vmatprep.subr.mxu0 0.0
    %4927 = vmatpush1.msra.mxu0 %v4871
    %4928 = vmatprep.subr.mxu0 0.0
    %4929 = vmatpush1.msra.mxu0 %v4870
    %4930 = vmatprep.subr.mxu0 0.0
    %4931 = vmatpush1.msra.mxu0 %v4869
    %4932 = vmatprep.subr.mxu0 0.0
    %4933 = vmatpush1.msra.mxu0 %v4868
    %4934 = vmatprep.subr.mxu0 0.0
    %4935 = vmatpush2.msra.mxu0 0.0
    %4936 = vmatprep.subr.mxu0 0.0
    %4937 = vmatpush2.msra.mxu0 0.0
    %4938 = vmatprep.subr.mxu0 0.0
    %4939 = vmatpush2.msra.mxu0 0.0
    %4940 = vmatprep.subr.mxu0 0.0
    %4941 = vmatpush2.msra.mxu0 0.0
    %4942 = vmatprep.subr.mxu0 0.0
    %4943 = vmatpush2.msra.mxu0 0.0
    %4944 = vmatprep.subr.mxu0 0.0
    %4945 = vmatpush2.msra.mxu0 0.0
    %4946 = vmatprep.subr.mxu0 0.0
    %4947 = vmatpush2.msra.mxu0 0.0
    %4948 = vmatprep.subr.mxu0 0.0
    %4949 = vmatpush2.msra.mxu0 0.0
    %4950 = vmatprep.subr.mxu0 0.0
    %4951 = vmatpush2.msra.mxu0 0.0
    %4952 = vmatprep.subr.mxu0 0.0
    %4953 = vmatpush2.msra.mxu0 0.0
    %4954 = vmatprep.subr.mxu0 0.0
    %4955 = vmatpush2.msra.mxu0 0.0
    %4956 = vmatprep.subr.mxu0 0.0
    %4957 = vmatpush2.msra.mxu0 0.0
    %4958 = vmatprep.subr.mxu0 0.0
    %4959 = vmatpush2.msra.mxu0 0.0
    %4960 = vmatprep.subr.mxu0 0.0
    %4961 = vmatpush2.msra.mxu0 0.0
    %4962 = vmatprep.subr.mxu0 0.0
    %4963 = vmatpush2.msra.mxu0 0.0
    %4964 = vmatprep.subr.mxu0 0.0
    %4965 = vmatpush2.msra.mxu0 0.0
    %4966 = vmatprep.mubr.f32.mxu0 0.0
    %4967 = vmatmul.mubr.f32.gmra.mxu0 %v4900
    %v4968 = vpop.f32.mrf.mxu0
    %v4969 = vadd.f32 0.0, %v4968
    %v4970 = vpop.f32.mrf.mxu0
    %4971 = vdwg.mxu0
    %v4972 = vadd.f32 %v4866, %v4969
    %s4973 = scalar_lea.vmem %s5, 1024
    %v4974 = vld [vmem:[%s4973] sm:$0xff]
    %v4975 = vld [vmem:[%s4973 + $0x8] sm:$0xff]
    %v4976 = vld [vmem:[%s4973 + $0x10] sm:$0xff]
    %v4977 = vld [vmem:[%s4973 + $0x18] sm:$0xff]
    %v4978 = vld [vmem:[%s4973 + $0x20] sm:$0xff]
    %v4979 = vld [vmem:[%s4973 + $0x28] sm:$0xff]
    %v4980 = vld [vmem:[%s4973 + $0x30] sm:$0xff]
    %v4981 = vld [vmem:[%s4973 + $0x38] sm:$0xff]
    %v4982 = vld [vmem:[%s4973 + $0x40] sm:$0xff]
    %v4983 = vld [vmem:[%s4973 + $0x48] sm:$0xff]
    %v4984 = vld [vmem:[%s4973 + $0x50] sm:$0xff]
    %v4985 = vld [vmem:[%s4973 + $0x58] sm:$0xff]
    %v4986 = vld [vmem:[%s4973 + $0x60] sm:$0xff]
    %v4987 = vld [vmem:[%s4973 + $0x68] sm:$0xff]
    %v4988 = vld [vmem:[%s4973 + $0x70] sm:$0xff]
    %v4989 = vld [vmem:[%s4973 + $0x78] sm:$0xff]
    %v4992 = vlaneseq
    %v4993 = vshrl.u32 %v4992, 7
    %v4994 = vsub.s32 0, %v4993
    %v4995 = vrot.slane %v4037, %v4994
    %v4996 = vlaneseq
    %v4997 = vshrl.u32 %v4996, 7
    %v4998 = vsub.s32 0, %v4997
    %v4999 = vrot.slane %v4053, %v4998
    %v5000 = vsel %vm4127, %v4667, %v4561
    %v5001 = vsel %vm804, %v4889, %v5000
    %v5002 = vsel %vm4130, %v4995, %v5001
    %v5003 = vsel %vm806, %v4565, %v5002
    %v5004 = vsel %vm4133, %v4671, %v5003
    %v5005 = vsel %vm808, %v4893, %v5004
    %v5006 = vsel %vm4136, %v4999, %v5005
    %5008 = vmatprep.subr.mxu0 0.0
    %5009 = vmatpush1.msra.mxu0 %v4989
    %5010 = vmatprep.subr.mxu0 0.0
    %5011 = vmatpush1.msra.mxu0 %v4988
    %5012 = vmatprep.subr.mxu0 0.0
    %5013 = vmatpush1.msra.mxu0 %v4987
    %5014 = vmatprep.subr.mxu0 0.0
    %5015 = vmatpush1.msra.mxu0 %v4986
    %5016 = vmatprep.subr.mxu0 0.0
    %5017 = vmatpush1.msra.mxu0 %v4985
    %5018 = vmatprep.subr.mxu0 0.0
    %5019 = vmatpush1.msra.mxu0 %v4984
    %5020 = vmatprep.subr.mxu0 0.0
    %5021 = vmatpush1.msra.mxu0 %v4983
    %5022 = vmatprep.subr.mxu0 0.0
    %5023 = vmatpush1.msra.mxu0 %v4982
    %5024 = vmatprep.subr.mxu0 0.0
    %5025 = vmatpush1.msra.mxu0 %v4981
    %5026 = vmatprep.subr.mxu0 0.0
    %5027 = vmatpush1.msra.mxu0 %v4980
    %5028 = vmatprep.subr.mxu0 0.0
    %5029 = vmatpush1.msra.mxu0 %v4979
    %5030 = vmatprep.subr.mxu0 0.0
    %5031 = vmatpush1.msra.mxu0 %v4978
    %5032 = vmatprep.subr.mxu0 0.0
    %5033 = vmatpush1.msra.mxu0 %v4977
    %5034 = vmatprep.subr.mxu0 0.0
    %5035 = vmatpush1.msra.mxu0 %v4976
    %5036 = vmatprep.subr.mxu0 0.0
    %5037 = vmatpush1.msra.mxu0 %v4975
    %5038 = vmatprep.subr.mxu0 0.0
    %5039 = vmatpush1.msra.mxu0 %v4974
    %5040 = vmatprep.subr.mxu0 0.0
    %5041 = vmatpush2.msra.mxu0 0.0
    %5042 = vmatprep.subr.mxu0 0.0
    %5043 = vmatpush2.msra.mxu0 0.0
    %5044 = vmatprep.subr.mxu0 0.0
    %5045 = vmatpush2.msra.mxu0 0.0
    %5046 = vmatprep.subr.mxu0 0.0
    %5047 = vmatpush2.msra.mxu0 0.0
    %5048 = vmatprep.subr.mxu0 0.0
    %5049 = vmatpush2.msra.mxu0 0.0
    %5050 = vmatprep.subr.mxu0 0.0
    %5051 = vmatpush2.msra.mxu0 0.0
    %5052 = vmatprep.subr.mxu0 0.0
    %5053 = vmatpush2.msra.mxu0 0.0
    %5054 = vmatprep.subr.mxu0 0.0
    %5055 = vmatpush2.msra.mxu0 0.0
    %5056 = vmatprep.subr.mxu0 0.0
    %5057 = vmatpush2.msra.mxu0 0.0
    %5058 = vmatprep.subr.mxu0 0.0
    %5059 = vmatpush2.msra.mxu0 0.0
    %5060 = vmatprep.subr.mxu0 0.0
    %5061 = vmatpush2.msra.mxu0 0.0
    %5062 = vmatprep.subr.mxu0 0.0
    %5063 = vmatpush2.msra.mxu0 0.0
    %5064 = vmatprep.subr.mxu0 0.0
    %5065 = vmatpush2.msra.mxu0 0.0
    %5066 = vmatprep.subr.mxu0 0.0
    %5067 = vmatpush2.msra.mxu0 0.0
    %5068 = vmatprep.subr.mxu0 0.0
    %5069 = vmatpush2.msra.mxu0 0.0
    %5070 = vmatprep.subr.mxu0 0.0
    %5071 = vmatpush2.msra.mxu0 0.0
    %5072 = vmatprep.mubr.f32.mxu0 0.0
    %5073 = vmatmul.mubr.f32.gmra.mxu0 %v5006
    %v5074 = vpop.f32.mrf.mxu0
    %v5075 = vadd.f32 0.0, %v5074
    %v5076 = vpop.f32.mrf.mxu0
    %5077 = vdwg.mxu0
    %v5078 = vadd.f32 %v4972, %v5075
    %v5079 = vld [vmem:[%s6] sm:$0x1]
    %v5081 = vlaneseq
    %v5082 = vshrl.u32 %v5081, 7
    %v5083 = vsub.s32 0, %v5082
    %v5084 = vrot.slane %v5079, %v5083
    %v5086 = vadd.f32 %v5078, %v5084
    %v5087 = vmax.f32 %v5086, 0.0
    %v5089 = vcombine.high %v5087, %v5087
    %v5091 = vunpack.c.l.s4 1983009808
    %v5092 = vunpack.c.0.s8 %v5091
    %v5093 = vlaneseq
    %v5094 = vshrl.u32 %v5093, 7
    %v5095 = vsub.s32 %v5092, %v5094
    %v5096 = vrot.slane %v5087, %v5095
    %v5098 = vunpack.c.l.s4 1983009808
    %v5099 = vunpack.c.0.s8 %v5098
    %v5100 = vlaneseq
    %v5101 = vshrl.u32 %v5100, 7
    %v5102 = vsub.s32 %v5099, %v5101
    %v5103 = vrot.slane %v5089, %v5102
    %v5104 = vcombine.high %v5096, %v5096
    %v5105 = vcombine.high %v5103, %v5103
    %v5110 = vmax.f32 %v5096, %v5104
    %v5111 = vmax.f32 %v5103, %v5105
    %v5114 = vrot.slane %v5110, 7
    %v5115 = vrot.slane %v5114, 2
    %v5116 = vrot.slane %v5111, 7
    %v5117 = vrot.slane %v5116, 2
    %v5120 = vmax.f32 %v5110, %v5115
    %v5121 = vmax.f32 %v5111, %v5117
    %v5122 = vadd.f32 %v5120, 0.0
    %v5123 = vadd.f32 %v5121, 0.0
    %v5124 = vld [vmem:[%s7] sm:$0xff]
    %v5125 = vld [vmem:[%s7 + $0x8] sm:$0xff]
    %v5126 = vld [vmem:[%s7 + $0x10] sm:$0xff]
    %v5127 = vld [vmem:[%s7 + $0x18] sm:$0xff]
    %v5128 = vld [vmem:[%s7 + $0x20] sm:$0xff]
    %v5129 = vld [vmem:[%s7 + $0x28] sm:$0xff]
    %v5130 = vld [vmem:[%s7 + $0x30] sm:$0xff]
    %v5131 = vld [vmem:[%s7 + $0x38] sm:$0xff]
    %v5132 = vld [vmem:[%s7 + $0x40] sm:$0xff]
    %v5133 = vld [vmem:[%s7 + $0x48] sm:$0xff]
    %v5134 = vld [vmem:[%s7 + $0x50] sm:$0xff]
    %v5135 = vld [vmem:[%s7 + $0x58] sm:$0xff]
    %v5136 = vld [vmem:[%s7 + $0x60] sm:$0xff]
    %v5137 = vld [vmem:[%s7 + $0x68] sm:$0xff]
    %v5138 = vld [vmem:[%s7 + $0x70] sm:$0xff]
    %v5139 = vld [vmem:[%s7 + $0x78] sm:$0xff]
    %v5140 = vld [vmem:[%s8] sm:$0x1]
    %v5142 = vlaneseq
    %v5143 = vshrl.u32 %v5142, 7
    %v5144 = vsub.s32 0, %v5143
    %v5145 = vrot.slane %v5140, %v5144
    %v5149 = vlaneseq
    %v5150 = vshrl.u32 %v5149, 7
    %v5151 = vsub.s32 0, %v5150
    %v5152 = vrot.slane %v5122, %v5151
    %v5153 = vlaneseq
    %v5154 = vshrl.u32 %v5153, 7
    %v5155 = vsub.s32 0, %v5154
    %v5156 = vrot.slane %v5123, %v5155
    %v5157 = vsel %vm4127, %v5156, %v5152
    %5159 = vmatprep.subr.mxu0 0.0
    %5160 = vmatpush1.msra.mxu0 %v5139
    %5161 = vmatprep.subr.mxu0 0.0
    %5162 = vmatpush1.msra.mxu0 %v5138
    %5163 = vmatprep.subr.mxu0 0.0
    %5164 = vmatpush1.msra.mxu0 %v5137
    %5165 = vmatprep.subr.mxu0 0.0
    %5166 = vmatpush1.msra.mxu0 %v5136
    %5167 = vmatprep.subr.mxu0 0.0
    %5168 = vmatpush1.msra.mxu0 %v5135
    %5169 = vmatprep.subr.mxu0 0.0
    %5170 = vmatpush1.msra.mxu0 %v5134
    %5171 = vmatprep.subr.mxu0 0.0
    %5172 = vmatpush1.msra.mxu0 %v5133
    %5173 = vmatprep.subr.mxu0 0.0
    %5174 = vmatpush1.msra.mxu0 %v5132
    %5175 = vmatprep.subr.mxu0 0.0
    %5176 = vmatpush1.msra.mxu0 %v5131
    %5177 = vmatprep.subr.mxu0 0.0
    %5178 = vmatpush1.msra.mxu0 %v5130
    %5179 = vmatprep.subr.mxu0 0.0
    %5180 = vmatpush1.msra.mxu0 %v5129
    %5181 = vmatprep.subr.mxu0 0.0
    %5182 = vmatpush1.msra.mxu0 %v5128
    %5183 = vmatprep.subr.mxu0 0.0
    %5184 = vmatpush1.msra.mxu0 %v5127
    %5185 = vmatprep.subr.mxu0 0.0
    %5186 = vmatpush1.msra.mxu0 %v5126
    %5187 = vmatprep.subr.mxu0 0.0
    %5188 = vmatpush1.msra.mxu0 %v5125
    %5189 = vmatprep.subr.mxu0 0.0
    %5190 = vmatpush1.msra.mxu0 %v5124
    %5191 = vmatprep.subr.mxu0 0.0
    %5192 = vmatpush2.msra.mxu0 0.0
    %5193 = vmatprep.subr.mxu0 0.0
    %5194 = vmatpush2.msra.mxu0 0.0
    %5195 = vmatprep.subr.mxu0 0.0
    %5196 = vmatpush2.msra.mxu0 0.0
    %5197 = vmatprep.subr.mxu0 0.0
    %5198 = vmatpush2.msra.mxu0 0.0
    %5199 = vmatprep.subr.mxu0 0.0
    %5200 = vmatpush2.msra.mxu0 0.0
    %5201 = vmatprep.subr.mxu0 0.0
    %5202 = vmatpush2.msra.mxu0 0.0
    %5203 = vmatprep.subr.mxu0 0.0
    %5204 = vmatpush2.msra.mxu0 0.0
    %5205 = vmatprep.subr.mxu0 0.0
    %5206 = vmatpush2.msra.mxu0 0.0
    %5207 = vmatprep.subr.mxu0 0.0
    %5208 = vmatpush2.msra.mxu0 0.0
    %5209 = vmatprep.subr.mxu0 0.0
    %5210 = vmatpush2.msra.mxu0 0.0
    %5211 = vmatprep.subr.mxu0 0.0
    %5212 = vmatpush2.msra.mxu0 0.0
    %5213 = vmatprep.subr.mxu0 0.0
    %5214 = vmatpush2.msra.mxu0 0.0
    %5215 = vmatprep.subr.mxu0 0.0
    %5216 = vmatpush2.msra.mxu0 0.0
    %5217 = vmatprep.subr.mxu0 0.0
    %5218 = vmatpush2.msra.mxu0 0.0
    %5219 = vmatprep.subr.mxu0 0.0
    %5220 = vmatpush2.msra.mxu0 0.0
    %5221 = vmatprep.subr.mxu0 0.0
    %5222 = vmatpush2.msra.mxu0 0.0
    %5223 = vmatprep.mubr.f32.mxu0 0.0
    %5224 = vmatmul.mubr.f32.gmra.mxu0 %v5157
    %v5225 = vpop.f32.mrf.mxu0
    %v5226 = vadd.f32 %v5145, %v5225
    %v5227 = vpop.f32.mrf.mxu0
    %5228 = vdwg.mxu0
    %5229 = vst [vmem:[#allocation2] sm:$0x3] %v5226
    // Predicated region
    $region38: #{base_model_forward.1} parent=1 // pred_check
      _
    $region39: #{base_model_forward.1} parent=1 // pred_check_branch
      %5231 = sbr.rel (0) target = $region41
    $region40: #{base_model_forward.1} parent=1 // pred_region
      %s5233 = ssub.s32 32, 32
      %5234 = vsyncadd [#allocation3], %s5233
      %s5236 = sshll.u32 [#allocation2], 4
      %s5237 = int_to_ptr.vmem [resolvable:$true] %s5236
      %5239 = dma.vmem_to_hbm [thread:$0]  %s5237, 32, %s9, [#allocation3]
    $region41: #{base_model_forward.1} parent=1 // pred_fallthru
      _
    // Predicated region
    $region42: #{base_model_forward.1} parent=1 // pred_check
      _
    $region43: #{base_model_forward.1} parent=1 // pred_check_branch
      %5241 = sbr.rel (0) target = $region45
    $region44: #{base_model_forward.1} parent=1 // pred_region
      %5242 = dma.done [#allocation3], 32
    $region45: #{base_model_forward.1} parent=1 // pred_fallthru
      _
    %5243 = vsyncpa [#allocation3], 1

</llo_original>
